<compile_context>
chip_gen: v7x
topology: tpu7x:2x2x1
jax: 0.10.0
libtpu: 0.0.40
codegen_flags: <defaults>
</compile_context>

<pallas_src>
import functools

import jax
import jax.numpy as jnp
from jax import lax
from jax.experimental import pallas as pl
from jax.experimental.pallas import tpu as pltpu


# ------------------------------ in-kernel math helpers ------------------------------

def _mm(a, b):
    """Plain (M, K) x (K, N) MXU matmul with f32 accumulation."""
    return jnp.dot(a, b, preferred_element_type=jnp.float32)


def _layernorm(x, g, b):
    """PyTorch nn.LayerNorm semantics: biased variance, eps=1e-5."""
    mu = jnp.mean(x, axis=-1, keepdims=True)
    d = x - mu
    var = jnp.mean(d * d, axis=-1, keepdims=True)
    return d * lax.rsqrt(var + 1e-5) * g + b


# TODO(synk): Mosaic does not guarantee a native lax.erf lowering, so exact GELU uses
# the Abramowitz-Stegun 7.1.26 erf polynomial in-kernel (|abs err| <= 1.5e-7 ~ f32 eps);
# semantically matches PyTorch's erf-based nn.GELU to float32 tolerance.
def _erf_approx(x):
    ax = jnp.abs(x)
    t = 1.0 / (1.0 + 0.3275911 * ax)
    poly = t * (0.254829592 + t * (-0.284496736 + t * (1.421413741
                + t * (-1.453152027 + t * 1.061405429))))
    y = 1.0 - poly * jnp.exp(-ax * ax)
    return jnp.where(x < 0.0, -y, y)


def _gelu_erf(x):
    return 0.5 * x * (1.0 + _erf_approx(x * 0.7071067811865476))


# ------------------------------ fused ViT kernel ------------------------------

def _vit_kernel(words_ref, emb_w_ref, init_ref,
                ln1g_ref, ln1b_ref, wqkv_ref, bqkv_ref, wo_ref, bo_ref,
                ln2g_ref, ln2b_ref, w1_ref, b1_ref, w2_ref, b2_ref,
                fcg_ref, fcb_ref, fcw_ref, fcbias_ref,
                logits_ref, tok_ref,
                *, bb, head, dp, scale):
    """One grid step = (one batch block, one encoder layer).

    tok_ref  : VMEM scratch (bb, Ntok, hidden) — token state carried across layers.
    wqkv_ref : (1, hidden, 3*head*dp)  columns = [q heads | k heads | v heads].
    wo_ref   : (1, head*dp, hidden)    Wo^T rows grouped per head (padded rows zero).
    init_ref : (1, Ntok, hidden)       [cls_token | patch-emb bias] + pos_emb.
    """
    layer = pl.program_id(1)
    nlayers = pl.num_programs(1)

    # ---- prologue (first layer step): patch embedding + cls token + pos emb ----
    @pl.when(layer == 0)
    def _():
        for b in range(bb):
            e = _mm(words_ref[b], emb_w_ref[...])                        # (N0, hidden)
            tok = jnp.concatenate(
                [jnp.zeros((1, e.shape[1]), jnp.float32), e], axis=0)    # cls row slot
            tok_ref[b] = tok + init_ref[0]

    # ---- one encoder layer, whole batch block in-kernel (weights DMA'd once) ----
    cls_rows = []
    for b in range(bb):                                                  # static unroll
        x = tok_ref[b]                                                   # (Ntok, hidden)

        # multi-head self-attention branch (pre-LN); single fused QKV projection
        h = _layernorm(x, ln1g_ref[0], ln1b_ref[0])
        qkv = _mm(h, wqkv_ref[0]) + bqkv_ref[0]                          # (Ntok, 3*head*dp)
        heads = []
        for hd in range(head):                                           # static unroll
            q = qkv[:, hd * dp:(hd + 1) * dp] * scale                    # scale on N*dp
            k = qkv[:, (head + hd) * dp:(head + hd + 1) * dp]
            v = qkv[:, (2 * head + hd) * dp:(2 * head + hd + 1) * dp]
            s = lax.dot_general(q, k, (((1,), (1,)), ((), ())),
                                preferred_element_type=jnp.float32)      # (Ntok, Ntok)
            s = s - jnp.max(s, axis=-1, keepdims=True)
            p = jnp.exp(s)
            p = p * pl.reciprocal(jnp.sum(p, axis=-1, keepdims=True), approx=True)
            heads.append(_mm(p, v))                                      # (Ntok, dp)
        attn = jnp.concatenate(heads, axis=-1)                           # (Ntok, head*dp)
        x = x + _mm(attn, wo_ref[0]) + bo_ref[0]     # one fused output projection + res

        # MLP branch (Linear -> GELU -> Linear -> GELU, as in the module); dropout p=0
        h2 = _layernorm(x, ln2g_ref[0], ln2b_ref[0])
        m = _gelu_erf(_mm(h2, w1_ref[0]) + b1_ref[0])
        m = _gelu_erf(_mm(m, w2_ref[0]) + b2_ref[0])
        x = x + m

        tok_ref[b] = x
        cls_rows.append(x[0:1, :])

    # ---- epilogue (last layer step): LayerNorm + classifier on the cls tokens ----
    @pl.when(layer == nlayers - 1)
    def _():
        cls = jnp.concatenate(cls_rows, axis=0) if bb > 1 else cls_rows[0]   # (bb, hidden)
        hc = _layernorm(cls, fcg_ref[...], fcb_ref[...])
        logits_ref[...] = _mm(hc, fcw_ref[...]) + fcbias_ref[...]        # lane-dense store


# ------------------------------ Pallas wrapper ------------------------------

def pallas_vit(words, pp, *, head, num_layers, batch_block=None):
    """Whole ViT forward (patch embed -> encoder -> classifier) in one pallas_call."""
    B, N0, f = words.shape
    hidden = pp["emb_w"].shape[1]
    Ntok = pp["init_add"].shape[1]
    dp = pp["wqkv"].shape[2] // (3 * head)
    ncls_pad = pp["fc_w"].shape[1]
    bb = B if batch_block is None else batch_block
    assert B % bb == 0
    scale = 1.0 / float(hidden) ** 0.5           # module divides scores by sqrt(feats)

    layer_names = ["ln1_g", "ln1_b", "wqkv", "bqkv", "wo", "bo",
                   "ln2_g", "ln2_b", "w1", "b1", "w2", "b2"]
    layer_ws = [pp[n] for n in layer_names]
    head_ws = [pp[n] for n in ("fc_ln_g", "fc_ln_b", "fc_w", "fc_b")]

    def const_spec(arr):                          # fetched once (constant block index)
        zeros = (0,) * arr.ndim
        return pl.BlockSpec(tuple(arr.shape), lambda bi, l, _z=zeros: _z)

    def layer_spec(arr):                          # indexed by the layer grid axis
        zeros = (0,) * (arr.ndim - 1)
        return pl.BlockSpec((1,) + tuple(arr.shape[1:]),
                            lambda bi, l, _z=zeros: (l,) + _z)

    kern = functools.partial(_vit_kernel, bb=bb, head=head, dp=dp, scale=scale)

    return pl.pallas_call(
        kern,
        out_shape=jax.ShapeDtypeStruct((B, ncls_pad), jnp.float32),
        grid=(B // bb, num_layers),
        in_specs=([pl.BlockSpec((bb, N0, f), lambda bi, l: (bi, 0, 0)),
                   const_spec(pp["emb_w"]), const_spec(pp["init_add"])]
                  + [layer_spec(w) for w in layer_ws]
                  + [const_spec(w) for w in head_ws]),
        out_specs=pl.BlockSpec((bb, ncls_pad), lambda bi, l: (bi, 0)),
        scratch_shapes=[pltpu.VMEM((bb, Ntok, hidden), jnp.float32)],
        compiler_params=pltpu.CompilerParams(
            dimension_semantics=("parallel", "arbitrary")),
    )(words, pp["emb_w"], pp["init_add"], *layer_ws, *head_ws)


# ------------------------------ parameters ------------------------------

def _dense_init(key, out_f, in_f):
    kw, kb = jax.random.split(key)
    return {
        "w": jax.random.normal(kw, (out_f, in_f), jnp.float32) * 0.02,   # torch (out,in)
        "b": jax.random.normal(kb, (out_f,), jnp.float32) * 0.02,
    }


def init_params(key, cfg):
    hidden = cfg["hidden"]
    mlp_hidden = cfg["mlp_hidden"]
    patch = cfg["patch"]
    ps = cfg["img_size"] // patch
    f = ps * ps * 3                       # module hardcodes "* 3"
    num_tokens = patch * patch + 1        # is_cls_token=True

    keys = jax.random.split(key, 4 + cfg["num_layers"])
    params = {
        "emb": _dense_init(keys[0], hidden, f),
        "cls_token": jax.random.normal(keys[1], (1, 1, hidden), jnp.float32),
        "pos_emb": jax.random.normal(keys[2], (1, num_tokens, hidden), jnp.float32),
        "fc_ln_g": jnp.ones((hidden,), jnp.float32),
        "fc_ln_b": jnp.zeros((hidden,), jnp.float32),
        "fc": _dense_init(keys[3], cfg["num_classes"], hidden),
        "layers": [],
    }
    for li in range(cfg["num_layers"]):
        lk = jax.random.split(keys[4 + li], 6)
        params["layers"].append({
            "ln1_g": jnp.ones((hidden,), jnp.float32),
            "ln1_b": jnp.zeros((hidden,), jnp.float32),
            "q": _dense_init(lk[0], hidden, hidden),
            "k": _dense_init(lk[1], hidden, hidden),
            "v": _dense_init(lk[2], hidden, hidden),
            "o": _dense_init(lk[3], hidden, hidden),
            "ln2_g": jnp.ones((hidden,), jnp.float32),
            "ln2_b": jnp.zeros((hidden,), jnp.float32),
            "mlp1": _dense_init(lk[4], mlp_hidden, hidden),
            "mlp2": _dense_init(lk[5], hidden, mlp_hidden),
        })
    return params


def prepare_params(params, cfg):
    """One-time eager layout prep (outside jit):
       * pre-transpose every Linear weight to (in, out) so in-kernel dots are plain
         (M,K)x(K,N) — no trans_b contraction on weights;
       * fuse Q/K/V into one weight slab with the head dim zero-padded to a multiple
         of 8 (exact: padded Q/K/V columns and the matching Wo rows are zero);
       * fold cls token, positional embedding and the patch-embed bias into one
         additive prologue tensor;
       * zero-pad the classifier out-dim to a lane-dense 128 (sliced back outside).
    """
    hidden = cfg["hidden"]
    head = cfg["head"]
    D = hidden // head
    Dp = -(-D // 8) * 8                      # 12 -> 16
    ncls = cfg["num_classes"]
    ncls_pad = -(-ncls // 128) * 128         # 10 -> 128

    def per_layer(fn):
        return jnp.stack([fn(lp) for lp in params["layers"]], axis=0)

    def qkv_w(lp):   # (hidden, 3*head*Dp): columns = [q heads | k heads | v heads]
        cols = []
        for name in ("q", "k", "v"):
            wt = lp[name]["w"].T.reshape(hidden, head, D)       # (in, head, D)
            wt = jnp.pad(wt, ((0, 0), (0, 0), (0, Dp - D)))
            cols.append(wt.reshape(hidden, head * Dp))
        return jnp.concatenate(cols, axis=1)

    def qkv_b(lp):   # (1, 3*head*Dp)
        bs = []
        for name in ("q", "k", "v"):
            bt = jnp.pad(lp[name]["b"].reshape(head, D), ((0, 0), (0, Dp - D)))
            bs.append(bt.reshape(1, head * Dp))
        return jnp.concatenate(bs, axis=1)

    def o_w(lp):     # (head*Dp, hidden): Wo^T rows grouped per head, zero rows for pad
        wt = lp["o"]["w"].T.reshape(head, D, hidden)
        wt = jnp.pad(wt, ((0, 0), (0, Dp - D), (0, 0)))
        return wt.reshape(head * Dp, hidden)

    num_tokens = params["pos_emb"].shape[1]
    init_add = jnp.concatenate(
        [params["cls_token"],
         jnp.broadcast_to(params["emb"]["b"].reshape(1, 1, hidden),
                          (1, num_tokens - 1, hidden))], axis=1) + params["pos_emb"]

    fc_w = jnp.pad(params["fc"]["w"].T, ((0, 0), (0, ncls_pad - ncls)))   # (hidden, 128)
    fc_b = jnp.pad(params["fc"]["b"].reshape(1, -1), ((0, 0), (0, ncls_pad - ncls)))

    return {
        "emb_w": params["emb"]["w"].T,                       # (f, hidden)
        "init_add": init_add,                                # (1, Ntok, hidden)
        "fc_ln_g": params["fc_ln_g"].reshape(1, -1),
        "fc_ln_b": params["fc_ln_b"].reshape(1, -1),
        "fc_w": fc_w,
        "fc_b": fc_b,
        "ln1_g": per_layer(lambda lp: lp["ln1_g"].reshape(1, hidden)),
        "ln1_b": per_layer(lambda lp: lp["ln1_b"].reshape(1, hidden)),
        "wqkv": per_layer(qkv_w),                            # (L, hidden, 3*head*Dp)
        "bqkv": per_layer(qkv_b),                            # (L, 1, 3*head*Dp)
        "wo": per_layer(o_w),                                # (L, head*Dp, hidden)
        "bo": per_layer(lambda lp: lp["o"]["b"].reshape(1, hidden)),
        "ln2_g": per_layer(lambda lp: lp["ln2_g"].reshape(1, hidden)),
        "ln2_b": per_layer(lambda lp: lp["ln2_b"].reshape(1, hidden)),
        "w1": per_layer(lambda lp: lp["mlp1"]["w"].T),       # (L, hidden, mlp_hidden)
        "b1": per_layer(lambda lp: lp["mlp1"]["b"].reshape(1, -1)),
        "w2": per_layer(lambda lp: lp["mlp2"]["w"].T),       # (L, mlp_hidden, hidden)
        "b2": per_layer(lambda lp: lp["mlp2"]["b"].reshape(1, -1)),
    }


# ------------------------------ forward pass ------------------------------

def vit_forward(pp, x, cfg):
    B, C, H, W = x.shape
    patch = cfg["patch"]
    ps = cfg["img_size"] // patch

    # _to_words: pure layout (reshape/transpose), feature order (ph, pw, C)
    words = x.reshape(B, C, patch, ps, patch, ps).transpose(0, 2, 4, 3, 5, 1)
    words = words.reshape(B, patch * patch, ps * ps * C)

    logits = pallas_vit(words, pp, head=cfg["head"], num_layers=cfg["num_layers"])
    return logits[:, :cfg["num_classes"]]      # drop the lane-padding columns


# ------------------------------ plain-JAX reference (for validation) ------------------------------

def _ref_layernorm(x, g, b):
    mu = x.mean(-1, keepdims=True)
    var = ((x - mu) ** 2).mean(-1, keepdims=True)
    return (x - mu) / jnp.sqrt(var + 1e-5) * g + b


def vit_reference(params, x, cfg):
    B, C, H, W = x.shape
    patch = cfg["patch"]
    ps = cfg["img_size"] // patch
    hidden = cfg["hidden"]
    head = cfg["head"]
    D = hidden // head

    words = x.reshape(B, C, patch, ps, patch, ps).transpose(0, 2, 4, 3, 5, 1)
    words = words.reshape(B, patch * patch, ps * ps * C)
    out = words @ params["emb"]["w"].T + params["emb"]["b"]
    cls = jnp.broadcast_to(params["cls_token"], (B, 1, hidden))
    out = jnp.concatenate([cls, out], axis=1) + params["pos_emb"]
    sqrt_d = float(hidden) ** 0.5
    for lp in params["layers"]:
        h = _ref_layernorm(out, lp["ln1_g"], lp["ln1_b"])
        q = (h @ lp["q"]["w"].T + lp["q"]["b"]).reshape(B, -1, head, D).transpose(0, 2, 1, 3)
        k = (h @ lp["k"]["w"].T + lp["k"]["b"]).reshape(B, -1, head, D).transpose(0, 2, 1, 3)
        v = (h @ lp["v"]["w"].T + lp["v"]["b"]).reshape(B, -1, head, D).transpose(0, 2, 1, 3)
        score = jax.nn.softmax(jnp.einsum("bhif,bhjf->bhij", q, k) / sqrt_d, axis=-1)
        attn = jnp.einsum("bhij,bhjf->bihf", score, v).reshape(B, -1, hidden)
        out = out + (attn @ lp["o"]["w"].T + lp["o"]["b"])
        h2 = _ref_layernorm(out, lp["ln2_g"], lp["ln2_b"])
        m = jax.nn.gelu(h2 @ lp["mlp1"]["w"].T + lp["mlp1"]["b"], approximate=False)
        m = jax.nn.gelu(m @ lp["mlp2"]["w"].T + lp["mlp2"]["b"], approximate=False)
        out = out + m
    cls_out = out[:, 0]
    h = _ref_layernorm(cls_out, params["fc_ln_g"], params["fc_ln_b"])
    return h @ params["fc"]["w"].T + params["fc"]["b"]


# ------------------------------ main ------------------------------

if __name__ == "__main__":
    cfg = dict(
        in_c=3,
        num_classes=10,
        img_size=16,
        patch=4,          # -> patch_size = 4, f = 4*4*3 = 48, tokens = 17
        num_layers=2,
        hidden=48,
        mlp_hidden=64,
        head=4,           # head_dim = 12 (zero-padded to 16 in the kernel)
    )

    root = jax.random.PRNGKey(0)
    kp, kx = jax.random.split(root)
    params = init_params(kp, cfg)
    prepped = prepare_params(params, cfg)     # one-time layout prep (outside jit)
    x = jax.random.normal(kx, (2, cfg["in_c"], cfg["img_size"], cfg["img_size"]),
                          jnp.float32)

    fwd = jax.jit(functools.partial(vit_forward, cfg=cfg))
    logits = fwd(prepped, x)
    jax.block_until_ready(logits)
    assert logits.shape == (2, cfg["num_classes"])

    ref = vit_reference(params, x, cfg)
    assert jnp.allclose(logits, ref, atol=1e-3, rtol=1e-3), \
        "Pallas ViT does not match plain-JAX reference"

    print("KERNEL_OK")
</pallas_src>

<mosaic_0001>
module attributes {stable_mosaic.version = 11 : i64} {
  func.func @_vit_kernel(%arg0: i32, %arg1: i32, %arg2: memref<2x16x48xf32, #tpu.memory_space<vmem>>, %arg3: memref<48x48xf32, #tpu.memory_space<vmem>>, %arg4: memref<1x17x48xf32, #tpu.memory_space<vmem>>, %arg5: memref<1x1x48xf32, #tpu.memory_space<vmem>>, %arg6: memref<1x1x48xf32, #tpu.memory_space<vmem>>, %arg7: memref<1x48x192xf32, #tpu.memory_space<vmem>>, %arg8: memref<1x1x192xf32, #tpu.memory_space<vmem>>, %arg9: memref<1x64x48xf32, #tpu.memory_space<vmem>>, %arg10: memref<1x1x48xf32, #tpu.memory_space<vmem>>, %arg11: memref<1x1x48xf32, #tpu.memory_space<vmem>>, %arg12: memref<1x1x48xf32, #tpu.memory_space<vmem>>, %arg13: memref<1x48x64xf32, #tpu.memory_space<vmem>>, %arg14: memref<1x1x64xf32, #tpu.memory_space<vmem>>, %arg15: memref<1x64x48xf32, #tpu.memory_space<vmem>>, %arg16: memref<1x1x48xf32, #tpu.memory_space<vmem>>, %arg17: memref<1x48xf32, #tpu.memory_space<vmem>>, %arg18: memref<1x48xf32, #tpu.memory_space<vmem>>, %arg19: memref<48x128xf32, #tpu.memory_space<vmem>>, %arg20: memref<1x128xf32, #tpu.memory_space<vmem>>, %arg21: memref<2x128xf32, #tpu.memory_space<vmem>>, %arg22: memref<2x17x48xf32, #tpu.memory_space<vmem>>) attributes {dimension_semantics = [#tpu.dimension_semantics<parallel>, #tpu.dimension_semantics<arbitrary>], iteration_bounds = array<i64: 1, 2>, scalar_prefetch = 0 : i64, scratch_operands = 1 : i64, tpu.core_type = #tpu.core_type<tc>, window_params = [{transform_indices = @transform_0, window_bounds = array<i64: 2, 16, 48>}, {pipeline_mode = #tpu.pipeline_mode<synchronous>, transform_indices = @transform_1, window_bounds = array<i64: 48, 48>}, {pipeline_mode = #tpu.pipeline_mode<synchronous>, transform_indices = @transform_2, window_bounds = array<i64: 1, 17, 48>}, {transform_indices = @transform_3, window_bounds = array<i64: 1, 1, 48>}, {transform_indices = @transform_4, window_bounds = array<i64: 1, 1, 48>}, {transform_indices = @transform_5, window_bounds = array<i64: 1, 48, 192>}, {transform_indices = @transform_6, window_bounds = array<i64: 1, 1, 192>}, {transform_indices = @transform_7, window_bounds = array<i64: 1, 64, 48>}, {transform_indices = @transform_8, window_bounds = array<i64: 1, 1, 48>}, {transform_indices = @transform_9, window_bounds = array<i64: 1, 1, 48>}, {transform_indices = @transform_10, window_bounds = array<i64: 1, 1, 48>}, {transform_indices = @transform_11, window_bounds = array<i64: 1, 48, 64>}, {transform_indices = @transform_12, window_bounds = array<i64: 1, 1, 64>}, {transform_indices = @transform_13, window_bounds = array<i64: 1, 64, 48>}, {transform_indices = @transform_14, window_bounds = array<i64: 1, 1, 48>}, {pipeline_mode = #tpu.pipeline_mode<synchronous>, transform_indices = @transform_15, window_bounds = array<i64: 1, 48>}, {pipeline_mode = #tpu.pipeline_mode<synchronous>, transform_indices = @transform_16, window_bounds = array<i64: 1, 48>}, {pipeline_mode = #tpu.pipeline_mode<synchronous>, transform_indices = @transform_17, window_bounds = array<i64: 48, 128>}, {pipeline_mode = #tpu.pipeline_mode<synchronous>, transform_indices = @transform_18, window_bounds = array<i64: 1, 128>}, {transform_indices = @transform_19, window_bounds = array<i64: 2, 128>}]} {
    %c0_i32 = arith.constant 0 : i32
    %0 = arith.cmpi eq, %arg1, %c0_i32 : i32
    %1 = arith.extui %0 : i1 to i32
    %c0_i32_0 = arith.constant 0 : i32
    %2 = arith.cmpi ne, %1, %c0_i32_0 : i32
    scf.if %2 {
      %c0_211 = arith.constant 0 : index
      %c0_212 = arith.constant 0 : index
      %c0_213 = arith.constant 0 : index
      %472 = vector.load %arg2[%c0_211, %c0_212, %c0_213] : memref<2x16x48xf32, #tpu.memory_space<vmem>>, vector<1x16x48xf32>
      %473 = vector.shape_cast %472 : vector<1x16x48xf32> to vector<16x48xf32>
      %c0_214 = arith.constant 0 : index
      %c0_215 = arith.constant 0 : index
      %474 = vector.load %arg3[%c0_214, %c0_215] : memref<48x48xf32, #tpu.memory_space<vmem>>, vector<48x48xf32>
      %cst_216 = arith.constant dense<0.000000e+00> : vector<16x48xf32>
      %475 = tpu.matmul %473, %474, %cst_216 {dimension_numbers = #tpu.dot_dimension_numbers<[1], [0], [0], [1], [0, 0, 1, 1], [], []>} : vector<16x48xf32>, vector<48x48xf32>, vector<16x48xf32> -> vector<16x48xf32>
      %cst_217 = arith.constant 0.000000e+00 : f32
      %476 = vector.broadcast %cst_217 : f32 to vector<1x48xf32>
      %477 = tpu.concatenate %476, %475 in 0 : vector<1x48xf32>, vector<16x48xf32> -> vector<17x48xf32>
      %c0_218 = arith.constant 0 : index
      %c0_219 = arith.constant 0 : index
      %c0_220 = arith.constant 0 : index
      %478 = vector.load %arg4[%c0_218, %c0_219, %c0_220] : memref<1x17x48xf32, #tpu.memory_space<vmem>>, vector<1x17x48xf32>
      %479 = vector.shape_cast %478 : vector<1x17x48xf32> to vector<17x48xf32>
      %480 = arith.addf %477, %479 : vector<17x48xf32>
      %c0_221 = arith.constant 0 : index
      %c0_222 = arith.constant 0 : index
      %c0_223 = arith.constant 0 : index
      %481 = vector.load %arg22[%c0_221, %c0_222, %c0_223] : memref<2x17x48xf32, #tpu.memory_space<vmem>>, vector<1x17x48xf32>
      %482 = vector.shape_cast %481 : vector<1x17x48xf32> to vector<17x48xf32>
      %483 = vector.shape_cast %480 : vector<17x48xf32> to vector<1x17x48xf32>
      tpu.vector_store %arg22[%c0_221, %c0_222, %c0_223], %483 {strides = array<i32>} : memref<2x17x48xf32, #tpu.memory_space<vmem>>, vector<1x17x48xf32>,
      %c1_224 = arith.constant 1 : index
      %c0_225 = arith.constant 0 : index
      %c0_226 = arith.constant 0 : index
      %484 = vector.load %arg2[%c1_224, %c0_225, %c0_226] : memref<2x16x48xf32, #tpu.memory_space<vmem>>, vector<1x16x48xf32>
      %485 = vector.shape_cast %484 : vector<1x16x48xf32> to vector<16x48xf32>
      %c0_227 = arith.constant 0 : index
      %c0_228 = arith.constant 0 : index
      %486 = vector.load %arg3[%c0_227, %c0_228] : memref<48x48xf32, #tpu.memory_space<vmem>>, vector<48x48xf32>
      %cst_229 = arith.constant dense<0.000000e+00> : vector<16x48xf32>
      %487 = tpu.matmul %485, %486, %cst_229 {dimension_numbers = #tpu.dot_dimension_numbers<[1], [0], [0], [1], [0, 0, 1, 1], [], []>} : vector<16x48xf32>, vector<48x48xf32>, vector<16x48xf32> -> vector<16x48xf32>
      %cst_230 = arith.constant 0.000000e+00 : f32
      %488 = vector.broadcast %cst_230 : f32 to vector<1x48xf32>
      %489 = tpu.concatenate %488, %487 in 0 : vector<1x48xf32>, vector<16x48xf32> -> vector<17x48xf32>
      %c0_231 = arith.constant 0 : index
      %c0_232 = arith.constant 0 : index
      %c0_233 = arith.constant 0 : index
      %490 = vector.load %arg4[%c0_231, %c0_232, %c0_233] : memref<1x17x48xf32, #tpu.memory_space<vmem>>, vector<1x17x48xf32>
      %491 = vector.shape_cast %490 : vector<1x17x48xf32> to vector<17x48xf32>
      %492 = arith.addf %489, %491 : vector<17x48xf32>
      %c1_234 = arith.constant 1 : index
      %c0_235 = arith.constant 0 : index
      %c0_236 = arith.constant 0 : index
      %493 = vector.load %arg22[%c1_234, %c0_235, %c0_236] : memref<2x17x48xf32, #tpu.memory_space<vmem>>, vector<1x17x48xf32>
      %494 = vector.shape_cast %493 : vector<1x17x48xf32> to vector<17x48xf32>
      %495 = vector.shape_cast %492 : vector<17x48xf32> to vector<1x17x48xf32>
      tpu.vector_store %arg22[%c1_234, %c0_235, %c0_236], %495 {strides = array<i32>} : memref<2x17x48xf32, #tpu.memory_space<vmem>>, vector<1x17x48xf32>,
    } else {
    }
    %c0 = arith.constant 0 : index
    %c0_1 = arith.constant 0 : index
    %c0_2 = arith.constant 0 : index
    %3 = vector.load %arg22[%c0, %c0_1, %c0_2] : memref<2x17x48xf32, #tpu.memory_space<vmem>>, vector<1x17x48xf32>
    %4 = vector.shape_cast %3 : vector<1x17x48xf32> to vector<17x48xf32>
    %c0_3 = arith.constant 0 : index
    %c0_4 = arith.constant 0 : index
    %c0_5 = arith.constant 0 : index
    %5 = vector.load %arg5[%c0_3, %c0_4, %c0_5] : memref<1x1x48xf32, #tpu.memory_space<vmem>>, vector<1x1x48xf32>
    %6 = vector.shape_cast %5 : vector<1x1x48xf32> to vector<1x48xf32>
    %c0_6 = arith.constant 0 : index
    %c0_7 = arith.constant 0 : index
    %c0_8 = arith.constant 0 : index
    %7 = vector.load %arg6[%c0_6, %c0_7, %c0_8] : memref<1x1x48xf32, #tpu.memory_space<vmem>>, vector<1x1x48xf32>
    %8 = vector.shape_cast %7 : vector<1x1x48xf32> to vector<1x48xf32>
    %cst = arith.constant dense<0.000000e+00> : vector<17xf32>
    %9 = vector.multi_reduction <add>, %4, %cst [1] : vector<17x48xf32> to vector<17xf32>
    %10 = vector.shape_cast %9 : vector<17xf32> to vector<17x1xf32>
    %cst_9 = arith.constant 4.800000e+01 : f32
    %11 = vector.broadcast %cst_9 : f32 to vector<17x1xf32>
    %12 = arith.divf %10, %11 : vector<17x1xf32>
    %13 = vector.broadcast %12 : vector<17x1xf32> to vector<17x48xf32>
    %14 = arith.subf %4, %13 : vector<17x48xf32>
    %15 = arith.mulf %14, %14 : vector<17x48xf32>
    %cst_10 = arith.constant dense<0.000000e+00> : vector<17xf32>
    %16 = vector.multi_reduction <add>, %15, %cst_10 [1] : vector<17x48xf32> to vector<17xf32>
    %17 = vector.shape_cast %16 : vector<17xf32> to vector<17x1xf32>
    %cst_11 = arith.constant 4.800000e+01 : f32
    %18 = vector.broadcast %cst_11 : f32 to vector<17x1xf32>
    %19 = arith.divf %17, %18 : vector<17x1xf32>
    %cst_12 = arith.constant 9.99999974E-6 : f32
    %20 = vector.broadcast %cst_12 : f32 to vector<17x1xf32>
    %21 = arith.addf %19, %20 : vector<17x1xf32>
    %22 = math.rsqrt %21 : vector<17x1xf32>
    %23 = vector.broadcast %22 : vector<17x1xf32> to vector<17x48xf32>
    %24 = arith.mulf %14, %23 : vector<17x48xf32>
    %25 = vector.broadcast %6 : vector<1x48xf32> to vector<17x48xf32>
    %26 = arith.mulf %24, %25 : vector<17x48xf32>
    %27 = vector.broadcast %8 : vector<1x48xf32> to vector<17x48xf32>
    %28 = arith.addf %26, %27 : vector<17x48xf32>
    %c0_13 = arith.constant 0 : index
    %c0_14 = arith.constant 0 : index
    %c0_15 = arith.constant 0 : index
    %29 = vector.load %arg7[%c0_13, %c0_14, %c0_15] : memref<1x48x192xf32, #tpu.memory_space<vmem>>, vector<1x48x192xf32>
    %30 = vector.shape_cast %29 : vector<1x48x192xf32> to vector<48x192xf32>
    %cst_16 = arith.constant dense<0.000000e+00> : vector<17x192xf32>
    %31 = tpu.matmul %28, %30, %cst_16 {dimension_numbers = #tpu.dot_dimension_numbers<[1], [0], [0], [1], [0, 0, 1, 1], [], []>} : vector<17x48xf32>, vector<48x192xf32>, vector<17x192xf32> -> vector<17x192xf32>
    %c0_17 = arith.constant 0 : index
    %c0_18 = arith.constant 0 : index
    %c0_19 = arith.constant 0 : index
    %32 = vector.load %arg8[%c0_17, %c0_18, %c0_19] : memref<1x1x192xf32, #tpu.memory_space<vmem>>, vector<1x1x192xf32>
    %33 = vector.shape_cast %32 : vector<1x1x192xf32> to vector<1x192xf32>
    %34 = vector.broadcast %33 : vector<1x192xf32> to vector<17x192xf32>
    %35 = arith.addf %31, %34 : vector<17x192xf32>
    %36 = vector.extract_strided_slice %35 {offsets = [0, 0], sizes = [17, 16], strides = [1, 1]} : vector<17x192xf32> to vector<17x16xf32>
    %cst_20 = arith.constant 0.144337565 : f32
    %37 = vector.broadcast %cst_20 : f32 to vector<17x16xf32>
    %38 = arith.mulf %36, %37 : vector<17x16xf32>
    %39 = vector.extract_strided_slice %35 {offsets = [0, 64], sizes = [17, 16], strides = [1, 1]} : vector<17x192xf32> to vector<17x16xf32>
    %40 = vector.extract_strided_slice %35 {offsets = [0, 128], sizes = [17, 16], strides = [1, 1]} : vector<17x192xf32> to vector<17x16xf32>
    %cst_21 = arith.constant dense<0.000000e+00> : vector<17x17xf32>
    %41 = tpu.matmul %38, %39, %cst_21 {dimension_numbers = #tpu.dot_dimension_numbers<[1], [1], [0], [0], [0, 0, 1, 0], [], []>} : vector<17x16xf32>, vector<17x16xf32>, vector<17x17xf32> -> vector<17x17xf32>
    %cst_22 = arith.constant dense<0xFF800000> : vector<17xf32>
    %42 = vector.multi_reduction <maximumf>, %41, %cst_22 [1] : vector<17x17xf32> to vector<17xf32>
    %43 = vector.shape_cast %42 : vector<17xf32> to vector<17x1xf32>
    %44 = vector.broadcast %43 : vector<17x1xf32> to vector<17x17xf32>
    %45 = arith.subf %41, %44 : vector<17x17xf32>
    %46 = math.exp %45 : vector<17x17xf32>
    %cst_23 = arith.constant dense<0.000000e+00> : vector<17xf32>
    %47 = vector.multi_reduction <add>, %46, %cst_23 [1] : vector<17x17xf32> to vector<17xf32>
    %48 = vector.shape_cast %47 : vector<17xf32> to vector<17x1xf32>
    %49 = tpu.reciprocal %48 {approx = true} : vector<17x1xf32> -> vector<17x1xf32>
    %50 = vector.broadcast %49 : vector<17x1xf32> to vector<17x17xf32>
    %51 = arith.mulf %46, %50 : vector<17x17xf32>
    %cst_24 = arith.constant dense<0.000000e+00> : vector<17x16xf32>
    %52 = tpu.matmul %51, %40, %cst_24 {dimension_numbers = #tpu.dot_dimension_numbers<[1], [0], [0], [1], [0, 0, 1, 1], [], []>} : vector<17x17xf32>, vector<17x16xf32>, vector<17x16xf32> -> vector<17x16xf32>
    %53 = vector.extract_strided_slice %35 {offsets = [0, 16], sizes = [17, 16], strides = [1, 1]} : vector<17x192xf32> to vector<17x16xf32>
    %cst_25 = arith.constant 0.144337565 : f32
    %54 = vector.broadcast %cst_25 : f32 to vector<17x16xf32>
    %55 = arith.mulf %53, %54 : vector<17x16xf32>
    %56 = vector.extract_strided_slice %35 {offsets = [0, 80], sizes = [17, 16], strides = [1, 1]} : vector<17x192xf32> to vector<17x16xf32>
    %57 = vector.extract_strided_slice %35 {offsets = [0, 144], sizes = [17, 16], strides = [1, 1]} : vector<17x192xf32> to vector<17x16xf32>
    %cst_26 = arith.constant dense<0.000000e+00> : vector<17x17xf32>
    %58 = tpu.matmul %55, %56, %cst_26 {dimension_numbers = #tpu.dot_dimension_numbers<[1], [1], [0], [0], [0, 0, 1, 0], [], []>} : vector<17x16xf32>, vector<17x16xf32>, vector<17x17xf32> -> vector<17x17xf32>
    %cst_27 = arith.constant dense<0xFF800000> : vector<17xf32>
    %59 = vector.multi_reduction <maximumf>, %58, %cst_27 [1] : vector<17x17xf32> to vector<17xf32>
    %60 = vector.shape_cast %59 : vector<17xf32> to vector<17x1xf32>
    %61 = vector.broadcast %60 : vector<17x1xf32> to vector<17x17xf32>
    %62 = arith.subf %58, %61 : vector<17x17xf32>
    %63 = math.exp %62 : vector<17x17xf32>
    %cst_28 = arith.constant dense<0.000000e+00> : vector<17xf32>
    %64 = vector.multi_reduction <add>, %63, %cst_28 [1] : vector<17x17xf32> to vector<17xf32>
    %65 = vector.shape_cast %64 : vector<17xf32> to vector<17x1xf32>
    %66 = tpu.reciprocal %65 {approx = true} : vector<17x1xf32> -> vector<17x1xf32>
    %67 = vector.broadcast %66 : vector<17x1xf32> to vector<17x17xf32>
    %68 = arith.mulf %63, %67 : vector<17x17xf32>
    %cst_29 = arith.constant dense<0.000000e+00> : vector<17x16xf32>
    %69 = tpu.matmul %68, %57, %cst_29 {dimension_numbers = #tpu.dot_dimension_numbers<[1], [0], [0], [1], [0, 0, 1, 1], [], []>} : vector<17x17xf32>, vector<17x16xf32>, vector<17x16xf32> -> vector<17x16xf32>
    %70 = vector.extract_strided_slice %35 {offsets = [0, 32], sizes = [17, 16], strides = [1, 1]} : vector<17x192xf32> to vector<17x16xf32>
    %cst_30 = arith.constant 0.144337565 : f32
    %71 = vector.broadcast %cst_30 : f32 to vector<17x16xf32>
    %72 = arith.mulf %70, %71 : vector<17x16xf32>
    %73 = vector.extract_strided_slice %35 {offsets = [0, 96], sizes = [17, 16], strides = [1, 1]} : vector<17x192xf32> to vector<17x16xf32>
    %74 = vector.extract_strided_slice %35 {offsets = [0, 160], sizes = [17, 16], strides = [1, 1]} : vector<17x192xf32> to vector<17x16xf32>
    %cst_31 = arith.constant dense<0.000000e+00> : vector<17x17xf32>
    %75 = tpu.matmul %72, %73, %cst_31 {dimension_numbers = #tpu.dot_dimension_numbers<[1], [1], [0], [0], [0, 0, 1, 0], [], []>} : vector<17x16xf32>, vector<17x16xf32>, vector<17x17xf32> -> vector<17x17xf32>
    %cst_32 = arith.constant dense<0xFF800000> : vector<17xf32>
    %76 = vector.multi_reduction <maximumf>, %75, %cst_32 [1] : vector<17x17xf32> to vector<17xf32>
    %77 = vector.shape_cast %76 : vector<17xf32> to vector<17x1xf32>
    %78 = vector.broadcast %77 : vector<17x1xf32> to vector<17x17xf32>
    %79 = arith.subf %75, %78 : vector<17x17xf32>
    %80 = math.exp %79 : vector<17x17xf32>
    %cst_33 = arith.constant dense<0.000000e+00> : vector<17xf32>
    %81 = vector.multi_reduction <add>, %80, %cst_33 [1] : vector<17x17xf32> to vector<17xf32>
    %82 = vector.shape_cast %81 : vector<17xf32> to vector<17x1xf32>
    %83 = tpu.reciprocal %82 {approx = true} : vector<17x1xf32> -> vector<17x1xf32>
    %84 = vector.broadcast %83 : vector<17x1xf32> to vector<17x17xf32>
    %85 = arith.mulf %80, %84 : vector<17x17xf32>
    %cst_34 = arith.constant dense<0.000000e+00> : vector<17x16xf32>
    %86 = tpu.matmul %85, %74, %cst_34 {dimension_numbers = #tpu.dot_dimension_numbers<[1], [0], [0], [1], [0, 0, 1, 1], [], []>} : vector<17x17xf32>, vector<17x16xf32>, vector<17x16xf32> -> vector<17x16xf32>
    %87 = vector.extract_strided_slice %35 {offsets = [0, 48], sizes = [17, 16], strides = [1, 1]} : vector<17x192xf32> to vector<17x16xf32>
    %cst_35 = arith.constant 0.144337565 : f32
    %88 = vector.broadcast %cst_35 : f32 to vector<17x16xf32>
    %89 = arith.mulf %87, %88 : vector<17x16xf32>
    %90 = vector.extract_strided_slice %35 {offsets = [0, 112], sizes = [17, 16], strides = [1, 1]} : vector<17x192xf32> to vector<17x16xf32>
    %91 = vector.extract_strided_slice %35 {offsets = [0, 176], sizes = [17, 16], strides = [1, 1]} : vector<17x192xf32> to vector<17x16xf32>
    %cst_36 = arith.constant dense<0.000000e+00> : vector<17x17xf32>
    %92 = tpu.matmul %89, %90, %cst_36 {dimension_numbers = #tpu.dot_dimension_numbers<[1], [1], [0], [0], [0, 0, 1, 0], [], []>} : vector<17x16xf32>, vector<17x16xf32>, vector<17x17xf32> -> vector<17x17xf32>
    %cst_37 = arith.constant dense<0xFF800000> : vector<17xf32>
    %93 = vector.multi_reduction <maximumf>, %92, %cst_37 [1] : vector<17x17xf32> to vector<17xf32>
    %94 = vector.shape_cast %93 : vector<17xf32> to vector<17x1xf32>
    %95 = vector.broadcast %94 : vector<17x1xf32> to vector<17x17xf32>
    %96 = arith.subf %92, %95 : vector<17x17xf32>
    %97 = math.exp %96 : vector<17x17xf32>
    %cst_38 = arith.constant dense<0.000000e+00> : vector<17xf32>
    %98 = vector.multi_reduction <add>, %97, %cst_38 [1] : vector<17x17xf32> to vector<17xf32>
    %99 = vector.shape_cast %98 : vector<17xf32> to vector<17x1xf32>
    %100 = tpu.reciprocal %99 {approx = true} : vector<17x1xf32> -> vector<17x1xf32>
    %101 = vector.broadcast %100 : vector<17x1xf32> to vector<17x17xf32>
    %102 = arith.mulf %97, %101 : vector<17x17xf32>
    %cst_39 = arith.constant dense<0.000000e+00> : vector<17x16xf32>
    %103 = tpu.matmul %102, %91, %cst_39 {dimension_numbers = #tpu.dot_dimension_numbers<[1], [0], [0], [1], [0, 0, 1, 1], [], []>} : vector<17x17xf32>, vector<17x16xf32>, vector<17x16xf32> -> vector<17x16xf32>
    %104 = tpu.concatenate %52, %69, %86, %103 in 1 : vector<17x16xf32>, vector<17x16xf32>, vector<17x16xf32>, vector<17x16xf32> -> vector<17x64xf32>
    %c0_40 = arith.constant 0 : index
    %c0_41 = arith.constant 0 : index
    %c0_42 = arith.constant 0 : index
    %105 = vector.load %arg9[%c0_40, %c0_41, %c0_42] : memref<1x64x48xf32, #tpu.memory_space<vmem>>, vector<1x64x48xf32>
    %106 = vector.shape_cast %105 : vector<1x64x48xf32> to vector<64x48xf32>
    %cst_43 = arith.constant dense<0.000000e+00> : vector<17x48xf32>
    %107 = tpu.matmul %104, %106, %cst_43 {dimension_numbers = #tpu.dot_dimension_numbers<[1], [0], [0], [1], [0, 0, 1, 1], [], []>} : vector<17x64xf32>, vector<64x48xf32>, vector<17x48xf32> -> vector<17x48xf32>
    %108 = arith.addf %4, %107 : vector<17x48xf32>
    %c0_44 = arith.constant 0 : index
    %c0_45 = arith.constant 0 : index
    %c0_46 = arith.constant 0 : index
    %109 = vector.load %arg10[%c0_44, %c0_45, %c0_46] : memref<1x1x48xf32, #tpu.memory_space<vmem>>, vector<1x1x48xf32>
    %110 = vector.shape_cast %109 : vector<1x1x48xf32> to vector<1x48xf32>
    %111 = vector.broadcast %110 : vector<1x48xf32> to vector<17x48xf32>
    %112 = arith.addf %108, %111 : vector<17x48xf32>
    %c0_47 = arith.constant 0 : index
    %c0_48 = arith.constant 0 : index
    %c0_49 = arith.constant 0 : index
    %113 = vector.load %arg11[%c0_47, %c0_48, %c0_49] : memref<1x1x48xf32, #tpu.memory_space<vmem>>, vector<1x1x48xf32>
    %114 = vector.shape_cast %113 : vector<1x1x48xf32> to vector<1x48xf32>
    %c0_50 = arith.constant 0 : index
    %c0_51 = arith.constant 0 : index
    %c0_52 = arith.constant 0 : index
    %115 = vector.load %arg12[%c0_50, %c0_51, %c0_52] : memref<1x1x48xf32, #tpu.memory_space<vmem>>, vector<1x1x48xf32>
    %116 = vector.shape_cast %115 : vector<1x1x48xf32> to vector<1x48xf32>
    %cst_53 = arith.constant dense<0.000000e+00> : vector<17xf32>
    %117 = vector.multi_reduction <add>, %112, %cst_53 [1] : vector<17x48xf32> to vector<17xf32>
    %118 = vector.shape_cast %117 : vector<17xf32> to vector<17x1xf32>
    %cst_54 = arith.constant 4.800000e+01 : f32
    %119 = vector.broadcast %cst_54 : f32 to vector<17x1xf32>
    %120 = arith.divf %118, %119 : vector<17x1xf32>
    %121 = vector.broadcast %120 : vector<17x1xf32> to vector<17x48xf32>
    %122 = arith.subf %112, %121 : vector<17x48xf32>
    %123 = arith.mulf %122, %122 : vector<17x48xf32>
    %cst_55 = arith.constant dense<0.000000e+00> : vector<17xf32>
    %124 = vector.multi_reduction <add>, %123, %cst_55 [1] : vector<17x48xf32> to vector<17xf32>
    %125 = vector.shape_cast %124 : vector<17xf32> to vector<17x1xf32>
    %cst_56 = arith.constant 4.800000e+01 : f32
    %126 = vector.broadcast %cst_56 : f32 to vector<17x1xf32>
    %127 = arith.divf %125, %126 : vector<17x1xf32>
    %cst_57 = arith.constant 9.99999974E-6 : f32
    %128 = vector.broadcast %cst_57 : f32 to vector<17x1xf32>
    %129 = arith.addf %127, %128 : vector<17x1xf32>
    %130 = math.rsqrt %129 : vector<17x1xf32>
    %131 = vector.broadcast %130 : vector<17x1xf32> to vector<17x48xf32>
    %132 = arith.mulf %122, %131 : vector<17x48xf32>
    %133 = vector.broadcast %114 : vector<1x48xf32> to vector<17x48xf32>
    %134 = arith.mulf %132, %133 : vector<17x48xf32>
    %135 = vector.broadcast %116 : vector<1x48xf32> to vector<17x48xf32>
    %136 = arith.addf %134, %135 : vector<17x48xf32>
    %c0_58 = arith.constant 0 : index
    %c0_59 = arith.constant 0 : index
    %c0_60 = arith.constant 0 : index
    %137 = vector.load %arg13[%c0_58, %c0_59, %c0_60] : memref<1x48x64xf32, #tpu.memory_space<vmem>>, vector<1x48x64xf32>
    %138 = vector.shape_cast %137 : vector<1x48x64xf32> to vector<48x64xf32>
    %cst_61 = arith.constant dense<0.000000e+00> : vector<17x64xf32>
    %139 = tpu.matmul %136, %138, %cst_61 {dimension_numbers = #tpu.dot_dimension_numbers<[1], [0], [0], [1], [0, 0, 1, 1], [], []>} : vector<17x48xf32>, vector<48x64xf32>, vector<17x64xf32> -> vector<17x64xf32>
    %c0_62 = arith.constant 0 : index
    %c0_63 = arith.constant 0 : index
    %c0_64 = arith.constant 0 : index
    %140 = vector.load %arg14[%c0_62, %c0_63, %c0_64] : memref<1x1x64xf32, #tpu.memory_space<vmem>>, vector<1x1x64xf32>
    %141 = vector.shape_cast %140 : vector<1x1x64xf32> to vector<1x64xf32>
    %142 = vector.broadcast %141 : vector<1x64xf32> to vector<17x64xf32>
    %143 = arith.addf %139, %142 : vector<17x64xf32>
    %cst_65 = arith.constant 5.000000e-01 : f32
    %144 = vector.broadcast %cst_65 : f32 to vector<17x64xf32>
    %145 = arith.mulf %144, %143 : vector<17x64xf32>
    %cst_66 = arith.constant 0.707106769 : f32
    %146 = vector.broadcast %cst_66 : f32 to vector<17x64xf32>
    %147 = arith.mulf %143, %146 : vector<17x64xf32>
    %148 = math.absf %147 : vector<17x64xf32>
    %cst_67 = arith.constant 0.327591091 : f32
    %149 = vector.broadcast %cst_67 : f32 to vector<17x64xf32>
    %150 = arith.mulf %149, %148 : vector<17x64xf32>
    %cst_68 = arith.constant 1.000000e+00 : f32
    %151 = vector.broadcast %cst_68 : f32 to vector<17x64xf32>
    %152 = arith.addf %151, %150 : vector<17x64xf32>
    %cst_69 = arith.constant 1.000000e+00 : f32
    %153 = vector.broadcast %cst_69 : f32 to vector<17x64xf32>
    %154 = arith.divf %153, %152 : vector<17x64xf32>
    %cst_70 = arith.constant 1.06140542 : f32
    %155 = vector.broadcast %cst_70 : f32 to vector<17x64xf32>
    %156 = arith.mulf %154, %155 : vector<17x64xf32>
    %cst_71 = arith.constant -1.45315206 : f32
    %157 = vector.broadcast %cst_71 : f32 to vector<17x64xf32>
    %158 = arith.addf %157, %156 : vector<17x64xf32>
    %159 = arith.mulf %154, %158 : vector<17x64xf32>
    %cst_72 = arith.constant 1.42141378 : f32
    %160 = vector.broadcast %cst_72 : f32 to vector<17x64xf32>
    %161 = arith.addf %160, %159 : vector<17x64xf32>
    %162 = arith.mulf %154, %161 : vector<17x64xf32>
    %cst_73 = arith.constant -0.284496725 : f32
    %163 = vector.broadcast %cst_73 : f32 to vector<17x64xf32>
    %164 = arith.addf %163, %162 : vector<17x64xf32>
    %165 = arith.mulf %154, %164 : vector<17x64xf32>
    %cst_74 = arith.constant 0.254829586 : f32
    %166 = vector.broadcast %cst_74 : f32 to vector<17x64xf32>
    %167 = arith.addf %166, %165 : vector<17x64xf32>
    %168 = arith.mulf %154, %167 : vector<17x64xf32>
    %cst_75 = arith.constant 0.000000e+00 : f32
    %169 = vector.broadcast %cst_75 : f32 to vector<17x64xf32>
    %170 = arith.subf %169, %148 : vector<17x64xf32>
    %171 = arith.mulf %170, %148 : vector<17x64xf32>
    %172 = math.exp %171 : vector<17x64xf32>
    %173 = arith.mulf %168, %172 : vector<17x64xf32>
    %cst_76 = arith.constant 1.000000e+00 : f32
    %174 = vector.broadcast %cst_76 : f32 to vector<17x64xf32>
    %175 = arith.subf %174, %173 : vector<17x64xf32>
    %cst_77 = arith.constant 0.000000e+00 : f32
    %176 = vector.broadcast %cst_77 : f32 to vector<17x64xf32>
    %177 = arith.cmpf olt, %147, %176 : vector<17x64xf32>
    %cst_78 = arith.constant 0.000000e+00 : f32
    %178 = vector.broadcast %cst_78 : f32 to vector<17x64xf32>
    %179 = arith.subf %178, %175 : vector<17x64xf32>
    %180 = arith.select %177, %179, %175 : vector<17x64xi1>, vector<17x64xf32>
    %cst_79 = arith.constant 1.000000e+00 : f32
    %181 = vector.broadcast %cst_79 : f32 to vector<17x64xf32>
    %182 = arith.addf %181, %180 : vector<17x64xf32>
    %183 = arith.mulf %145, %182 : vector<17x64xf32>
    %c0_80 = arith.constant 0 : index
    %c0_81 = arith.constant 0 : index
    %c0_82 = arith.constant 0 : index
    %184 = vector.load %arg15[%c0_80, %c0_81, %c0_82] : memref<1x64x48xf32, #tpu.memory_space<vmem>>, vector<1x64x48xf32>
    %185 = vector.shape_cast %184 : vector<1x64x48xf32> to vector<64x48xf32>
    %cst_83 = arith.constant dense<0.000000e+00> : vector<17x48xf32>
    %186 = tpu.matmul %183, %185, %cst_83 {dimension_numbers = #tpu.dot_dimension_numbers<[1], [0], [0], [1], [0, 0, 1, 1], [], []>} : vector<17x64xf32>, vector<64x48xf32>, vector<17x48xf32> -> vector<17x48xf32>
    %c0_84 = arith.constant 0 : index
    %c0_85 = arith.constant 0 : index
    %c0_86 = arith.constant 0 : index
    %187 = vector.load %arg16[%c0_84, %c0_85, %c0_86] : memref<1x1x48xf32, #tpu.memory_space<vmem>>, vector<1x1x48xf32>
    %188 = vector.shape_cast %187 : vector<1x1x48xf32> to vector<1x48xf32>
    %189 = vector.broadcast %188 : vector<1x48xf32> to vector<17x48xf32>
    %190 = arith.addf %186, %189 : vector<17x48xf32>
    %cst_87 = arith.constant 5.000000e-01 : f32
    %191 = vector.broadcast %cst_87 : f32 to vector<17x48xf32>
    %192 = arith.mulf %191, %190 : vector<17x48xf32>
    %cst_88 = arith.constant 0.707106769 : f32
    %193 = vector.broadcast %cst_88 : f32 to vector<17x48xf32>
    %194 = arith.mulf %190, %193 : vector<17x48xf32>
    %195 = math.absf %194 : vector<17x48xf32>
    %cst_89 = arith.constant 0.327591091 : f32
    %196 = vector.broadcast %cst_89 : f32 to vector<17x48xf32>
    %197 = arith.mulf %196, %195 : vector<17x48xf32>
    %cst_90 = arith.constant 1.000000e+00 : f32
    %198 = vector.broadcast %cst_90 : f32 to vector<17x48xf32>
    %199 = arith.addf %198, %197 : vector<17x48xf32>
    %cst_91 = arith.constant 1.000000e+00 : f32
    %200 = vector.broadcast %cst_91 : f32 to vector<17x48xf32>
    %201 = arith.divf %200, %199 : vector<17x48xf32>
    %cst_92 = arith.constant 1.06140542 : f32
    %202 = vector.broadcast %cst_92 : f32 to vector<17x48xf32>
    %203 = arith.mulf %201, %202 : vector<17x48xf32>
    %cst_93 = arith.constant -1.45315206 : f32
    %204 = vector.broadcast %cst_93 : f32 to vector<17x48xf32>
    %205 = arith.addf %204, %203 : vector<17x48xf32>
    %206 = arith.mulf %201, %205 : vector<17x48xf32>
    %cst_94 = arith.constant 1.42141378 : f32
    %207 = vector.broadcast %cst_94 : f32 to vector<17x48xf32>
    %208 = arith.addf %207, %206 : vector<17x48xf32>
    %209 = arith.mulf %201, %208 : vector<17x48xf32>
    %cst_95 = arith.constant -0.284496725 : f32
    %210 = vector.broadcast %cst_95 : f32 to vector<17x48xf32>
    %211 = arith.addf %210, %209 : vector<17x48xf32>
    %212 = arith.mulf %201, %211 : vector<17x48xf32>
    %cst_96 = arith.constant 0.254829586 : f32
    %213 = vector.broadcast %cst_96 : f32 to vector<17x48xf32>
    %214 = arith.addf %213, %212 : vector<17x48xf32>
    %215 = arith.mulf %201, %214 : vector<17x48xf32>
    %cst_97 = arith.constant 0.000000e+00 : f32
    %216 = vector.broadcast %cst_97 : f32 to vector<17x48xf32>
    %217 = arith.subf %216, %195 : vector<17x48xf32>
    %218 = arith.mulf %217, %195 : vector<17x48xf32>
    %219 = math.exp %218 : vector<17x48xf32>
    %220 = arith.mulf %215, %219 : vector<17x48xf32>
    %cst_98 = arith.constant 1.000000e+00 : f32
    %221 = vector.broadcast %cst_98 : f32 to vector<17x48xf32>
    %222 = arith.subf %221, %220 : vector<17x48xf32>
    %cst_99 = arith.constant 0.000000e+00 : f32
    %223 = vector.broadcast %cst_99 : f32 to vector<17x48xf32>
    %224 = arith.cmpf olt, %194, %223 : vector<17x48xf32>
    %cst_100 = arith.constant 0.000000e+00 : f32
    %225 = vector.broadcast %cst_100 : f32 to vector<17x48xf32>
    %226 = arith.subf %225, %222 : vector<17x48xf32>
    %227 = arith.select %224, %226, %222 : vector<17x48xi1>, vector<17x48xf32>
    %cst_101 = arith.constant 1.000000e+00 : f32
    %228 = vector.broadcast %cst_101 : f32 to vector<17x48xf32>
    %229 = arith.addf %228, %227 : vector<17x48xf32>
    %230 = arith.mulf %192, %229 : vector<17x48xf32>
    %231 = arith.addf %112, %230 : vector<17x48xf32>
    %c0_102 = arith.constant 0 : index
    %c0_103 = arith.constant 0 : index
    %c0_104 = arith.constant 0 : index
    %232 = vector.load %arg22[%c0_102, %c0_103, %c0_104] : memref<2x17x48xf32, #tpu.memory_space<vmem>>, vector<1x17x48xf32>
    %233 = vector.shape_cast %232 : vector<1x17x48xf32> to vector<17x48xf32>
    %234 = vector.shape_cast %231 : vector<17x48xf32> to vector<1x17x48xf32>
    tpu.vector_store %arg22[%c0_102, %c0_103, %c0_104], %234 {strides = array<i32>} : memref<2x17x48xf32, #tpu.memory_space<vmem>>, vector<1x17x48xf32>,
    %235 = vector.extract_strided_slice %231 {offsets = [0, 0], sizes = [1, 48], strides = [1, 1]} : vector<17x48xf32> to vector<1x48xf32>
    %c1 = arith.constant 1 : index
    %c0_105 = arith.constant 0 : index
    %c0_106 = arith.constant 0 : index
    %236 = vector.load %arg22[%c1, %c0_105, %c0_106] : memref<2x17x48xf32, #tpu.memory_space<vmem>>, vector<1x17x48xf32>
    %237 = vector.shape_cast %236 : vector<1x17x48xf32> to vector<17x48xf32>
    %c0_107 = arith.constant 0 : index
    %c0_108 = arith.constant 0 : index
    %c0_109 = arith.constant 0 : index
    %238 = vector.load %arg5[%c0_107, %c0_108, %c0_109] : memref<1x1x48xf32, #tpu.memory_space<vmem>>, vector<1x1x48xf32>
    %239 = vector.shape_cast %238 : vector<1x1x48xf32> to vector<1x48xf32>
    %c0_110 = arith.constant 0 : index
    %c0_111 = arith.constant 0 : index
    %c0_112 = arith.constant 0 : index
    %240 = vector.load %arg6[%c0_110, %c0_111, %c0_112] : memref<1x1x48xf32, #tpu.memory_space<vmem>>, vector<1x1x48xf32>
    %241 = vector.shape_cast %240 : vector<1x1x48xf32> to vector<1x48xf32>
    %cst_113 = arith.constant dense<0.000000e+00> : vector<17xf32>
    %242 = vector.multi_reduction <add>, %237, %cst_113 [1] : vector<17x48xf32> to vector<17xf32>
    %243 = vector.shape_cast %242 : vector<17xf32> to vector<17x1xf32>
    %cst_114 = arith.constant 4.800000e+01 : f32
    %244 = vector.broadcast %cst_114 : f32 to vector<17x1xf32>
    %245 = arith.divf %243, %244 : vector<17x1xf32>
    %246 = vector.broadcast %245 : vector<17x1xf32> to vector<17x48xf32>
    %247 = arith.subf %237, %246 : vector<17x48xf32>
    %248 = arith.mulf %247, %247 : vector<17x48xf32>
    %cst_115 = arith.constant dense<0.000000e+00> : vector<17xf32>
    %249 = vector.multi_reduction <add>, %248, %cst_115 [1] : vector<17x48xf32> to vector<17xf32>
    %250 = vector.shape_cast %249 : vector<17xf32> to vector<17x1xf32>
    %cst_116 = arith.constant 4.800000e+01 : f32
    %251 = vector.broadcast %cst_116 : f32 to vector<17x1xf32>
    %252 = arith.divf %250, %251 : vector<17x1xf32>
    %cst_117 = arith.constant 9.99999974E-6 : f32
    %253 = vector.broadcast %cst_117 : f32 to vector<17x1xf32>
    %254 = arith.addf %252, %253 : vector<17x1xf32>
    %255 = math.rsqrt %254 : vector<17x1xf32>
    %256 = vector.broadcast %255 : vector<17x1xf32> to vector<17x48xf32>
    %257 = arith.mulf %247, %256 : vector<17x48xf32>
    %258 = vector.broadcast %239 : vector<1x48xf32> to vector<17x48xf32>
    %259 = arith.mulf %257, %258 : vector<17x48xf32>
    %260 = vector.broadcast %241 : vector<1x48xf32> to vector<17x48xf32>
    %261 = arith.addf %259, %260 : vector<17x48xf32>
    %c0_118 = arith.constant 0 : index
    %c0_119 = arith.constant 0 : index
    %c0_120 = arith.constant 0 : index
    %262 = vector.load %arg7[%c0_118, %c0_119, %c0_120] : memref<1x48x192xf32, #tpu.memory_space<vmem>>, vector<1x48x192xf32>
    %263 = vector.shape_cast %262 : vector<1x48x192xf32> to vector<48x192xf32>
    %cst_121 = arith.constant dense<0.000000e+00> : vector<17x192xf32>
    %264 = tpu.matmul %261, %263, %cst_121 {dimension_numbers = #tpu.dot_dimension_numbers<[1], [0], [0], [1], [0, 0, 1, 1], [], []>} : vector<17x48xf32>, vector<48x192xf32>, vector<17x192xf32> -> vector<17x192xf32>
    %c0_122 = arith.constant 0 : index
    %c0_123 = arith.constant 0 : index
    %c0_124 = arith.constant 0 : index
    %265 = vector.load %arg8[%c0_122, %c0_123, %c0_124] : memref<1x1x192xf32, #tpu.memory_space<vmem>>, vector<1x1x192xf32>
    %266 = vector.shape_cast %265 : vector<1x1x192xf32> to vector<1x192xf32>
    %267 = vector.broadcast %266 : vector<1x192xf32> to vector<17x192xf32>
    %268 = arith.addf %264, %267 : vector<17x192xf32>
    %269 = vector.extract_strided_slice %268 {offsets = [0, 0], sizes = [17, 16], strides = [1, 1]} : vector<17x192xf32> to vector<17x16xf32>
    %cst_125 = arith.constant 0.144337565 : f32
    %270 = vector.broadcast %cst_125 : f32 to vector<17x16xf32>
    %271 = arith.mulf %269, %270 : vector<17x16xf32>
    %272 = vector.extract_strided_slice %268 {offsets = [0, 64], sizes = [17, 16], strides = [1, 1]} : vector<17x192xf32> to vector<17x16xf32>
    %273 = vector.extract_strided_slice %268 {offsets = [0, 128], sizes = [17, 16], strides = [1, 1]} : vector<17x192xf32> to vector<17x16xf32>
    %cst_126 = arith.constant dense<0.000000e+00> : vector<17x17xf32>
    %274 = tpu.matmul %271, %272, %cst_126 {dimension_numbers = #tpu.dot_dimension_numbers<[1], [1], [0], [0], [0, 0, 1, 0], [], []>} : vector<17x16xf32>, vector<17x16xf32>, vector<17x17xf32> -> vector<17x17xf32>
    %cst_127 = arith.constant dense<0xFF800000> : vector<17xf32>
    %275 = vector.multi_reduction <maximumf>, %274, %cst_127 [1] : vector<17x17xf32> to vector<17xf32>
    %276 = vector.shape_cast %275 : vector<17xf32> to vector<17x1xf32>
    %277 = vector.broadcast %276 : vector<17x1xf32> to vector<17x17xf32>
    %278 = arith.subf %274, %277 : vector<17x17xf32>
    %279 = math.exp %278 : vector<17x17xf32>
    %cst_128 = arith.constant dense<0.000000e+00> : vector<17xf32>
    %280 = vector.multi_reduction <add>, %279, %cst_128 [1] : vector<17x17xf32> to vector<17xf32>
    %281 = vector.shape_cast %280 : vector<17xf32> to vector<17x1xf32>
    %282 = tpu.reciprocal %281 {approx = true} : vector<17x1xf32> -> vector<17x1xf32>
    %283 = vector.broadcast %282 : vector<17x1xf32> to vector<17x17xf32>
    %284 = arith.mulf %279, %283 : vector<17x17xf32>
    %cst_129 = arith.constant dense<0.000000e+00> : vector<17x16xf32>
    %285 = tpu.matmul %284, %273, %cst_129 {dimension_numbers = #tpu.dot_dimension_numbers<[1], [0], [0], [1], [0, 0, 1, 1], [], []>} : vector<17x17xf32>, vector<17x16xf32>, vector<17x16xf32> -> vector<17x16xf32>
    %286 = vector.extract_strided_slice %268 {offsets = [0, 16], sizes = [17, 16], strides = [1, 1]} : vector<17x192xf32> to vector<17x16xf32>
    %cst_130 = arith.constant 0.144337565 : f32
    %287 = vector.broadcast %cst_130 : f32 to vector<17x16xf32>
    %288 = arith.mulf %286, %287 : vector<17x16xf32>
    %289 = vector.extract_strided_slice %268 {offsets = [0, 80], sizes = [17, 16], strides = [1, 1]} : vector<17x192xf32> to vector<17x16xf32>
    %290 = vector.extract_strided_slice %268 {offsets = [0, 144], sizes = [17, 16], strides = [1, 1]} : vector<17x192xf32> to vector<17x16xf32>
    %cst_131 = arith.constant dense<0.000000e+00> : vector<17x17xf32>
    %291 = tpu.matmul %288, %289, %cst_131 {dimension_numbers = #tpu.dot_dimension_numbers<[1], [1], [0], [0], [0, 0, 1, 0], [], []>} : vector<17x16xf32>, vector<17x16xf32>, vector<17x17xf32> -> vector<17x17xf32>
    %cst_132 = arith.constant dense<0xFF800000> : vector<17xf32>
    %292 = vector.multi_reduction <maximumf>, %291, %cst_132 [1] : vector<17x17xf32> to vector<17xf32>
    %293 = vector.shape_cast %292 : vector<17xf32> to vector<17x1xf32>
    %294 = vector.broadcast %293 : vector<17x1xf32> to vector<17x17xf32>
    %295 = arith.subf %291, %294 : vector<17x17xf32>
    %296 = math.exp %295 : vector<17x17xf32>
    %cst_133 = arith.constant dense<0.000000e+00> : vector<17xf32>
    %297 = vector.multi_reduction <add>, %296, %cst_133 [1] : vector<17x17xf32> to vector<17xf32>
    %298 = vector.shape_cast %297 : vector<17xf32> to vector<17x1xf32>
    %299 = tpu.reciprocal %298 {approx = true} : vector<17x1xf32> -> vector<17x1xf32>
    %300 = vector.broadcast %299 : vector<17x1xf32> to vector<17x17xf32>
    %301 = arith.mulf %296, %300 : vector<17x17xf32>
    %cst_134 = arith.constant dense<0.000000e+00> : vector<17x16xf32>
    %302 = tpu.matmul %301, %290, %cst_134 {dimension_numbers = #tpu.dot_dimension_numbers<[1], [0], [0], [1], [0, 0, 1, 1], [], []>} : vector<17x17xf32>, vector<17x16xf32>, vector<17x16xf32> -> vector<17x16xf32>
    %303 = vector.extract_strided_slice %268 {offsets = [0, 32], sizes = [17, 16], strides = [1, 1]} : vector<17x192xf32> to vector<17x16xf32>
    %cst_135 = arith.constant 0.144337565 : f32
    %304 = vector.broadcast %cst_135 : f32 to vector<17x16xf32>
    %305 = arith.mulf %303, %304 : vector<17x16xf32>
    %306 = vector.extract_strided_slice %268 {offsets = [0, 96], sizes = [17, 16], strides = [1, 1]} : vector<17x192xf32> to vector<17x16xf32>
    %307 = vector.extract_strided_slice %268 {offsets = [0, 160], sizes = [17, 16], strides = [1, 1]} : vector<17x192xf32> to vector<17x16xf32>
    %cst_136 = arith.constant dense<0.000000e+00> : vector<17x17xf32>
    %308 = tpu.matmul %305, %306, %cst_136 {dimension_numbers = #tpu.dot_dimension_numbers<[1], [1], [0], [0], [0, 0, 1, 0], [], []>} : vector<17x16xf32>, vector<17x16xf32>, vector<17x17xf32> -> vector<17x17xf32>
    %cst_137 = arith.constant dense<0xFF800000> : vector<17xf32>
    %309 = vector.multi_reduction <maximumf>, %308, %cst_137 [1] : vector<17x17xf32> to vector<17xf32>
    %310 = vector.shape_cast %309 : vector<17xf32> to vector<17x1xf32>
    %311 = vector.broadcast %310 : vector<17x1xf32> to vector<17x17xf32>
    %312 = arith.subf %308, %311 : vector<17x17xf32>
    %313 = math.exp %312 : vector<17x17xf32>
    %cst_138 = arith.constant dense<0.000000e+00> : vector<17xf32>
    %314 = vector.multi_reduction <add>, %313, %cst_138 [1] : vector<17x17xf32> to vector<17xf32>
    %315 = vector.shape_cast %314 : vector<17xf32> to vector<17x1xf32>
    %316 = tpu.reciprocal %315 {approx = true} : vector<17x1xf32> -> vector<17x1xf32>
    %317 = vector.broadcast %316 : vector<17x1xf32> to vector<17x17xf32>
    %318 = arith.mulf %313, %317 : vector<17x17xf32>
    %cst_139 = arith.constant dense<0.000000e+00> : vector<17x16xf32>
    %319 = tpu.matmul %318, %307, %cst_139 {dimension_numbers = #tpu.dot_dimension_numbers<[1], [0], [0], [1], [0, 0, 1, 1], [], []>} : vector<17x17xf32>, vector<17x16xf32>, vector<17x16xf32> -> vector<17x16xf32>
    %320 = vector.extract_strided_slice %268 {offsets = [0, 48], sizes = [17, 16], strides = [1, 1]} : vector<17x192xf32> to vector<17x16xf32>
    %cst_140 = arith.constant 0.144337565 : f32
    %321 = vector.broadcast %cst_140 : f32 to vector<17x16xf32>
    %322 = arith.mulf %320, %321 : vector<17x16xf32>
    %323 = vector.extract_strided_slice %268 {offsets = [0, 112], sizes = [17, 16], strides = [1, 1]} : vector<17x192xf32> to vector<17x16xf32>
    %324 = vector.extract_strided_slice %268 {offsets = [0, 176], sizes = [17, 16], strides = [1, 1]} : vector<17x192xf32> to vector<17x16xf32>
    %cst_141 = arith.constant dense<0.000000e+00> : vector<17x17xf32>
    %325 = tpu.matmul %322, %323, %cst_141 {dimension_numbers = #tpu.dot_dimension_numbers<[1], [1], [0], [0], [0, 0, 1, 0], [], []>} : vector<17x16xf32>, vector<17x16xf32>, vector<17x17xf32> -> vector<17x17xf32>
    %cst_142 = arith.constant dense<0xFF800000> : vector<17xf32>
    %326 = vector.multi_reduction <maximumf>, %325, %cst_142 [1] : vector<17x17xf32> to vector<17xf32>
    %327 = vector.shape_cast %326 : vector<17xf32> to vector<17x1xf32>
    %328 = vector.broadcast %327 : vector<17x1xf32> to vector<17x17xf32>
    %329 = arith.subf %325, %328 : vector<17x17xf32>
    %330 = math.exp %329 : vector<17x17xf32>
    %cst_143 = arith.constant dense<0.000000e+00> : vector<17xf32>
    %331 = vector.multi_reduction <add>, %330, %cst_143 [1] : vector<17x17xf32> to vector<17xf32>
    %332 = vector.shape_cast %331 : vector<17xf32> to vector<17x1xf32>
    %333 = tpu.reciprocal %332 {approx = true} : vector<17x1xf32> -> vector<17x1xf32>
    %334 = vector.broadcast %333 : vector<17x1xf32> to vector<17x17xf32>
    %335 = arith.mulf %330, %334 : vector<17x17xf32>
    %cst_144 = arith.constant dense<0.000000e+00> : vector<17x16xf32>
    %336 = tpu.matmul %335, %324, %cst_144 {dimension_numbers = #tpu.dot_dimension_numbers<[1], [0], [0], [1], [0, 0, 1, 1], [], []>} : vector<17x17xf32>, vector<17x16xf32>, vector<17x16xf32> -> vector<17x16xf32>
    %337 = tpu.concatenate %285, %302, %319, %336 in 1 : vector<17x16xf32>, vector<17x16xf32>, vector<17x16xf32>, vector<17x16xf32> -> vector<17x64xf32>
    %c0_145 = arith.constant 0 : index
    %c0_146 = arith.constant 0 : index
    %c0_147 = arith.constant 0 : index
    %338 = vector.load %arg9[%c0_145, %c0_146, %c0_147] : memref<1x64x48xf32, #tpu.memory_space<vmem>>, vector<1x64x48xf32>
    %339 = vector.shape_cast %338 : vector<1x64x48xf32> to vector<64x48xf32>
    %cst_148 = arith.constant dense<0.000000e+00> : vector<17x48xf32>
    %340 = tpu.matmul %337, %339, %cst_148 {dimension_numbers = #tpu.dot_dimension_numbers<[1], [0], [0], [1], [0, 0, 1, 1], [], []>} : vector<17x64xf32>, vector<64x48xf32>, vector<17x48xf32> -> vector<17x48xf32>
    %341 = arith.addf %237, %340 : vector<17x48xf32>
    %c0_149 = arith.constant 0 : index
    %c0_150 = arith.constant 0 : index
    %c0_151 = arith.constant 0 : index
    %342 = vector.load %arg10[%c0_149, %c0_150, %c0_151] : memref<1x1x48xf32, #tpu.memory_space<vmem>>, vector<1x1x48xf32>
    %343 = vector.shape_cast %342 : vector<1x1x48xf32> to vector<1x48xf32>
    %344 = vector.broadcast %343 : vector<1x48xf32> to vector<17x48xf32>
    %345 = arith.addf %341, %344 : vector<17x48xf32>
    %c0_152 = arith.constant 0 : index
    %c0_153 = arith.constant 0 : index
    %c0_154 = arith.constant 0 : index
    %346 = vector.load %arg11[%c0_152, %c0_153, %c0_154] : memref<1x1x48xf32, #tpu.memory_space<vmem>>, vector<1x1x48xf32>
    %347 = vector.shape_cast %346 : vector<1x1x48xf32> to vector<1x48xf32>
    %c0_155 = arith.constant 0 : index
    %c0_156 = arith.constant 0 : index
    %c0_157 = arith.constant 0 : index
    %348 = vector.load %arg12[%c0_155, %c0_156, %c0_157] : memref<1x1x48xf32, #tpu.memory_space<vmem>>, vector<1x1x48xf32>
    %349 = vector.shape_cast %348 : vector<1x1x48xf32> to vector<1x48xf32>
    %cst_158 = arith.constant dense<0.000000e+00> : vector<17xf32>
    %350 = vector.multi_reduction <add>, %345, %cst_158 [1] : vector<17x48xf32> to vector<17xf32>
    %351 = vector.shape_cast %350 : vector<17xf32> to vector<17x1xf32>
    %cst_159 = arith.constant 4.800000e+01 : f32
    %352 = vector.broadcast %cst_159 : f32 to vector<17x1xf32>
    %353 = arith.divf %351, %352 : vector<17x1xf32>
    %354 = vector.broadcast %353 : vector<17x1xf32> to vector<17x48xf32>
    %355 = arith.subf %345, %354 : vector<17x48xf32>
    %356 = arith.mulf %355, %355 : vector<17x48xf32>
    %cst_160 = arith.constant dense<0.000000e+00> : vector<17xf32>
    %357 = vector.multi_reduction <add>, %356, %cst_160 [1] : vector<17x48xf32> to vector<17xf32>
    %358 = vector.shape_cast %357 : vector<17xf32> to vector<17x1xf32>
    %cst_161 = arith.constant 4.800000e+01 : f32
    %359 = vector.broadcast %cst_161 : f32 to vector<17x1xf32>
    %360 = arith.divf %358, %359 : vector<17x1xf32>
    %cst_162 = arith.constant 9.99999974E-6 : f32
    %361 = vector.broadcast %cst_162 : f32 to vector<17x1xf32>
    %362 = arith.addf %360, %361 : vector<17x1xf32>
    %363 = math.rsqrt %362 : vector<17x1xf32>
    %364 = vector.broadcast %363 : vector<17x1xf32> to vector<17x48xf32>
    %365 = arith.mulf %355, %364 : vector<17x48xf32>
    %366 = vector.broadcast %347 : vector<1x48xf32> to vector<17x48xf32>
    %367 = arith.mulf %365, %366 : vector<17x48xf32>
    %368 = vector.broadcast %349 : vector<1x48xf32> to vector<17x48xf32>
    %369 = arith.addf %367, %368 : vector<17x48xf32>
    %c0_163 = arith.constant 0 : index
    %c0_164 = arith.constant 0 : index
    %c0_165 = arith.constant 0 : index
    %370 = vector.load %arg13[%c0_163, %c0_164, %c0_165] : memref<1x48x64xf32, #tpu.memory_space<vmem>>, vector<1x48x64xf32>
    %371 = vector.shape_cast %370 : vector<1x48x64xf32> to vector<48x64xf32>
    %cst_166 = arith.constant dense<0.000000e+00> : vector<17x64xf32>
    %372 = tpu.matmul %369, %371, %cst_166 {dimension_numbers = #tpu.dot_dimension_numbers<[1], [0], [0], [1], [0, 0, 1, 1], [], []>} : vector<17x48xf32>, vector<48x64xf32>, vector<17x64xf32> -> vector<17x64xf32>
    %c0_167 = arith.constant 0 : index
    %c0_168 = arith.constant 0 : index
    %c0_169 = arith.constant 0 : index
    %373 = vector.load %arg14[%c0_167, %c0_168, %c0_169] : memref<1x1x64xf32, #tpu.memory_space<vmem>>, vector<1x1x64xf32>
    %374 = vector.shape_cast %373 : vector<1x1x64xf32> to vector<1x64xf32>
    %375 = vector.broadcast %374 : vector<1x64xf32> to vector<17x64xf32>
    %376 = arith.addf %372, %375 : vector<17x64xf32>
    %cst_170 = arith.constant 5.000000e-01 : f32
    %377 = vector.broadcast %cst_170 : f32 to vector<17x64xf32>
    %378 = arith.mulf %377, %376 : vector<17x64xf32>
    %cst_171 = arith.constant 0.707106769 : f32
    %379 = vector.broadcast %cst_171 : f32 to vector<17x64xf32>
    %380 = arith.mulf %376, %379 : vector<17x64xf32>
    %381 = math.absf %380 : vector<17x64xf32>
    %cst_172 = arith.constant 0.327591091 : f32
    %382 = vector.broadcast %cst_172 : f32 to vector<17x64xf32>
    %383 = arith.mulf %382, %381 : vector<17x64xf32>
    %cst_173 = arith.constant 1.000000e+00 : f32
    %384 = vector.broadcast %cst_173 : f32 to vector<17x64xf32>
    %385 = arith.addf %384, %383 : vector<17x64xf32>
    %cst_174 = arith.constant 1.000000e+00 : f32
    %386 = vector.broadcast %cst_174 : f32 to vector<17x64xf32>
    %387 = arith.divf %386, %385 : vector<17x64xf32>
    %cst_175 = arith.constant 1.06140542 : f32
    %388 = vector.broadcast %cst_175 : f32 to vector<17x64xf32>
    %389 = arith.mulf %387, %388 : vector<17x64xf32>
    %cst_176 = arith.constant -1.45315206 : f32
    %390 = vector.broadcast %cst_176 : f32 to vector<17x64xf32>
    %391 = arith.addf %390, %389 : vector<17x64xf32>
    %392 = arith.mulf %387, %391 : vector<17x64xf32>
    %cst_177 = arith.constant 1.42141378 : f32
    %393 = vector.broadcast %cst_177 : f32 to vector<17x64xf32>
    %394 = arith.addf %393, %392 : vector<17x64xf32>
    %395 = arith.mulf %387, %394 : vector<17x64xf32>
    %cst_178 = arith.constant -0.284496725 : f32
    %396 = vector.broadcast %cst_178 : f32 to vector<17x64xf32>
    %397 = arith.addf %396, %395 : vector<17x64xf32>
    %398 = arith.mulf %387, %397 : vector<17x64xf32>
    %cst_179 = arith.constant 0.254829586 : f32
    %399 = vector.broadcast %cst_179 : f32 to vector<17x64xf32>
    %400 = arith.addf %399, %398 : vector<17x64xf32>
    %401 = arith.mulf %387, %400 : vector<17x64xf32>
    %cst_180 = arith.constant 0.000000e+00 : f32
    %402 = vector.broadcast %cst_180 : f32 to vector<17x64xf32>
    %403 = arith.subf %402, %381 : vector<17x64xf32>
    %404 = arith.mulf %403, %381 : vector<17x64xf32>
    %405 = math.exp %404 : vector<17x64xf32>
    %406 = arith.mulf %401, %405 : vector<17x64xf32>
    %cst_181 = arith.constant 1.000000e+00 : f32
    %407 = vector.broadcast %cst_181 : f32 to vector<17x64xf32>
    %408 = arith.subf %407, %406 : vector<17x64xf32>
    %cst_182 = arith.constant 0.000000e+00 : f32
    %409 = vector.broadcast %cst_182 : f32 to vector<17x64xf32>
    %410 = arith.cmpf olt, %380, %409 : vector<17x64xf32>
    %cst_183 = arith.constant 0.000000e+00 : f32
    %411 = vector.broadcast %cst_183 : f32 to vector<17x64xf32>
    %412 = arith.subf %411, %408 : vector<17x64xf32>
    %413 = arith.select %410, %412, %408 : vector<17x64xi1>, vector<17x64xf32>
    %cst_184 = arith.constant 1.000000e+00 : f32
    %414 = vector.broadcast %cst_184 : f32 to vector<17x64xf32>
    %415 = arith.addf %414, %413 : vector<17x64xf32>
    %416 = arith.mulf %378, %415 : vector<17x64xf32>
    %c0_185 = arith.constant 0 : index
    %c0_186 = arith.constant 0 : index
    %c0_187 = arith.constant 0 : index
    %417 = vector.load %arg15[%c0_185, %c0_186, %c0_187] : memref<1x64x48xf32, #tpu.memory_space<vmem>>, vector<1x64x48xf32>
    %418 = vector.shape_cast %417 : vector<1x64x48xf32> to vector<64x48xf32>
    %cst_188 = arith.constant dense<0.000000e+00> : vector<17x48xf32>
    %419 = tpu.matmul %416, %418, %cst_188 {dimension_numbers = #tpu.dot_dimension_numbers<[1], [0], [0], [1], [0, 0, 1, 1], [], []>} : vector<17x64xf32>, vector<64x48xf32>, vector<17x48xf32> -> vector<17x48xf32>
    %c0_189 = arith.constant 0 : index
    %c0_190 = arith.constant 0 : index
    %c0_191 = arith.constant 0 : index
    %420 = vector.load %arg16[%c0_189, %c0_190, %c0_191] : memref<1x1x48xf32, #tpu.memory_space<vmem>>, vector<1x1x48xf32>
    %421 = vector.shape_cast %420 : vector<1x1x48xf32> to vector<1x48xf32>
    %422 = vector.broadcast %421 : vector<1x48xf32> to vector<17x48xf32>
    %423 = arith.addf %419, %422 : vector<17x48xf32>
    %cst_192 = arith.constant 5.000000e-01 : f32
    %424 = vector.broadcast %cst_192 : f32 to vector<17x48xf32>
    %425 = arith.mulf %424, %423 : vector<17x48xf32>
    %cst_193 = arith.constant 0.707106769 : f32
    %426 = vector.broadcast %cst_193 : f32 to vector<17x48xf32>
    %427 = arith.mulf %423, %426 : vector<17x48xf32>
    %428 = math.absf %427 : vector<17x48xf32>
    %cst_194 = arith.constant 0.327591091 : f32
    %429 = vector.broadcast %cst_194 : f32 to vector<17x48xf32>
    %430 = arith.mulf %429, %428 : vector<17x48xf32>
    %cst_195 = arith.constant 1.000000e+00 : f32
    %431 = vector.broadcast %cst_195 : f32 to vector<17x48xf32>
    %432 = arith.addf %431, %430 : vector<17x48xf32>
    %cst_196 = arith.constant 1.000000e+00 : f32
    %433 = vector.broadcast %cst_196 : f32 to vector<17x48xf32>
    %434 = arith.divf %433, %432 : vector<17x48xf32>
    %cst_197 = arith.constant 1.06140542 : f32
    %435 = vector.broadcast %cst_197 : f32 to vector<17x48xf32>
    %436 = arith.mulf %434, %435 : vector<17x48xf32>
    %cst_198 = arith.constant -1.45315206 : f32
    %437 = vector.broadcast %cst_198 : f32 to vector<17x48xf32>
    %438 = arith.addf %437, %436 : vector<17x48xf32>
    %439 = arith.mulf %434, %438 : vector<17x48xf32>
    %cst_199 = arith.constant 1.42141378 : f32
    %440 = vector.broadcast %cst_199 : f32 to vector<17x48xf32>
    %441 = arith.addf %440, %439 : vector<17x48xf32>
    %442 = arith.mulf %434, %441 : vector<17x48xf32>
    %cst_200 = arith.constant -0.284496725 : f32
    %443 = vector.broadcast %cst_200 : f32 to vector<17x48xf32>
    %444 = arith.addf %443, %442 : vector<17x48xf32>
    %445 = arith.mulf %434, %444 : vector<17x48xf32>
    %cst_201 = arith.constant 0.254829586 : f32
    %446 = vector.broadcast %cst_201 : f32 to vector<17x48xf32>
    %447 = arith.addf %446, %445 : vector<17x48xf32>
    %448 = arith.mulf %434, %447 : vector<17x48xf32>
    %cst_202 = arith.constant 0.000000e+00 : f32
    %449 = vector.broadcast %cst_202 : f32 to vector<17x48xf32>
    %450 = arith.subf %449, %428 : vector<17x48xf32>
    %451 = arith.mulf %450, %428 : vector<17x48xf32>
    %452 = math.exp %451 : vector<17x48xf32>
    %453 = arith.mulf %448, %452 : vector<17x48xf32>
    %cst_203 = arith.constant 1.000000e+00 : f32
    %454 = vector.broadcast %cst_203 : f32 to vector<17x48xf32>
    %455 = arith.subf %454, %453 : vector<17x48xf32>
    %cst_204 = arith.constant 0.000000e+00 : f32
    %456 = vector.broadcast %cst_204 : f32 to vector<17x48xf32>
    %457 = arith.cmpf olt, %427, %456 : vector<17x48xf32>
    %cst_205 = arith.constant 0.000000e+00 : f32
    %458 = vector.broadcast %cst_205 : f32 to vector<17x48xf32>
    %459 = arith.subf %458, %455 : vector<17x48xf32>
    %460 = arith.select %457, %459, %455 : vector<17x48xi1>, vector<17x48xf32>
    %cst_206 = arith.constant 1.000000e+00 : f32
    %461 = vector.broadcast %cst_206 : f32 to vector<17x48xf32>
    %462 = arith.addf %461, %460 : vector<17x48xf32>
    %463 = arith.mulf %425, %462 : vector<17x48xf32>
    %464 = arith.addf %345, %463 : vector<17x48xf32>
    %c1_207 = arith.constant 1 : index
    %c0_208 = arith.constant 0 : index
    %c0_209 = arith.constant 0 : index
    %465 = vector.load %arg22[%c1_207, %c0_208, %c0_209] : memref<2x17x48xf32, #tpu.memory_space<vmem>>, vector<1x17x48xf32>
    %466 = vector.shape_cast %465 : vector<1x17x48xf32> to vector<17x48xf32>
    %467 = vector.shape_cast %464 : vector<17x48xf32> to vector<1x17x48xf32>
    tpu.vector_store %arg22[%c1_207, %c0_208, %c0_209], %467 {strides = array<i32>} : memref<2x17x48xf32, #tpu.memory_space<vmem>>, vector<1x17x48xf32>,
    %468 = vector.extract_strided_slice %464 {offsets = [0, 0], sizes = [1, 48], strides = [1, 1]} : vector<17x48xf32> to vector<1x48xf32>
    %c1_i32 = arith.constant 1 : i32
    %469 = arith.cmpi eq, %arg1, %c1_i32 : i32
    %470 = arith.extui %469 : i1 to i32
    %c0_i32_210 = arith.constant 0 : i32
    %471 = arith.cmpi ne, %470, %c0_i32_210 : i32
    scf.if %471 {
      %472 = tpu.concatenate %235, %468 in 0 : vector<1x48xf32>, vector<1x48xf32> -> vector<2x48xf32>
      %c0_211 = arith.constant 0 : index
      %c0_212 = arith.constant 0 : index
      %473 = vector.load %arg17[%c0_211, %c0_212] : memref<1x48xf32, #tpu.memory_space<vmem>>, vector<1x48xf32>
      %c0_213 = arith.constant 0 : index
      %c0_214 = arith.constant 0 : index
      %474 = vector.load %arg18[%c0_213, %c0_214] : memref<1x48xf32, #tpu.memory_space<vmem>>, vector<1x48xf32>
      %cst_215 = arith.constant dense<0.000000e+00> : vector<2xf32>
      %475 = vector.multi_reduction <add>, %472, %cst_215 [1] : vector<2x48xf32> to vector<2xf32>
      %476 = vector.shape_cast %475 : vector<2xf32> to vector<2x1xf32>
      %cst_216 = arith.constant 4.800000e+01 : f32
      %477 = vector.broadcast %cst_216 : f32 to vector<2x1xf32>
      %478 = arith.divf %476, %477 : vector<2x1xf32>
      %479 = vector.broadcast %478 : vector<2x1xf32> to vector<2x48xf32>
      %480 = arith.subf %472, %479 : vector<2x48xf32>
      %481 = arith.mulf %480, %480 : vector<2x48xf32>
      %cst_217 = arith.constant dense<0.000000e+00> : vector<2xf32>
      %482 = vector.multi_reduction <add>, %481, %cst_217 [1] : vector<2x48xf32> to vector<2xf32>
      %483 = vector.shape_cast %482 : vector<2xf32> to vector<2x1xf32>
      %cst_218 = arith.constant 4.800000e+01 : f32
      %484 = vector.broadcast %cst_218 : f32 to vector<2x1xf32>
      %485 = arith.divf %483, %484 : vector<2x1xf32>
      %cst_219 = arith.constant 9.99999974E-6 : f32
      %486 = vector.broadcast %cst_219 : f32 to vector<2x1xf32>
      %487 = arith.addf %485, %486 : vector<2x1xf32>
      %488 = math.rsqrt %487 : vector<2x1xf32>
      %489 = vector.broadcast %488 : vector<2x1xf32> to vector<2x48xf32>
      %490 = arith.mulf %480, %489 : vector<2x48xf32>
      %491 = vector.broadcast %473 : vector<1x48xf32> to vector<2x48xf32>
      %492 = arith.mulf %490, %491 : vector<2x48xf32>
      %493 = vector.broadcast %474 : vector<1x48xf32> to vector<2x48xf32>
      %494 = arith.addf %492, %493 : vector<2x48xf32>
      %c0_220 = arith.constant 0 : index
      %c0_221 = arith.constant 0 : index
      %495 = vector.load %arg19[%c0_220, %c0_221] : memref<48x128xf32, #tpu.memory_space<vmem>>, vector<48x128xf32>
      %cst_222 = arith.constant dense<0.000000e+00> : vector<2x128xf32>
      %496 = tpu.matmul %494, %495, %cst_222 {dimension_numbers = #tpu.dot_dimension_numbers<[1], [0], [0], [1], [0, 0, 1, 1], [], []>} : vector<2x48xf32>, vector<48x128xf32>, vector<2x128xf32> -> vector<2x128xf32>
      %c0_223 = arith.constant 0 : index
      %c0_224 = arith.constant 0 : index
      %497 = vector.load %arg20[%c0_223, %c0_224] : memref<1x128xf32, #tpu.memory_space<vmem>>, vector<1x128xf32>
      %498 = vector.broadcast %497 : vector<1x128xf32> to vector<2x128xf32>
      %499 = arith.addf %496, %498 : vector<2x128xf32>
      %c0_225 = arith.constant 0 : index
      %c0_226 = arith.constant 0 : index
      %500 = vector.load %arg21[%c0_225, %c0_226] : memref<2x128xf32, #tpu.memory_space<vmem>>, vector<2x128xf32>
      tpu.vector_store %arg21[%c0_225, %c0_226], %499 {strides = array<i32>} : memref<2x128xf32, #tpu.memory_space<vmem>>, vector<2x128xf32>,
    } else {
    }
    return
  }
  func.func @transform_0(%arg0: i32, %arg1: i32) -> (i32, i32, i32) {
    %c0_i32 = arith.constant 0 : i32
    %c0_i32_0 = arith.constant 0 : i32
    %c0_i32_1 = arith.constant 0 : i32
    return %arg0, %c0_i32, %c0_i32_0 : i32, i32, i32
  }
  func.func @transform_1(%arg0: i32, %arg1: i32) -> (i32, i32) {
    %c0_i32 = arith.constant 0 : i32
    %c0_i32_0 = arith.constant 0 : i32
    %c0_i32_1 = arith.constant 0 : i32
    return %c0_i32, %c0_i32_0 : i32, i32
  }
  func.func @transform_2(%arg0: i32, %arg1: i32) -> (i32, i32, i32) {
    %c0_i32 = arith.constant 0 : i32
    %c0_i32_0 = arith.constant 0 : i32
    %c0_i32_1 = arith.constant 0 : i32
    %c0_i32_2 = arith.constant 0 : i32
    return %c0_i32, %c0_i32_0, %c0_i32_1 : i32, i32, i32
  }
  func.func @transform_3(%arg0: i32, %arg1: i32) -> (i32, i32, i32) {
    %c0_i32 = arith.constant 0 : i32
    %c0_i32_0 = arith.constant 0 : i32
    %c0_i32_1 = arith.constant 0 : i32
    return %arg1, %c0_i32, %c0_i32_0 : i32, i32, i32
  }
  func.func @transform_4(%arg0: i32, %arg1: i32) -> (i32, i32, i32) {
    %c0_i32 = arith.constant 0 : i32
    %c0_i32_0 = arith.constant 0 : i32
    %c0_i32_1 = arith.constant 0 : i32
    return %arg1, %c0_i32, %c0_i32_0 : i32, i32, i32
  }
  func.func @transform_5(%arg0: i32, %arg1: i32) -> (i32, i32, i32) {
    %c0_i32 = arith.constant 0 : i32
    %c0_i32_0 = arith.constant 0 : i32
    %c0_i32_1 = arith.constant 0 : i32
    return %arg1, %c0_i32, %c0_i32_0 : i32, i32, i32
  }
  func.func @transform_6(%arg0: i32, %arg1: i32) -> (i32, i32, i32) {
    %c0_i32 = arith.constant 0 : i32
    %c0_i32_0 = arith.constant 0 : i32
    %c0_i32_1 = arith.constant 0 : i32
    return %arg1, %c0_i32, %c0_i32_0 : i32, i32, i32
  }
  func.func @transform_7(%arg0: i32, %arg1: i32) -> (i32, i32, i32) {
    %c0_i32 = arith.constant 0 : i32
    %c0_i32_0 = arith.constant 0 : i32
    %c0_i32_1 = arith.constant 0 : i32
    return %arg1, %c0_i32, %c0_i32_0 : i32, i32, i32
  }
  func.func @transform_8(%arg0: i32, %arg1: i32) -> (i32, i32, i32) {
    %c0_i32 = arith.constant 0 : i32
    %c0_i32_0 = arith.constant 0 : i32
    %c0_i32_1 = arith.constant 0 : i32
    return %arg1, %c0_i32, %c0_i32_0 : i32, i32, i32
  }
  func.func @transform_9(%arg0: i32, %arg1: i32) -> (i32, i32, i32) {
    %c0_i32 = arith.constant 0 : i32
    %c0_i32_0 = arith.constant 0 : i32
    %c0_i32_1 = arith.constant 0 : i32
    return %arg1, %c0_i32, %c0_i32_0 : i32, i32, i32
  }
  func.func @transform_10(%arg0: i32, %arg1: i32) -> (i32, i32, i32) {
    %c0_i32 = arith.constant 0 : i32
    %c0_i32_0 = arith.constant 0 : i32
    %c0_i32_1 = arith.constant 0 : i32
    return %arg1, %c0_i32, %c0_i32_0 : i32, i32, i32
  }
  func.func @transform_11(%arg0: i32, %arg1: i32) -> (i32, i32, i32) {
    %c0_i32 = arith.constant 0 : i32
    %c0_i32_0 = arith.constant 0 : i32
    %c0_i32_1 = arith.constant 0 : i32
    return %arg1, %c0_i32, %c0_i32_0 : i32, i32, i32
  }
  func.func @transform_12(%arg0: i32, %arg1: i32) -> (i32, i32, i32) {
    %c0_i32 = arith.constant 0 : i32
    %c0_i32_0 = arith.constant 0 : i32
    %c0_i32_1 = arith.constant 0 : i32
    return %arg1, %c0_i32, %c0_i32_0 : i32, i32, i32
  }
  func.func @transform_13(%arg0: i32, %arg1: i32) -> (i32, i32, i32) {
    %c0_i32 = arith.constant 0 : i32
    %c0_i32_0 = arith.constant 0 : i32
    %c0_i32_1 = arith.constant 0 : i32
    return %arg1, %c0_i32, %c0_i32_0 : i32, i32, i32
  }
  func.func @transform_14(%arg0: i32, %arg1: i32) -> (i32, i32, i32) {
    %c0_i32 = arith.constant 0 : i32
    %c0_i32_0 = arith.constant 0 : i32
    %c0_i32_1 = arith.constant 0 : i32
    return %arg1, %c0_i32, %c0_i32_0 : i32, i32, i32
  }
  func.func @transform_15(%arg0: i32, %arg1: i32) -> (i32, i32) {
    %c0_i32 = arith.constant 0 : i32
    %c0_i32_0 = arith.constant 0 : i32
    %c0_i32_1 = arith.constant 0 : i32
    return %c0_i32, %c0_i32_0 : i32, i32
  }
  func.func @transform_16(%arg0: i32, %arg1: i32) -> (i32, i32) {
    %c0_i32 = arith.constant 0 : i32
    %c0_i32_0 = arith.constant 0 : i32
    %c0_i32_1 = arith.constant 0 : i32
    return %c0_i32, %c0_i32_0 : i32, i32
  }
  func.func @transform_17(%arg0: i32, %arg1: i32) -> (i32, i32) {
    %c0_i32 = arith.constant 0 : i32
    %c0_i32_0 = arith.constant 0 : i32
    %c0_i32_1 = arith.constant 0 : i32
    return %c0_i32, %c0_i32_0 : i32, i32
  }
  func.func @transform_18(%arg0: i32, %arg1: i32) -> (i32, i32) {
    %c0_i32 = arith.constant 0 : i32
    %c0_i32_0 = arith.constant 0 : i32
    %c0_i32_1 = arith.constant 0 : i32
    return %c0_i32, %c0_i32_0 : i32, i32
  }
  func.func @transform_19(%arg0: i32, %arg1: i32) -> (i32, i32) {
    %c0_i32 = arith.constant 0 : i32
    %c0_i32_0 = arith.constant 0 : i32
    return %arg0, %c0_i32 : i32, i32
  }
}

</mosaic_0001>

<llo_original>
// kernel: vit_forward.1
$region0: #{vit_forward.1}
  #allocation0 [shape = 'u32[]', space=smem, size = 0x4, offset = 0x4, fixed_abs, tag = 'smem constant byte address 0x4 - core index']
  #allocation1 [shape = 'u32[144,128]{1,0:T(1,128)}', space=vmem, size = 0x12000, scoped, tag = 'internal scratch']
  #allocation2 [shape = 'f32[2,17,48]{2,1,0:T(8,128)}', space=vmem, size = 0x6000, scoped, tag = 'scratch operand']
  %s0 = inlined_call_operand.vmem [shape: f32[2,16,48], index: 0, kind: input, shape index: {}]
  %s1 = inlined_call_operand.vmem [shape: f32[48,48], index: 1, kind: input, shape index: {}]
  %s2 = inlined_call_operand.vmem [shape: f32[1,17,48], index: 2, kind: input, shape index: {}]
  %s3 = inlined_call_operand.vmem [shape: f32[2,1,48], index: 3, kind: input, shape index: {}]
  %s4 = inlined_call_operand.vmem [shape: f32[2,1,48], index: 4, kind: input, shape index: {}]
  %s5 = inlined_call_operand.vmem [shape: f32[2,48,192], index: 5, kind: input, shape index: {}]
  %s6 = inlined_call_operand.vmem [shape: f32[2,1,192], index: 6, kind: input, shape index: {}]
  %s7 = inlined_call_operand.vmem [shape: f32[2,64,48], index: 7, kind: input, shape index: {}]
  %s8 = inlined_call_operand.vmem [shape: f32[2,1,48], index: 8, kind: input, shape index: {}]
  %s9 = inlined_call_operand.vmem [shape: f32[2,1,48], index: 9, kind: input, shape index: {}]
  %s10 = inlined_call_operand.vmem [shape: f32[2,1,48], index: 10, kind: input, shape index: {}]
  %s11 = inlined_call_operand.vmem [shape: f32[2,48,64], index: 11, kind: input, shape index: {}]
  %s12 = inlined_call_operand.vmem [shape: f32[2,1,64], index: 12, kind: input, shape index: {}]
  %s13 = inlined_call_operand.vmem [shape: f32[2,64,48], index: 13, kind: input, shape index: {}]
  %s14 = inlined_call_operand.vmem [shape: f32[2,1,48], index: 14, kind: input, shape index: {}]
  %s15 = inlined_call_operand.vmem [shape: f32[1,48], index: 15, kind: input, shape index: {}]
  %s16 = inlined_call_operand.vmem [shape: f32[1,48], index: 16, kind: input, shape index: {}]
  %s17 = inlined_call_operand.vmem [shape: f32[48,128], index: 17, kind: input, shape index: {}]
  %s18 = inlined_call_operand.vmem [shape: f32[1,128], index: 18, kind: input, shape index: {}]
  %s19 = inlined_call_operand.hbm [shape: f32[2,128], index: 19, kind: output, shape index: {}]
  %s20 = sld [smem:[#allocation0]]
  $region117: #{vit_forward.1} parent=0
    _
  %s22 = ssub.s32 1, %s20
  %s23 = scalar_select 0, %s22, %s20
  $region1: #{vit_forward.1} parent=0
    #allocation3 [shape = 'u8[1024]{0}', space=vmem, size = 0x400, scoped, tag = 'output window, operand 0, single buffered']
    #allocation4 [shape = 's32[2]{0}', space=sflag, size = 0x8, scoped, tag = 'scoped memory for vit_forward.1']
    %24 = vsyncpa [#allocation4], 0
    loop: start=0, step=1, limit=4
    $region2: #{vit_forward.1} parent=1 // loop_pre_header
      _
    $region3: #{vit_forward.1} parent=1 // loop_header
      %s26 = sphi 0, %s30
      %p27 = scmp.ge.s32.totalorder %s26, 4
      %s33 = sphi 0, %s45
      %s34 = sphi 0, %s41
      %s35 = sphi 0, %s33
      %s36 = sphi 0, %s34
      %s37 = sphi 0, %s35
      %s38 = sphi 0, %s36
      %s48 = sphi 0, %s50
      %s51 = sphi 0, %s48
      %s52 = sphi 0, %s51
      %s68 = sphi 0, %s52
      %s72 = sphi 0, %s72
      %s74 = sphi 0, %s72
      %s75 = sphi 0, %s74
      %s89 = sphi 0, %s75
      %s93 = sphi 0, %s93
      %s95 = sphi 0, %s93
      %s96 = sphi 0, %s95
      %s110 = sphi 0, %s96
      %s116 = sphi 0, %s118
      %s119 = sphi 0, %s116
      %s120 = sphi 0, %s119
      %s136 = sphi 0, %s120
      %s142 = sphi 0, %s144
      %s145 = sphi 0, %s142
      %s146 = sphi 0, %s145
      %s162 = sphi 0, %s146
      %s168 = sphi 0, %s170
      %s171 = sphi 0, %s168
      %s172 = sphi 0, %s171
      %s188 = sphi 0, %s172
      %s194 = sphi 0, %s196
      %s197 = sphi 0, %s194
      %s198 = sphi 0, %s197
      %s214 = sphi 0, %s198
      %s220 = sphi 0, %s222
      %s223 = sphi 0, %s220
      %s224 = sphi 0, %s223
      %s240 = sphi 0, %s224
      %s246 = sphi 0, %s248
      %s249 = sphi 0, %s246
      %s250 = sphi 0, %s249
      %s266 = sphi 0, %s250
      %s272 = sphi 0, %s274
      %s275 = sphi 0, %s272
      %s276 = sphi 0, %s275
      %s292 = sphi 0, %s276
      %s298 = sphi 0, %s300
      %s301 = sphi 0, %s298
      %s302 = sphi 0, %s301
      %s318 = sphi 0, %s302
      %s324 = sphi 0, %s326
      %s327 = sphi 0, %s324
      %s328 = sphi 0, %s327
      %s344 = sphi 0, %s328
      %s350 = sphi 0, %s352
      %s353 = sphi 0, %s350
      %s354 = sphi 0, %s353
      %s370 = sphi 0, %s354
      %s376 = sphi 0, %s378
      %s379 = sphi 0, %s376
      %s380 = sphi 0, %s379
      %s396 = sphi 0, %s380
      %s402 = sphi 0, %s404
      %s405 = sphi 0, %s402
      %s406 = sphi 0, %s405
      %s422 = sphi 0, %s406
      %s426 = sphi 0, %s426
      %s428 = sphi 0, %s426
      %s429 = sphi 0, %s428
      %s443 = sphi 0, %s429
      %s447 = sphi 0, %s447
      %s449 = sphi 0, %s447
      %s450 = sphi 0, %s449
      %s464 = sphi 0, %s450
      %s468 = sphi 0, %s468
      %s470 = sphi 0, %s468
      %s471 = sphi 0, %s470
      %s485 = sphi 0, %s471
      %s489 = sphi 0, %s489
      %s491 = sphi 0, %s489
      %s492 = sphi 0, %s491
      %s506 = sphi 0, %s492
      %s512 = sphi 0, %s514
      %s515 = sphi 0, %s512
      %s516 = sphi 0, %s515
      %s532 = sphi 0, %s516
    $region4: #{vit_forward.1} parent=1 // loop_header_branch
      %29 = sbr.rel (%p27) target = $region8
    $region5: #{vit_forward.1} parent=1 // loop_body
      %s31 = ssub.s32 %s26, 1
      %s32 = ssub.s32 %s26, 2
      %s39 = sadd.s32 1, %s34
      %p40 = scmp.ge.s32.totalorder %s39, 2
      %s41 = scalar_select %p40, 0, %s39
      %s42 = sadd.s32 1, %s33
      %s43 = scalar_select %p40, %s42, %s33
      %p44 = scmp.ge.s32.totalorder %s43, 1
      %s45 = scalar_select %p44, 0, %s43
      %s46 = ssub.s32 %s33, %s45
      %p47 = scmp.eq.s32.totalorder %s46, 0
      %s49 = sadd.s32 %s48, 1
      %s50 = scalar_select %p47, %s48, %s49
      %p53 = pneg %p47
      %p54 = scmp.eq.s32.totalorder %s26, 1
      %p55 = por %p53, %p54
      %p56 = scmp.ne.s32.totalorder %s48, %s51
      %p57 = scmp.eq.s32.totalorder %s26, 0
      %p58 = por %p56, %p57
      %p59 = scmp.ne.s32.totalorder %s48, %s51
      %p60 = scmp.eq.s32.totalorder %s31, 1
      %p61 = por %p59, %p60
      %p62 = scmp.ne.s32.totalorder %s51, %s52
      %p63 = scmp.eq.s32.totalorder %s31, 0
      %p64 = por %p62, %p63
      %p65 = scmp.ne.s32.totalorder %s51, %s52
      %p66 = scmp.eq.s32.totalorder %s32, 1
      %p67 = por %p65, %p66
      %p69 = scmp.ne.s32.totalorder %s52, %s68
      %p70 = scmp.eq.s32.totalorder %s32, 0
      %p71 = por %p69, %p70
      %s73 = sadd.s32 %s72, 1
      %p76 = scmp.eq.s32.totalorder %s26, 1
      %p77 = scmp.ne.s32.totalorder %s72, %s74
      %p78 = scmp.eq.s32.totalorder %s26, 0
      %p79 = por %p77, %p78
      %p80 = scmp.ne.s32.totalorder %s72, %s74
      %p81 = scmp.eq.s32.totalorder %s31, 1
      %p82 = por %p80, %p81
      %p83 = scmp.ne.s32.totalorder %s74, %s75
      %p84 = scmp.eq.s32.totalorder %s31, 0
      %p85 = por %p83, %p84
      %p86 = scmp.ne.s32.totalorder %s74, %s75
      %p87 = scmp.eq.s32.totalorder %s32, 1
      %p88 = por %p86, %p87
      %p90 = scmp.ne.s32.totalorder %s75, %s89
      %p91 = scmp.eq.s32.totalorder %s32, 0
      %p92 = por %p90, %p91
      %s94 = sadd.s32 %s93, 1
      %p97 = scmp.eq.s32.totalorder %s26, 1
      %p98 = scmp.ne.s32.totalorder %s93, %s95
      %p99 = scmp.eq.s32.totalorder %s26, 0
      %p100 = por %p98, %p99
      %p101 = scmp.ne.s32.totalorder %s93, %s95
      %p102 = scmp.eq.s32.totalorder %s31, 1
      %p103 = por %p101, %p102
      %p104 = scmp.ne.s32.totalorder %s95, %s96
      %p105 = scmp.eq.s32.totalorder %s31, 0
      %p106 = por %p104, %p105
      %p107 = scmp.ne.s32.totalorder %s95, %s96
      %p108 = scmp.eq.s32.totalorder %s32, 1
      %p109 = por %p107, %p108
      %p111 = scmp.ne.s32.totalorder %s96, %s110
      %p112 = scmp.eq.s32.totalorder %s32, 0
      %p113 = por %p111, %p112
      %s114 = ssub.s32 %s34, %s41
      %p115 = scmp.eq.s32.totalorder %s114, 0
      %s117 = sadd.s32 %s116, 1
      %s118 = scalar_select %p115, %s116, %s117
      %p121 = pneg %p115
      %p122 = scmp.eq.s32.totalorder %s26, 1
      %p123 = por %p121, %p122
      %p124 = scmp.ne.s32.totalorder %s116, %s119
      %p125 = scmp.eq.s32.totalorder %s26, 0
      %p126 = por %p124, %p125
      %p127 = scmp.ne.s32.totalorder %s116, %s119
      %p128 = scmp.eq.s32.totalorder %s31, 1
      %p129 = por %p127, %p128
      %p130 = scmp.ne.s32.totalorder %s119, %s120
      %p131 = scmp.eq.s32.totalorder %s31, 0
      %p132 = por %p130, %p131
      %p133 = scmp.ne.s32.totalorder %s119, %s120
      %p134 = scmp.eq.s32.totalorder %s32, 1
      %p135 = por %p133, %p134
      %p137 = scmp.ne.s32.totalorder %s120, %s136
      %p138 = scmp.eq.s32.totalorder %s32, 0
      %p139 = por %p137, %p138
      %s140 = ssub.s32 %s34, %s41
      %p141 = scmp.eq.s32.totalorder %s140, 0
      %s143 = sadd.s32 %s142, 1
      %s144 = scalar_select %p141, %s142, %s143
      %p147 = pneg %p141
      %p148 = scmp.eq.s32.totalorder %s26, 1
      %p149 = por %p147, %p148
      %p150 = scmp.ne.s32.totalorder %s142, %s145
      %p151 = scmp.eq.s32.totalorder %s26, 0
      %p152 = por %p150, %p151
      %p153 = scmp.ne.s32.totalorder %s142, %s145
      %p154 = scmp.eq.s32.totalorder %s31, 1
      %p155 = por %p153, %p154
      %p156 = scmp.ne.s32.totalorder %s145, %s146
      %p157 = scmp.eq.s32.totalorder %s31, 0
      %p158 = por %p156, %p157
      %p159 = scmp.ne.s32.totalorder %s145, %s146
      %p160 = scmp.eq.s32.totalorder %s32, 1
      %p161 = por %p159, %p160
      %p163 = scmp.ne.s32.totalorder %s146, %s162
      %p164 = scmp.eq.s32.totalorder %s32, 0
      %p165 = por %p163, %p164
      %s166 = ssub.s32 %s34, %s41
      %p167 = scmp.eq.s32.totalorder %s166, 0
      %s169 = sadd.s32 %s168, 1
      %s170 = scalar_select %p167, %s168, %s169
      %p173 = pneg %p167
      %p174 = scmp.eq.s32.totalorder %s26, 1
      %p175 = por %p173, %p174
      %p176 = scmp.ne.s32.totalorder %s168, %s171
      %p177 = scmp.eq.s32.totalorder %s26, 0
      %p178 = por %p176, %p177
      %p179 = scmp.ne.s32.totalorder %s168, %s171
      %p180 = scmp.eq.s32.totalorder %s31, 1
      %p181 = por %p179, %p180
      %p182 = scmp.ne.s32.totalorder %s171, %s172
      %p183 = scmp.eq.s32.totalorder %s31, 0
      %p184 = por %p182, %p183
      %p185 = scmp.ne.s32.totalorder %s171, %s172
      %p186 = scmp.eq.s32.totalorder %s32, 1
      %p187 = por %p185, %p186
      %p189 = scmp.ne.s32.totalorder %s172, %s188
      %p190 = scmp.eq.s32.totalorder %s32, 0
      %p191 = por %p189, %p190
      %s192 = ssub.s32 %s34, %s41
      %p193 = scmp.eq.s32.totalorder %s192, 0
      %s195 = sadd.s32 %s194, 1
      %s196 = scalar_select %p193, %s194, %s195
      %p199 = pneg %p193
      %p200 = scmp.eq.s32.totalorder %s26, 1
      %p201 = por %p199, %p200
      %p202 = scmp.ne.s32.totalorder %s194, %s197
      %p203 = scmp.eq.s32.totalorder %s26, 0
      %p204 = por %p202, %p203
      %p205 = scmp.ne.s32.totalorder %s194, %s197
      %p206 = scmp.eq.s32.totalorder %s31, 1
      %p207 = por %p205, %p206
      %p208 = scmp.ne.s32.totalorder %s197, %s198
      %p209 = scmp.eq.s32.totalorder %s31, 0
      %p210 = por %p208, %p209
      %p211 = scmp.ne.s32.totalorder %s197, %s198
      %p212 = scmp.eq.s32.totalorder %s32, 1
      %p213 = por %p211, %p212
      %p215 = scmp.ne.s32.totalorder %s198, %s214
      %p216 = scmp.eq.s32.totalorder %s32, 0
      %p217 = por %p215, %p216
      %s218 = ssub.s32 %s34, %s41
      %p219 = scmp.eq.s32.totalorder %s218, 0
      %s221 = sadd.s32 %s220, 1
      %s222 = scalar_select %p219, %s220, %s221
      %p225 = pneg %p219
      %p226 = scmp.eq.s32.totalorder %s26, 1
      %p227 = por %p225, %p226
      %p228 = scmp.ne.s32.totalorder %s220, %s223
      %p229 = scmp.eq.s32.totalorder %s26, 0
      %p230 = por %p228, %p229
      %p231 = scmp.ne.s32.totalorder %s220, %s223
      %p232 = scmp.eq.s32.totalorder %s31, 1
      %p233 = por %p231, %p232
      %p234 = scmp.ne.s32.totalorder %s223, %s224
      %p235 = scmp.eq.s32.totalorder %s31, 0
      %p236 = por %p234, %p235
      %p237 = scmp.ne.s32.totalorder %s223, %s224
      %p238 = scmp.eq.s32.totalorder %s32, 1
      %p239 = por %p237, %p238
      %p241 = scmp.ne.s32.totalorder %s224, %s240
      %p242 = scmp.eq.s32.totalorder %s32, 0
      %p243 = por %p241, %p242
      %s244 = ssub.s32 %s34, %s41
      %p245 = scmp.eq.s32.totalorder %s244, 0
      %s247 = sadd.s32 %s246, 1
      %s248 = scalar_select %p245, %s246, %s247
      %p251 = pneg %p245
      %p252 = scmp.eq.s32.totalorder %s26, 1
      %p253 = por %p251, %p252
      %p254 = scmp.ne.s32.totalorder %s246, %s249
      %p255 = scmp.eq.s32.totalorder %s26, 0
      %p256 = por %p254, %p255
      %p257 = scmp.ne.s32.totalorder %s246, %s249
      %p258 = scmp.eq.s32.totalorder %s31, 1
      %p259 = por %p257, %p258
      %p260 = scmp.ne.s32.totalorder %s249, %s250
      %p261 = scmp.eq.s32.totalorder %s31, 0
      %p262 = por %p260, %p261
      %p263 = scmp.ne.s32.totalorder %s249, %s250
      %p264 = scmp.eq.s32.totalorder %s32, 1
      %p265 = por %p263, %p264
      %p267 = scmp.ne.s32.totalorder %s250, %s266
      %p268 = scmp.eq.s32.totalorder %s32, 0
      %p269 = por %p267, %p268
      %s270 = ssub.s32 %s34, %s41
      %p271 = scmp.eq.s32.totalorder %s270, 0
      %s273 = sadd.s32 %s272, 1
      %s274 = scalar_select %p271, %s272, %s273
      %p277 = pneg %p271
      %p278 = scmp.eq.s32.totalorder %s26, 1
      %p279 = por %p277, %p278
      %p280 = scmp.ne.s32.totalorder %s272, %s275
      %p281 = scmp.eq.s32.totalorder %s26, 0
      %p282 = por %p280, %p281
      %p283 = scmp.ne.s32.totalorder %s272, %s275
      %p284 = scmp.eq.s32.totalorder %s31, 1
      %p285 = por %p283, %p284
      %p286 = scmp.ne.s32.totalorder %s275, %s276
      %p287 = scmp.eq.s32.totalorder %s31, 0
      %p288 = por %p286, %p287
      %p289 = scmp.ne.s32.totalorder %s275, %s276
      %p290 = scmp.eq.s32.totalorder %s32, 1
      %p291 = por %p289, %p290
      %p293 = scmp.ne.s32.totalorder %s276, %s292
      %p294 = scmp.eq.s32.totalorder %s32, 0
      %p295 = por %p293, %p294
      %s296 = ssub.s32 %s34, %s41
      %p297 = scmp.eq.s32.totalorder %s296, 0
      %s299 = sadd.s32 %s298, 1
      %s300 = scalar_select %p297, %s298, %s299
      %p303 = pneg %p297
      %p304 = scmp.eq.s32.totalorder %s26, 1
      %p305 = por %p303, %p304
      %p306 = scmp.ne.s32.totalorder %s298, %s301
      %p307 = scmp.eq.s32.totalorder %s26, 0
      %p308 = por %p306, %p307
      %p309 = scmp.ne.s32.totalorder %s298, %s301
      %p310 = scmp.eq.s32.totalorder %s31, 1
      %p311 = por %p309, %p310
      %p312 = scmp.ne.s32.totalorder %s301, %s302
      %p313 = scmp.eq.s32.totalorder %s31, 0
      %p314 = por %p312, %p313
      %p315 = scmp.ne.s32.totalorder %s301, %s302
      %p316 = scmp.eq.s32.totalorder %s32, 1
      %p317 = por %p315, %p316
      %p319 = scmp.ne.s32.totalorder %s302, %s318
      %p320 = scmp.eq.s32.totalorder %s32, 0
      %p321 = por %p319, %p320
      %s322 = ssub.s32 %s34, %s41
      %p323 = scmp.eq.s32.totalorder %s322, 0
      %s325 = sadd.s32 %s324, 1
      %s326 = scalar_select %p323, %s324, %s325
      %p329 = pneg %p323
      %p330 = scmp.eq.s32.totalorder %s26, 1
      %p331 = por %p329, %p330
      %p332 = scmp.ne.s32.totalorder %s324, %s327
      %p333 = scmp.eq.s32.totalorder %s26, 0
      %p334 = por %p332, %p333
      %p335 = scmp.ne.s32.totalorder %s324, %s327
      %p336 = scmp.eq.s32.totalorder %s31, 1
      %p337 = por %p335, %p336
      %p338 = scmp.ne.s32.totalorder %s327, %s328
      %p339 = scmp.eq.s32.totalorder %s31, 0
      %p340 = por %p338, %p339
      %p341 = scmp.ne.s32.totalorder %s327, %s328
      %p342 = scmp.eq.s32.totalorder %s32, 1
      %p343 = por %p341, %p342
      %p345 = scmp.ne.s32.totalorder %s328, %s344
      %p346 = scmp.eq.s32.totalorder %s32, 0
      %p347 = por %p345, %p346
      %s348 = ssub.s32 %s34, %s41
      %p349 = scmp.eq.s32.totalorder %s348, 0
      %s351 = sadd.s32 %s350, 1
      %s352 = scalar_select %p349, %s350, %s351
      %p355 = pneg %p349
      %p356 = scmp.eq.s32.totalorder %s26, 1
      %p357 = por %p355, %p356
      %p358 = scmp.ne.s32.totalorder %s350, %s353
      %p359 = scmp.eq.s32.totalorder %s26, 0
      %p360 = por %p358, %p359
      %p361 = scmp.ne.s32.totalorder %s350, %s353
      %p362 = scmp.eq.s32.totalorder %s31, 1
      %p363 = por %p361, %p362
      %p364 = scmp.ne.s32.totalorder %s353, %s354
      %p365 = scmp.eq.s32.totalorder %s31, 0
      %p366 = por %p364, %p365
      %p367 = scmp.ne.s32.totalorder %s353, %s354
      %p368 = scmp.eq.s32.totalorder %s32, 1
      %p369 = por %p367, %p368
      %p371 = scmp.ne.s32.totalorder %s354, %s370
      %p372 = scmp.eq.s32.totalorder %s32, 0
      %p373 = por %p371, %p372
      %s374 = ssub.s32 %s34, %s41
      %p375 = scmp.eq.s32.totalorder %s374, 0
      %s377 = sadd.s32 %s376, 1
      %s378 = scalar_select %p375, %s376, %s377
      %p381 = pneg %p375
      %p382 = scmp.eq.s32.totalorder %s26, 1
      %p383 = por %p381, %p382
      %p384 = scmp.ne.s32.totalorder %s376, %s379
      %p385 = scmp.eq.s32.totalorder %s26, 0
      %p386 = por %p384, %p385
      %p387 = scmp.ne.s32.totalorder %s376, %s379
      %p388 = scmp.eq.s32.totalorder %s31, 1
      %p389 = por %p387, %p388
      %p390 = scmp.ne.s32.totalorder %s379, %s380
      %p391 = scmp.eq.s32.totalorder %s31, 0
      %p392 = por %p390, %p391
      %p393 = scmp.ne.s32.totalorder %s379, %s380
      %p394 = scmp.eq.s32.totalorder %s32, 1
      %p395 = por %p393, %p394
      %p397 = scmp.ne.s32.totalorder %s380, %s396
      %p398 = scmp.eq.s32.totalorder %s32, 0
      %p399 = por %p397, %p398
      %s400 = ssub.s32 %s34, %s41
      %p401 = scmp.eq.s32.totalorder %s400, 0
      %s403 = sadd.s32 %s402, 1
      %s404 = scalar_select %p401, %s402, %s403
      %p407 = pneg %p401
      %p408 = scmp.eq.s32.totalorder %s26, 1
      %p409 = por %p407, %p408
      %p410 = scmp.ne.s32.totalorder %s402, %s405
      %p411 = scmp.eq.s32.totalorder %s26, 0
      %p412 = por %p410, %p411
      %p413 = scmp.ne.s32.totalorder %s402, %s405
      %p414 = scmp.eq.s32.totalorder %s31, 1
      %p415 = por %p413, %p414
      %p416 = scmp.ne.s32.totalorder %s405, %s406
      %p417 = scmp.eq.s32.totalorder %s31, 0
      %p418 = por %p416, %p417
      %p419 = scmp.ne.s32.totalorder %s405, %s406
      %p420 = scmp.eq.s32.totalorder %s32, 1
      %p421 = por %p419, %p420
      %p423 = scmp.ne.s32.totalorder %s406, %s422
      %p424 = scmp.eq.s32.totalorder %s32, 0
      %p425 = por %p423, %p424
      %s427 = sadd.s32 %s426, 1
      %p430 = scmp.eq.s32.totalorder %s26, 1
      %p431 = scmp.ne.s32.totalorder %s426, %s428
      %p432 = scmp.eq.s32.totalorder %s26, 0
      %p433 = por %p431, %p432
      %p434 = scmp.ne.s32.totalorder %s426, %s428
      %p435 = scmp.eq.s32.totalorder %s31, 1
      %p436 = por %p434, %p435
      %p437 = scmp.ne.s32.totalorder %s428, %s429
      %p438 = scmp.eq.s32.totalorder %s31, 0
      %p439 = por %p437, %p438
      %p440 = scmp.ne.s32.totalorder %s428, %s429
      %p441 = scmp.eq.s32.totalorder %s32, 1
      %p442 = por %p440, %p441
      %p444 = scmp.ne.s32.totalorder %s429, %s443
      %p445 = scmp.eq.s32.totalorder %s32, 0
      %p446 = por %p444, %p445
      %s448 = sadd.s32 %s447, 1
      %p451 = scmp.eq.s32.totalorder %s26, 1
      %p452 = scmp.ne.s32.totalorder %s447, %s449
      %p453 = scmp.eq.s32.totalorder %s26, 0
      %p454 = por %p452, %p453
      %p455 = scmp.ne.s32.totalorder %s447, %s449
      %p456 = scmp.eq.s32.totalorder %s31, 1
      %p457 = por %p455, %p456
      %p458 = scmp.ne.s32.totalorder %s449, %s450
      %p459 = scmp.eq.s32.totalorder %s31, 0
      %p460 = por %p458, %p459
      %p461 = scmp.ne.s32.totalorder %s449, %s450
      %p462 = scmp.eq.s32.totalorder %s32, 1
      %p463 = por %p461, %p462
      %p465 = scmp.ne.s32.totalorder %s450, %s464
      %p466 = scmp.eq.s32.totalorder %s32, 0
      %p467 = por %p465, %p466
      %s469 = sadd.s32 %s468, 1
      %p472 = scmp.eq.s32.totalorder %s26, 1
      %p473 = scmp.ne.s32.totalorder %s468, %s470
      %p474 = scmp.eq.s32.totalorder %s26, 0
      %p475 = por %p473, %p474
      %p476 = scmp.ne.s32.totalorder %s468, %s470
      %p477 = scmp.eq.s32.totalorder %s31, 1
      %p478 = por %p476, %p477
      %p479 = scmp.ne.s32.totalorder %s470, %s471
      %p480 = scmp.eq.s32.totalorder %s31, 0
      %p481 = por %p479, %p480
      %p482 = scmp.ne.s32.totalorder %s470, %s471
      %p483 = scmp.eq.s32.totalorder %s32, 1
      %p484 = por %p482, %p483
      %p486 = scmp.ne.s32.totalorder %s471, %s485
      %p487 = scmp.eq.s32.totalorder %s32, 0
      %p488 = por %p486, %p487
      %s490 = sadd.s32 %s489, 1
      %p493 = scmp.eq.s32.totalorder %s26, 1
      %p494 = scmp.ne.s32.totalorder %s489, %s491
      %p495 = scmp.eq.s32.totalorder %s26, 0
      %p496 = por %p494, %p495
      %p497 = scmp.ne.s32.totalorder %s489, %s491
      %p498 = scmp.eq.s32.totalorder %s31, 1
      %p499 = por %p497, %p498
      %p500 = scmp.ne.s32.totalorder %s491, %s492
      %p501 = scmp.eq.s32.totalorder %s31, 0
      %p502 = por %p500, %p501
      %p503 = scmp.ne.s32.totalorder %s491, %s492
      %p504 = scmp.eq.s32.totalorder %s32, 1
      %p505 = por %p503, %p504
      %p507 = scmp.ne.s32.totalorder %s492, %s506
      %p508 = scmp.eq.s32.totalorder %s32, 0
      %p509 = por %p507, %p508
      %s510 = ssub.s32 %s33, %s45
      %p511 = scmp.eq.s32.totalorder %s510, 0
      %s513 = sadd.s32 %s512, 1
      %s514 = scalar_select %p511, %s512, %s513
      %p517 = pneg %p511
      %p518 = scmp.eq.s32.totalorder %s26, 1
      %p519 = por %p517, %p518
      %p520 = scmp.ne.s32.totalorder %s512, %s515
      %p521 = scmp.eq.s32.totalorder %s26, 0
      %p522 = por %p520, %p521
      %p523 = scmp.ne.s32.totalorder %s512, %s515
      %p524 = scmp.eq.s32.totalorder %s31, 1
      %p525 = por %p523, %p524
      %p526 = scmp.ne.s32.totalorder %s515, %s516
      %p527 = scmp.eq.s32.totalorder %s31, 0
      %p528 = por %p526, %p527
      %p529 = scmp.ne.s32.totalorder %s515, %s516
      %p530 = scmp.eq.s32.totalorder %s32, 1
      %p531 = por %p529, %p530
      %p533 = scmp.ne.s32.totalorder %s516, %s532
      %p534 = scmp.eq.s32.totalorder %s32, 0
      %p535 = por %p533, %p534
      %p536 = scmp.le.s32.totalorder 1, %s26
      %p537 = scmp.lt.s32.totalorder %s26, 3
      %p538 = pnand %p536, %p537
      %p539 = pneg %p538
      // Predicated region
      $region9: #{vit_forward.1} parent=5 // pred_check
        _
      $region10: #{vit_forward.1} parent=5 // pred_check_branch
        %541 = sbr.rel (%p538) target = $region12
      $region11: #{vit_forward.1} parent=5 // pred_region
        %s542 = ssub.s32 %s26, 1
        // Predicated region
        $region13: #{vit_forward.1} parent=11 // pred_check
          %p543 = pneg %p64
        $region14: #{vit_forward.1} parent=11 // pred_check_branch
          %545 = sbr.rel (%p543) target = $region16
        $region15: #{vit_forward.1} parent=11 // pred_region
          %s546 = smul.u32 2, %s35
          %p547 = scmp.lt.s32.totalorder %s546, 1
          %s548 = scalar_select %p547, %s546, 1
          %s549 = smul.addr %s548, 2
          %s550 = smul.addr %s549, 8
          %s551 = scalar_lea.vmem %s0, %s550
          %s552 = smul.u32 2, %s35
        $region16: #{vit_forward.1} parent=11 // pred_fallthru
          _
        // Predicated region
        $region17: #{vit_forward.1} parent=11 // pred_check
          %p553 = pneg %p85
        $region18: #{vit_forward.1} parent=11 // pred_check_branch
          %555 = sbr.rel (%p553) target = $region20
        $region19: #{vit_forward.1} parent=11 // pred_region
          _
        $region20: #{vit_forward.1} parent=11 // pred_fallthru
          _
        // Predicated region
        $region21: #{vit_forward.1} parent=11 // pred_check
          %p556 = pneg %p106
        $region22: #{vit_forward.1} parent=11 // pred_check_branch
          %558 = sbr.rel (%p556) target = $region24
        $region23: #{vit_forward.1} parent=11 // pred_region
          _
        $region24: #{vit_forward.1} parent=11 // pred_fallthru
          _
        // Predicated region
        $region25: #{vit_forward.1} parent=11 // pred_check
          %p559 = pneg %p439
        $region26: #{vit_forward.1} parent=11 // pred_check_branch
          %561 = sbr.rel (%p559) target = $region28
        $region27: #{vit_forward.1} parent=11 // pred_region
          _
        $region28: #{vit_forward.1} parent=11 // pred_fallthru
          _
        // Predicated region
        $region29: #{vit_forward.1} parent=11 // pred_check
          %p562 = pneg %p460
        $region30: #{vit_forward.1} parent=11 // pred_check_branch
          %564 = sbr.rel (%p562) target = $region32
        $region31: #{vit_forward.1} parent=11 // pred_region
          _
        $region32: #{vit_forward.1} parent=11 // pred_fallthru
          _
        // Predicated region
        $region33: #{vit_forward.1} parent=11 // pred_check
          %p565 = pneg %p481
        $region34: #{vit_forward.1} parent=11 // pred_check_branch
          %567 = sbr.rel (%p565) target = $region36
        $region35: #{vit_forward.1} parent=11 // pred_region
          _
        $region36: #{vit_forward.1} parent=11 // pred_fallthru
          _
        // Predicated region
        $region37: #{vit_forward.1} parent=11 // pred_check
          %p568 = pneg %p502
        $region38: #{vit_forward.1} parent=11 // pred_check_branch
          %570 = sbr.rel (%p568) target = $region40
        $region39: #{vit_forward.1} parent=11 // pred_region
          _
        $region40: #{vit_forward.1} parent=11 // pred_fallthru
          _
      $region12: #{vit_forward.1} parent=5 // pred_fallthru
        _
      %p571 = scmp.lt.s32.totalorder %s26, 2
      // Predicated region
      $region41: #{vit_forward.1} parent=5 // pred_check
        %p572 = pneg %p571
      $region42: #{vit_forward.1} parent=5 // pred_check_branch
        %574 = sbr.rel (%p572) target = $region44
      $region43: #{vit_forward.1} parent=5 // pred_region
        // Predicated region
        $region45: #{vit_forward.1} parent=43 // pred_check
          %p575 = pneg %p126
        $region46: #{vit_forward.1} parent=43 // pred_check_branch
          %577 = sbr.rel (%p575) target = $region48
        $region47: #{vit_forward.1} parent=43 // pred_region
          %p578 = scmp.lt.s32.totalorder %s34, 1
          %s579 = scalar_select %p578, %s34, 1
          %s580 = scalar_lea.vmem %s3, %s579
        $region48: #{vit_forward.1} parent=43 // pred_fallthru
          _
        // Predicated region
        $region49: #{vit_forward.1} parent=43 // pred_check
          %p581 = pneg %p152
        $region50: #{vit_forward.1} parent=43 // pred_check_branch
          %583 = sbr.rel (%p581) target = $region52
        $region51: #{vit_forward.1} parent=43 // pred_region
          %p584 = scmp.lt.s32.totalorder %s34, 1
          %s585 = scalar_select %p584, %s34, 1
          %s586 = scalar_lea.vmem %s4, %s585
        $region52: #{vit_forward.1} parent=43 // pred_fallthru
          _
        // Predicated region
        $region53: #{vit_forward.1} parent=43 // pred_check
          %p587 = pneg %p178
        $region54: #{vit_forward.1} parent=43 // pred_check_branch
          %589 = sbr.rel (%p587) target = $region56
        $region55: #{vit_forward.1} parent=43 // pred_region
          %p590 = scmp.lt.s32.totalorder %s34, 1
          %s591 = scalar_select %p590, %s34, 1
          %s592 = smul.addr %s591, 12
          %s593 = smul.addr %s592, 8
          %s594 = scalar_lea.vmem %s5, %s593
        $region56: #{vit_forward.1} parent=43 // pred_fallthru
          _
        // Predicated region
        $region57: #{vit_forward.1} parent=43 // pred_check
          %p595 = pneg %p204
        $region58: #{vit_forward.1} parent=43 // pred_check_branch
          %597 = sbr.rel (%p595) target = $region60
        $region59: #{vit_forward.1} parent=43 // pred_region
          %p598 = scmp.lt.s32.totalorder %s34, 1
          %s599 = scalar_select %p598, %s34, 1
          %s600 = smul.addr %s599, 2
          %s601 = scalar_lea.vmem %s6, %s600
        $region60: #{vit_forward.1} parent=43 // pred_fallthru
          _
        // Predicated region
        $region61: #{vit_forward.1} parent=43 // pred_check
          %p602 = pneg %p230
        $region62: #{vit_forward.1} parent=43 // pred_check_branch
          %604 = sbr.rel (%p602) target = $region64
        $region63: #{vit_forward.1} parent=43 // pred_region
          %p605 = scmp.lt.s32.totalorder %s34, 1
          %s606 = scalar_select %p605, %s34, 1
          %s607 = smul.addr %s606, 8
          %s608 = smul.addr %s607, 8
          %s609 = scalar_lea.vmem %s7, %s608
        $region64: #{vit_forward.1} parent=43 // pred_fallthru
          _
        // Predicated region
        $region65: #{vit_forward.1} parent=43 // pred_check
          %p610 = pneg %p256
        $region66: #{vit_forward.1} parent=43 // pred_check_branch
          %612 = sbr.rel (%p610) target = $region68
        $region67: #{vit_forward.1} parent=43 // pred_region
          %p613 = scmp.lt.s32.totalorder %s34, 1
          %s614 = scalar_select %p613, %s34, 1
          %s615 = scalar_lea.vmem %s8, %s614
        $region68: #{vit_forward.1} parent=43 // pred_fallthru
          _
        // Predicated region
        $region69: #{vit_forward.1} parent=43 // pred_check
          %p616 = pneg %p282
        $region70: #{vit_forward.1} parent=43 // pred_check_branch
          %618 = sbr.rel (%p616) target = $region72
        $region71: #{vit_forward.1} parent=43 // pred_region
          %p619 = scmp.lt.s32.totalorder %s34, 1
          %s620 = scalar_select %p619, %s34, 1
          %s621 = scalar_lea.vmem %s9, %s620
        $region72: #{vit_forward.1} parent=43 // pred_fallthru
          _
        // Predicated region
        $region73: #{vit_forward.1} parent=43 // pred_check
          %p622 = pneg %p308
        $region74: #{vit_forward.1} parent=43 // pred_check_branch
          %624 = sbr.rel (%p622) target = $region76
        $region75: #{vit_forward.1} parent=43 // pred_region
          %p625 = scmp.lt.s32.totalorder %s34, 1
          %s626 = scalar_select %p625, %s34, 1
          %s627 = scalar_lea.vmem %s10, %s626
        $region76: #{vit_forward.1} parent=43 // pred_fallthru
          _
        // Predicated region
        $region77: #{vit_forward.1} parent=43 // pred_check
          %p628 = pneg %p334
        $region78: #{vit_forward.1} parent=43 // pred_check_branch
          %630 = sbr.rel (%p628) target = $region80
        $region79: #{vit_forward.1} parent=43 // pred_region
          %p631 = scmp.lt.s32.totalorder %s34, 1
          %s632 = scalar_select %p631, %s34, 1
          %s633 = smul.addr %s632, 6
          %s634 = smul.addr %s633, 8
          %s635 = scalar_lea.vmem %s11, %s634
        $region80: #{vit_forward.1} parent=43 // pred_fallthru
          _
        // Predicated region
        $region81: #{vit_forward.1} parent=43 // pred_check
          %p636 = pneg %p360
        $region82: #{vit_forward.1} parent=43 // pred_check_branch
          %638 = sbr.rel (%p636) target = $region84
        $region83: #{vit_forward.1} parent=43 // pred_region
          %p639 = scmp.lt.s32.totalorder %s34, 1
          %s640 = scalar_select %p639, %s34, 1
          %s641 = scalar_lea.vmem %s12, %s640
        $region84: #{vit_forward.1} parent=43 // pred_fallthru
          _
        // Predicated region
        $region85: #{vit_forward.1} parent=43 // pred_check
          %p642 = pneg %p386
        $region86: #{vit_forward.1} parent=43 // pred_check_branch
          %644 = sbr.rel (%p642) target = $region88
        $region87: #{vit_forward.1} parent=43 // pred_region
          %p645 = scmp.lt.s32.totalorder %s34, 1
          %s646 = scalar_select %p645, %s34, 1
          %s647 = smul.addr %s646, 8
          %s648 = smul.addr %s647, 8
          %s649 = scalar_lea.vmem %s13, %s648
        $region88: #{vit_forward.1} parent=43 // pred_fallthru
          _
        // Predicated region
        $region89: #{vit_forward.1} parent=43 // pred_check
          %p650 = pneg %p412
        $region90: #{vit_forward.1} parent=43 // pred_check_branch
          %652 = sbr.rel (%p650) target = $region92
        $region91: #{vit_forward.1} parent=43 // pred_region
          %p653 = scmp.lt.s32.totalorder %s34, 1
          %s654 = scalar_select %p653, %s34, 1
          %s655 = scalar_lea.vmem %s14, %s654
        $region92: #{vit_forward.1} parent=43 // pred_fallthru
          _
      $region44: #{vit_forward.1} parent=5 // pred_fallthru
        _
      %p656 = scmp.le.s32.totalorder 1, %s26
      %p657 = scmp.lt.s32.totalorder %s26, 3
      %p658 = pnand %p656, %p657
      %p659 = pneg %p658
      // Predicated region
      $region93: #{vit_forward.1} parent=5 // pred_check
        _
      $region94: #{vit_forward.1} parent=5 // pred_check_branch
        %661 = sbr.rel (%p658) target = $region96
      $region95: #{vit_forward.1} parent=5 // pred_region
        %s662 = ssub.s32 %s26, 1
        %s663 = smul.u32 2, %s35
        %p664 = scmp.lt.s32.totalorder %s663, 1
        %s665 = scalar_select %p664, %s663, 1
        %s666 = smul.addr %s665, 2
        %s667 = smul.addr %s666, 8
        %s668 = scalar_lea.vmem %s0, %s667
        %p669 = pneg %p64
        %p670 = pneg %p61
        %p671 = pneg %p85
        %p672 = pneg %p82
        %p673 = pneg %p106
        %p674 = pneg %p103
        %p675 = scmp.lt.s32.totalorder %s36, 1
        %s676 = scalar_select %p675, %s36, 1
        %s677 = scalar_lea.vmem %s3, %s676
        %p678 = pneg %p132
        %p679 = pneg %p129
        %p680 = scmp.lt.s32.totalorder %s36, 1
        %s681 = scalar_select %p680, %s36, 1
        %s682 = scalar_lea.vmem %s4, %s681
        %p683 = pneg %p158
        %p684 = pneg %p155
        %p685 = scmp.lt.s32.totalorder %s36, 1
        %s686 = scalar_select %p685, %s36, 1
        %s687 = smul.addr %s686, 12
        %s688 = smul.addr %s687, 8
        %s689 = scalar_lea.vmem %s5, %s688
        %p690 = pneg %p184
        %p691 = pneg %p181
        %p692 = scmp.lt.s32.totalorder %s36, 1
        %s693 = scalar_select %p692, %s36, 1
        %s694 = smul.addr %s693, 2
        %s695 = scalar_lea.vmem %s6, %s694
        %p696 = pneg %p210
        %p697 = pneg %p207
        %p698 = scmp.lt.s32.totalorder %s36, 1
        %s699 = scalar_select %p698, %s36, 1
        %s700 = smul.addr %s699, 8
        %s701 = smul.addr %s700, 8
        %s702 = scalar_lea.vmem %s7, %s701
        %p703 = pneg %p236
        %p704 = pneg %p233
        %p705 = scmp.lt.s32.totalorder %s36, 1
        %s706 = scalar_select %p705, %s36, 1
        %s707 = scalar_lea.vmem %s8, %s706
        %p708 = pneg %p262
        %p709 = pneg %p259
        %p710 = scmp.lt.s32.totalorder %s36, 1
        %s711 = scalar_select %p710, %s36, 1
        %s712 = scalar_lea.vmem %s9, %s711
        %p713 = pneg %p288
        %p714 = pneg %p285
        %p715 = scmp.lt.s32.totalorder %s36, 1
        %s716 = scalar_select %p715, %s36, 1
        %s717 = scalar_lea.vmem %s10, %s716
        %p718 = pneg %p314
        %p719 = pneg %p311
        %p720 = scmp.lt.s32.totalorder %s36, 1
        %s721 = scalar_select %p720, %s36, 1
        %s722 = smul.addr %s721, 6
        %s723 = smul.addr %s722, 8
        %s724 = scalar_lea.vmem %s11, %s723
        %p725 = pneg %p340
        %p726 = pneg %p337
        %p727 = scmp.lt.s32.totalorder %s36, 1
        %s728 = scalar_select %p727, %s36, 1
        %s729 = scalar_lea.vmem %s12, %s728
        %p730 = pneg %p366
        %p731 = pneg %p363
        %p732 = scmp.lt.s32.totalorder %s36, 1
        %s733 = scalar_select %p732, %s36, 1
        %s734 = smul.addr %s733, 8
        %s735 = smul.addr %s734, 8
        %s736 = scalar_lea.vmem %s13, %s735
        %p737 = pneg %p392
        %p738 = pneg %p389
        %p739 = scmp.lt.s32.totalorder %s36, 1
        %s740 = scalar_select %p739, %s36, 1
        %s741 = scalar_lea.vmem %s14, %s740
        %p742 = pneg %p418
        %p743 = pneg %p415
        %p744 = pneg %p439
        %p745 = pneg %p436
        %p746 = pneg %p460
        %p747 = pneg %p457
        %p748 = pneg %p481
        %p749 = pneg %p478
        %p750 = pneg %p502
        %p751 = pneg %p499
        %p752 = pneg %p528
        %p753 = pneg %p525
        %s754 = smul.u32 2, %s35
        %p755 = scmp.lt.s32.totalorder %s754, 1
        %s756 = scalar_select %p755, %s754, 1
        %s757 = smul.addr %s756, 2
        %s758 = smul.addr %s757, 8
        %s759 = scalar_lea.vmem %s0, %s758
        %s760 = smul.u32 2, %s35
        %p761 = scmp.lt.s32.totalorder %s36, 1
        %s762 = scalar_select %p761, %s36, 1
        %s763 = scalar_lea.vmem %s3, %s762
        %p764 = scmp.lt.s32.totalorder %s36, 1
        %s765 = scalar_select %p764, %s36, 1
        %s766 = scalar_lea.vmem %s4, %s765
        %p767 = scmp.lt.s32.totalorder %s36, 1
        %s768 = scalar_select %p767, %s36, 1
        %s769 = smul.addr %s768, 12
        %s770 = smul.addr %s769, 8
        %s771 = scalar_lea.vmem %s5, %s770
        %p772 = scmp.lt.s32.totalorder %s36, 1
        %s773 = scalar_select %p772, %s36, 1
        %s774 = smul.addr %s773, 2
        %s775 = scalar_lea.vmem %s6, %s774
        %p776 = scmp.lt.s32.totalorder %s36, 1
        %s777 = scalar_select %p776, %s36, 1
        %s778 = smul.addr %s777, 8
        %s779 = smul.addr %s778, 8
        %s780 = scalar_lea.vmem %s7, %s779
        %p781 = scmp.lt.s32.totalorder %s36, 1
        %s782 = scalar_select %p781, %s36, 1
        %s783 = scalar_lea.vmem %s8, %s782
        %p784 = scmp.lt.s32.totalorder %s36, 1
        %s785 = scalar_select %p784, %s36, 1
        %s786 = scalar_lea.vmem %s9, %s785
        %p787 = scmp.lt.s32.totalorder %s36, 1
        %s788 = scalar_select %p787, %s36, 1
        %s789 = scalar_lea.vmem %s10, %s788
        %p790 = scmp.lt.s32.totalorder %s36, 1
        %s791 = scalar_select %p790, %s36, 1
        %s792 = smul.addr %s791, 6
        %s793 = smul.addr %s792, 8
        %s794 = scalar_lea.vmem %s11, %s793
        %p795 = scmp.lt.s32.totalorder %s36, 1
        %s796 = scalar_select %p795, %s36, 1
        %s797 = scalar_lea.vmem %s12, %s796
        %p798 = scmp.lt.s32.totalorder %s36, 1
        %s799 = scalar_select %p798, %s36, 1
        %s800 = smul.addr %s799, 8
        %s801 = smul.addr %s800, 8
        %s802 = scalar_lea.vmem %s13, %s801
        %p803 = scmp.lt.s32.totalorder %s36, 1
        %s804 = scalar_select %p803, %s36, 1
        %s805 = scalar_lea.vmem %s14, %s804
        %p806 = scmp.eq.s32.totalorder %s36, 0
        // Predicated region
        $region97: #{vit_forward.1} parent=95 // pred_check
          %p807 = pneg %p806
        $region98: #{vit_forward.1} parent=95 // pred_check_branch
          %809 = sbr.rel (%p807) target = $region100
        $region99: #{vit_forward.1} parent=95 // pred_region
          %v810 = vld [vmem:[%s759] sm:$0xff]
          %v811 = vld [vmem:[%s759 + $0x8] sm:$0xff]
          %v812 = vld [vmem:[%s1] sm:$0xff]
          %v813 = vld [vmem:[%s1 + $0x8] sm:$0xff]
          %v814 = vld [vmem:[%s1 + $0x10] sm:$0xff]
          %v815 = vld [vmem:[%s1 + $0x18] sm:$0xff]
          %v816 = vld [vmem:[%s1 + $0x20] sm:$0xff]
          %v817 = vld [vmem:[%s1 + $0x28] sm:$0xff]
          %vm818 = vcmask 392192
          %v820 = vsel %vm818, %v810, 0
          %v823 = vsel %vm818, %v811, 0
          %825 = vmatprep.subr.mxu0 0.0
          %826 = vmatpush1.msra.mxu0 %v812
          %827 = vmatprep.subr.mxu0 0.0
          %828 = vmatpush1.msra.mxu0 %v813
          %829 = vmatprep.subr.mxu0 0.0
          %830 = vmatpush1.msra.mxu0 %v814
          %831 = vmatprep.subr.mxu0 0.0
          %832 = vmatpush1.msra.mxu0 %v815
          %833 = vmatprep.subr.mxu0 0.0
          %834 = vmatpush1.msra.mxu0 %v816
          %835 = vmatprep.subr.mxu0 0.0
          %836 = vmatpush1.msra.mxu0 %v817
          %837 = vmatprep.subr.mxu0 0.0
          %838 = vmatpush1.msra.mxu0 0.0
          %839 = vmatprep.subr.mxu0 0.0
          %840 = vmatpush1.msra.mxu0 0.0
          %841 = vmatprep.subr.mxu0 0.0
          %842 = vmatpush1.msra.mxu0 0.0
          %843 = vmatprep.subr.mxu0 0.0
          %844 = vmatpush1.msra.mxu0 0.0
          %845 = vmatprep.subr.mxu0 0.0
          %846 = vmatpush1.msra.mxu0 0.0
          %847 = vmatprep.subr.mxu0 0.0
          %848 = vmatpush1.msra.mxu0 0.0
          %849 = vmatprep.subr.mxu0 0.0
          %850 = vmatpush1.msra.mxu0 0.0
          %851 = vmatprep.subr.mxu0 0.0
          %852 = vmatpush1.msra.mxu0 0.0
          %853 = vmatprep.subr.mxu0 0.0
          %854 = vmatpush1.msra.mxu0 0.0
          %855 = vmatprep.subr.mxu0 0.0
          %856 = vmatpush1.msra.mxu0 0.0
          %857 = vmatprep.subr.mxu0 0.0
          %858 = vmatpush1.msra.mxu0 0.0
          %859 = vmatprep.subr.mxu0 0.0
          %860 = vmatpush1.msra.mxu0 0.0
          %861 = vmatprep.subr.mxu0 0.0
          %862 = vmatpush1.msra.mxu0 0.0
          %863 = vmatprep.subr.mxu0 0.0
          %864 = vmatpush1.msra.mxu0 0.0
          %865 = vmatprep.subr.mxu0 0.0
          %866 = vmatpush1.msra.mxu0 0.0
          %867 = vmatprep.subr.mxu0 0.0
          %868 = vmatpush1.msra.mxu0 0.0
          %869 = vmatprep.subr.mxu0 0.0
          %870 = vmatpush1.msra.mxu0 0.0
          %871 = vmatprep.subr.mxu0 0.0
          %872 = vmatpush1.msra.mxu0 0.0
          %873 = vmatprep.subr.mxu0 0.0
          %874 = vmatpush1.msra.mxu0 0.0
          %875 = vmatprep.subr.mxu0 0.0
          %876 = vmatpush1.msra.mxu0 0.0
          %877 = vmatprep.subr.mxu0 0.0
          %878 = vmatpush1.msra.mxu0 0.0
          %879 = vmatprep.subr.mxu0 0.0
          %880 = vmatpush1.msra.mxu0 0.0
          %881 = vmatprep.subr.mxu0 0.0
          %882 = vmatpush1.msra.mxu0 0.0
          %883 = vmatprep.subr.mxu0 0.0
          %884 = vmatpush1.msra.mxu0 0.0
          %885 = vmatprep.subr.mxu0 0.0
          %886 = vmatpush1.msra.mxu0 0.0
          %887 = vmatprep.subr.mxu0 0.0
          %888 = vmatpush1.msra.mxu0 0.0
          %889 = vmatprep.mubr.f32.mxu0 0.0
          %890 = vmatmul.mubr.f32.gmra.mrb[0].mxu0 %v820
          %v891 = vpop.f32.mrb[0].mxu0
          %v892 = vadd.f32 0.0, %v891
          %v893 = vpop.f32.mrb[0].mxu0
          %894 = vmatprep.mubr.f32.mxu0 0.0
          %895 = vmatmul.mubr.f32.gmra.mrb[0].mxu0 %v823
          %v896 = vpop.f32.mrb[0].mxu0
          %v897 = vadd.f32 0.0, %v896
          %v898 = vpop.f32.mrb[0].mxu0
          %899 = vdwg.mxu0
          %vm902 = vcmask 1040384
          %v903 = vrot.slane %v892, 7
          %v904 = vrot.slane %v897, 7
          %v905 = vsel %vm902, %v903, %v904
          %v909 = vsel %vm902, 0.0, %v903
          %v910 = vld [vmem:[%s2] sm:$0xff]
          %v911 = vld [vmem:[%s2 + $0x8] sm:$0xff]
          %v912 = vld [vmem:[%s2 + $0x10] sm:$0x1]
          %v913 = vadd.f32 %v909, %v910
          %v914 = vadd.f32 %v905, %v911
          %v915 = vadd.f32 %v904, %v912
          %916 = vst.msk [vmem:[#allocation2] sm:$0xff] %vm818, %v913
          %917 = vst.msk [vmem:[#allocation2 + $0x8] sm:$0xff] %vm818, %v914
          %vm918 = vcmask 385024
          %919 = vst.msk [vmem:[#allocation2 + $0x10] sm:$0x1] %vm918, %v915
          %s920 = scalar_lea.vmem %s759, 16
          %v921 = vld [vmem:[%s920] sm:$0xff]
          %v922 = vld [vmem:[%s920 + $0x8] sm:$0xff]
          %v923 = vld [vmem:[%s1] sm:$0xff]
          %v924 = vld [vmem:[%s1 + $0x8] sm:$0xff]
          %v925 = vld [vmem:[%s1 + $0x10] sm:$0xff]
          %v926 = vld [vmem:[%s1 + $0x18] sm:$0xff]
          %v927 = vld [vmem:[%s1 + $0x20] sm:$0xff]
          %v928 = vld [vmem:[%s1 + $0x28] sm:$0xff]
          %v930 = vsel %vm818, %v921, 0
          %v933 = vsel %vm818, %v922, 0
          %935 = vmatprep.subr.mxu0 0.0
          %936 = vmatpush1.msra.mxu0 %v923
          %937 = vmatprep.subr.mxu0 0.0
          %938 = vmatpush1.msra.mxu0 %v924
          %939 = vmatprep.subr.mxu0 0.0
          %940 = vmatpush1.msra.mxu0 %v925
          %941 = vmatprep.subr.mxu0 0.0
          %942 = vmatpush1.msra.mxu0 %v926
          %943 = vmatprep.subr.mxu0 0.0
          %944 = vmatpush1.msra.mxu0 %v927
          %945 = vmatprep.subr.mxu0 0.0
          %946 = vmatpush1.msra.mxu0 %v928
          %947 = vmatprep.subr.mxu0 0.0
          %948 = vmatpush1.msra.mxu0 0.0
          %949 = vmatprep.subr.mxu0 0.0
          %950 = vmatpush1.msra.mxu0 0.0
          %951 = vmatprep.subr.mxu0 0.0
          %952 = vmatpush1.msra.mxu0 0.0
          %953 = vmatprep.subr.mxu0 0.0
          %954 = vmatpush1.msra.mxu0 0.0
          %955 = vmatprep.subr.mxu0 0.0
          %956 = vmatpush1.msra.mxu0 0.0
          %957 = vmatprep.subr.mxu0 0.0
          %958 = vmatpush1.msra.mxu0 0.0
          %959 = vmatprep.subr.mxu0 0.0
          %960 = vmatpush1.msra.mxu0 0.0
          %961 = vmatprep.subr.mxu0 0.0
          %962 = vmatpush1.msra.mxu0 0.0
          %963 = vmatprep.subr.mxu0 0.0
          %964 = vmatpush1.msra.mxu0 0.0
          %965 = vmatprep.subr.mxu0 0.0
          %966 = vmatpush1.msra.mxu0 0.0
          %967 = vmatprep.subr.mxu0 0.0
          %968 = vmatpush1.msra.mxu0 0.0
          %969 = vmatprep.subr.mxu0 0.0
          %970 = vmatpush1.msra.mxu0 0.0
          %971 = vmatprep.subr.mxu0 0.0
          %972 = vmatpush1.msra.mxu0 0.0
          %973 = vmatprep.subr.mxu0 0.0
          %974 = vmatpush1.msra.mxu0 0.0
          %975 = vmatprep.subr.mxu0 0.0
          %976 = vmatpush1.msra.mxu0 0.0
          %977 = vmatprep.subr.mxu0 0.0
          %978 = vmatpush1.msra.mxu0 0.0
          %979 = vmatprep.subr.mxu0 0.0
          %980 = vmatpush1.msra.mxu0 0.0
          %981 = vmatprep.subr.mxu0 0.0
          %982 = vmatpush1.msra.mxu0 0.0
          %983 = vmatprep.subr.mxu0 0.0
          %984 = vmatpush1.msra.mxu0 0.0
          %985 = vmatprep.subr.mxu0 0.0
          %986 = vmatpush1.msra.mxu0 0.0
          %987 = vmatprep.subr.mxu0 0.0
          %988 = vmatpush1.msra.mxu0 0.0
          %989 = vmatprep.subr.mxu0 0.0
          %990 = vmatpush1.msra.mxu0 0.0
          %991 = vmatprep.subr.mxu0 0.0
          %992 = vmatpush1.msra.mxu0 0.0
          %993 = vmatprep.subr.mxu0 0.0
          %994 = vmatpush1.msra.mxu0 0.0
          %995 = vmatprep.subr.mxu0 0.0
          %996 = vmatpush1.msra.mxu0 0.0
          %997 = vmatprep.subr.mxu0 0.0
          %998 = vmatpush1.msra.mxu0 0.0
          %999 = vmatprep.mubr.f32.mxu0 0.0
          %1000 = vmatmul.mubr.f32.gmra.mrb[0].mxu0 %v930
          %v1001 = vpop.f32.mrb[0].mxu0
          %v1002 = vadd.f32 0.0, %v1001
          %v1003 = vpop.f32.mrb[0].mxu0
          %1004 = vmatprep.mubr.f32.mxu0 0.0
          %1005 = vmatmul.mubr.f32.gmra.mrb[0].mxu0 %v933
          %v1006 = vpop.f32.mrb[0].mxu0
          %v1007 = vadd.f32 0.0, %v1006
          %v1008 = vpop.f32.mrb[0].mxu0
          %1009 = vdwg.mxu0
          %v1012 = vrot.slane %v1002, 7
          %v1013 = vrot.slane %v1007, 7
          %v1014 = vsel %vm902, %v1012, %v1013
          %v1018 = vsel %vm902, 0.0, %v1012
          %v1019 = vld [vmem:[%s2] sm:$0xff]
          %v1020 = vld [vmem:[%s2 + $0x8] sm:$0xff]
          %v1021 = vld [vmem:[%s2 + $0x10] sm:$0x1]
          %v1022 = vadd.f32 %v1018, %v1019
          %v1023 = vadd.f32 %v1014, %v1020
          %v1024 = vadd.f32 %v1013, %v1021
          %s1025 = scalar_lea.vmem [#allocation2], 24
          %1026 = vst.msk [vmem:[%s1025] sm:$0xff] %vm818, %v1022
          %1027 = vst.msk [vmem:[%s1025 + $0x8] sm:$0xff] %vm818, %v1023
          %1028 = vst.msk [vmem:[%s1025 + $0x10] sm:$0x1] %vm918, %v1024
        $region100: #{vit_forward.1} parent=95 // pred_fallthru
          _
        %v1029 = vld [vmem:[#allocation2] sm:$0xff]
        %v1030 = vld [vmem:[#allocation2 + $0x8] sm:$0xff]
        %v1031 = vld [vmem:[#allocation2 + $0x10] sm:$0x1]
        %v1032 = vld [vmem:[%s763] sm:$0x1]
        %v1033 = vld [vmem:[%s766] sm:$0x1]
        %vm1034 = vcmask 392192
        %v1035 = vsel %vm1034, %v1029, 0.0
        %1036 = vadd.xlane.f32.xlu0 %v1035
        %v1037 = vpop.xlane.xlu0 %1036
        %v1038 = vsel %vm1034, %v1030, 0.0
        %1039 = vadd.xlane.f32.xlu0 %v1038
        %v1040 = vpop.xlane.xlu0 %1039
        %vm1041 = vcmask 385024
        %v1042 = vsel %vm1041, %v1031, 0.0
        %1043 = vadd.xlane.f32.xlu0 %v1042
        %v1044 = vpop.xlane.xlu0 %1043
        %v1045 = vrcp.pop 48.0
        %v1046 = vmul.f32 %v1037, %v1045
        %v1047 = vmul.f32 %v1040, %v1045
        %v1048 = vmul.f32 %v1044, %v1045
        %v1049 = vsub.f32 %v1029, %v1046
        %v1050 = vsub.f32 %v1030, %v1047
        %v1051 = vsub.f32 %v1031, %v1048
        %v1052 = vmul.f32 %v1049, %v1049
        %v1053 = vmul.f32 %v1050, %v1050
        %v1054 = vmul.f32 %v1051, %v1051
        %v1055 = vsel %vm1034, %v1052, 0.0
        %1056 = vadd.xlane.f32.xlu0 %v1055
        %v1057 = vpop.xlane.xlu0 %1056
        %v1058 = vsel %vm1034, %v1053, 0.0
        %1059 = vadd.xlane.f32.xlu0 %v1058
        %v1060 = vpop.xlane.xlu0 %1059
        %v1061 = vsel %vm1041, %v1054, 0.0
        %1062 = vadd.xlane.f32.xlu0 %v1061
        %v1063 = vpop.xlane.xlu0 %1062
        %v1064 = vmul.f32 %v1057, %v1045
        %v1065 = vmul.f32 %v1060, %v1045
        %v1066 = vmul.f32 %v1063, %v1045
        %v1067 = vadd.f32 %v1064, 1e-05
        %v1068 = vadd.f32 %v1065, 1e-05
        %v1069 = vadd.f32 %v1066, 1e-05
        %v1070 = vrsqrt.pop %v1067
        %v1071 = vrsqrt.pop %v1068
        %v1072 = vrsqrt.pop %v1069
        %v1073 = vmul.f32 %v1049, %v1070
        %v1074 = vmul.f32 %v1050, %v1071
        %v1075 = vmul.f32 %v1051, %v1072
        %v1077 = vlaneseq
        %v1078 = vshrl.u32 %v1077, 7
        %v1079 = vsub.s32 0, %v1078
        %v1080 = vrot.slane %v1032, %v1079
        %v1082 = vmul.f32 %v1073, %v1080
        %v1083 = vmul.f32 %v1074, %v1080
        %v1084 = vmul.f32 %v1075, %v1080
        %v1086 = vlaneseq
        %v1087 = vshrl.u32 %v1086, 7
        %v1088 = vsub.s32 0, %v1087
        %v1089 = vrot.slane %v1033, %v1088
        %v1091 = vadd.f32 %v1082, %v1089
        %v1092 = vadd.f32 %v1083, %v1089
        %v1093 = vadd.f32 %v1084, %v1089
        %v1094 = vld [vmem:[%s771] sm:$0xff]
        %v1095 = vld [vmem:[%s771 + $0x8] sm:$0xff]
        %v1096 = vld [vmem:[%s771 + $0x10] sm:$0xff]
        %v1097 = vld [vmem:[%s771 + $0x18] sm:$0xff]
        %v1098 = vld [vmem:[%s771 + $0x20] sm:$0xff]
        %v1099 = vld [vmem:[%s771 + $0x28] sm:$0xff]
        %v1100 = vld [vmem:[%s771 + $0x30] sm:$0xff]
        %v1101 = vld [vmem:[%s771 + $0x38] sm:$0xff]
        %v1102 = vld [vmem:[%s771 + $0x40] sm:$0xff]
        %v1103 = vld [vmem:[%s771 + $0x48] sm:$0xff]
        %v1104 = vld [vmem:[%s771 + $0x50] sm:$0xff]
        %v1105 = vld [vmem:[%s771 + $0x58] sm:$0xff]
        %v1106 = vld [vmem:[%s775] sm:$0x3]
        %v1108 = vlaneseq
        %v1109 = vshrl.u32 %v1108, 7
        %v1110 = vsub.s32 0, %v1109
        %v1111 = vrot.slane %v1106, %v1110
        %v1112 = vlaneseq
        %v1113 = vshrl.u32 %v1112, 7
        %v1114 = vsub.s32 1, %v1113
        %v1115 = vrot.slane %v1106, %v1114
        %v1119 = vsel %vm1034, %v1091, 0
        %v1122 = vsel %vm1034, %v1092, 0
        %v1125 = vsel %vm1034, %v1093, 0
        %1127 = vmatprep.subr.mxu0 %v1095
        %1128 = vmatpush1.msra.mxu0 %v1094
        %1129 = vmatprep.subr.mxu0 %v1097
        %1130 = vmatpush1.msra.mxu0 %v1096
        %1131 = vmatprep.subr.mxu0 %v1099
        %1132 = vmatpush1.msra.mxu0 %v1098
        %1133 = vmatprep.subr.mxu0 %v1101
        %1134 = vmatpush1.msra.mxu0 %v1100
        %1135 = vmatprep.subr.mxu0 %v1103
        %1136 = vmatpush1.msra.mxu0 %v1102
        %1137 = vmatprep.subr.mxu0 %v1105
        %1138 = vmatpush1.msra.mxu0 %v1104
        %1139 = vmatprep.subr.mxu0 0.0
        %1140 = vmatpush1.msra.mxu0 0.0
        %1141 = vmatprep.subr.mxu0 0.0
        %1142 = vmatpush1.msra.mxu0 0.0
        %1143 = vmatprep.subr.mxu0 0.0
        %1144 = vmatpush1.msra.mxu0 0.0
        %1145 = vmatprep.subr.mxu0 0.0
        %1146 = vmatpush1.msra.mxu0 0.0
        %1147 = vmatprep.subr.mxu0 0.0
        %1148 = vmatpush1.msra.mxu0 0.0
        %1149 = vmatprep.subr.mxu0 0.0
        %1150 = vmatpush1.msra.mxu0 0.0
        %1151 = vmatprep.subr.mxu0 0.0
        %1152 = vmatpush1.msra.mxu0 0.0
        %1153 = vmatprep.subr.mxu0 0.0
        %1154 = vmatpush1.msra.mxu0 0.0
        %1155 = vmatprep.subr.mxu0 0.0
        %1156 = vmatpush1.msra.mxu0 0.0
        %1157 = vmatprep.subr.mxu0 0.0
        %1158 = vmatpush1.msra.mxu0 0.0
        %1159 = vmatprep.subr.mxu0 0.0
        %1160 = vmatpush1.msra.mxu0 0.0
        %1161 = vmatprep.subr.mxu0 0.0
        %1162 = vmatpush1.msra.mxu0 0.0
        %1163 = vmatprep.subr.mxu0 0.0
        %1164 = vmatpush1.msra.mxu0 0.0
        %1165 = vmatprep.subr.mxu0 0.0
        %1166 = vmatpush1.msra.mxu0 0.0
        %1167 = vmatprep.subr.mxu0 0.0
        %1168 = vmatpush1.msra.mxu0 0.0
        %1169 = vmatprep.subr.mxu0 0.0
        %1170 = vmatpush1.msra.mxu0 0.0
        %1171 = vmatprep.subr.mxu0 0.0
        %1172 = vmatpush1.msra.mxu0 0.0
        %1173 = vmatprep.subr.mxu0 0.0
        %1174 = vmatpush1.msra.mxu0 0.0
        %1175 = vmatprep.subr.mxu0 0.0
        %1176 = vmatpush1.msra.mxu0 0.0
        %1177 = vmatprep.subr.mxu0 0.0
        %1178 = vmatpush1.msra.mxu0 0.0
        %1179 = vmatprep.subr.mxu0 0.0
        %1180 = vmatpush1.msra.mxu0 0.0
        %1181 = vmatprep.subr.mxu0 0.0
        %1182 = vmatpush1.msra.mxu0 0.0
        %1183 = vmatprep.subr.mxu0 0.0
        %1184 = vmatpush1.msra.mxu0 0.0
        %1185 = vmatprep.subr.mxu0 0.0
        %1186 = vmatpush1.msra.mxu0 0.0
        %1187 = vmatprep.subr.mxu0 0.0
        %1188 = vmatpush1.msra.mxu0 0.0
        %1189 = vmatprep.subr.mxu0 0.0
        %1190 = vmatpush1.msra.mxu0 0.0
        %1191 = vmatprep.mubr.f32.mxu0 0.0
        %1192 = vmatmul.mubr.f32.gmra.mrb[0].mxu0 %v1119
        %v1193 = vpop.f32.mrb[0].mxu0
        %v1194 = vadd.f32 %v1111, %v1193
        %v1195 = vpop.f32.mrb[0].mxu0
        %v1196 = vadd.f32 %v1115, %v1195
        %1197 = vmatprep.mubr.f32.mxu0 0.0
        %1198 = vmatmul.mubr.f32.gmra.mrb[0].mxu0 %v1122
        %v1199 = vpop.f32.mrb[0].mxu0
        %v1200 = vadd.f32 %v1111, %v1199
        %v1201 = vpop.f32.mrb[0].mxu0
        %v1202 = vadd.f32 %v1115, %v1201
        %1203 = vmatprep.mubr.f32.mxu0 0.0
        %1204 = vmatmul.mubr.f32.gmra.mrb[0].mxu0 %v1125
        %v1205 = vpop.f32.mrb[0].mxu0
        %v1206 = vadd.f32 %v1111, %v1205
        %v1207 = vpop.f32.mrb[0].mxu0
        %v1208 = vadd.f32 %v1115, %v1207
        %1209 = vdwg.mxu0
        %v1210 = vmul.f32 %v1194, 0.14433756
        %v1211 = vmul.f32 %v1200, 0.14433756
        %v1212 = vmul.f32 %v1206, 0.14433756
        %1216 = vrot.lane.b32.xlu0 %v1194, 64
        %v1217 = vpop.permute.xlu0 %1216
        %1218 = vrot.lane.b32.xlu0 %v1200, 64
        %v1219 = vpop.permute.xlu0 %1218
        %1220 = vrot.lane.b32.xlu0 %v1206, 64
        %v1221 = vpop.permute.xlu0 %1220
        %vm1222 = vcmask 130048
        %v1224 = vsel %vm1222, %v1210, 0
        %v1227 = vsel %vm1222, %v1211, 0
        %v1230 = vsel %vm1222, %v1212, 0
        %v1232 = vsel %vm1222, %v1217, 0
        %v1234 = vsel %vm1222, %v1219, 0
        %v1236 = vsel %vm1222, %v1221, 0
        %1238 = vmatprep.subr.mxu0 0.0
        %1239 = vmatpush1.xpose.msra.mxu0 %v1232
        %1240 = vmatprep.subr.mxu0 0.0
        %1241 = vmatpush1.xpose.msra.mxu0 %v1234
        %1242 = vmatprep.subr.mxu0 0.0
        %1243 = vmatpush1.xpose.msra.mxu0 %v1236
        %1244 = vmatprep.subr.mxu0 0.0
        %1245 = vmatpush1.xpose.msra.mxu0 0.0
        %1246 = vmatprep.subr.mxu0 0.0
        %1247 = vmatpush1.xpose.msra.mxu0 0.0
        %1248 = vmatprep.subr.mxu0 0.0
        %1249 = vmatpush1.xpose.msra.mxu0 0.0
        %1250 = vmatprep.subr.mxu0 0.0
        %1251 = vmatpush1.xpose.msra.mxu0 0.0
        %1252 = vmatprep.subr.mxu0 0.0
        %1253 = vmatpush1.xpose.msra.mxu0 0.0
        %1254 = vmatprep.subr.mxu0 0.0
        %1255 = vmatpush1.xpose.msra.mxu0 0.0
        %1256 = vmatprep.subr.mxu0 0.0
        %1257 = vmatpush1.xpose.msra.mxu0 0.0
        %1258 = vmatprep.subr.mxu0 0.0
        %1259 = vmatpush1.xpose.msra.mxu0 0.0
        %1260 = vmatprep.subr.mxu0 0.0
        %1261 = vmatpush1.xpose.msra.mxu0 0.0
        %1262 = vmatprep.subr.mxu0 0.0
        %1263 = vmatpush1.xpose.msra.mxu0 0.0
        %1264 = vmatprep.subr.mxu0 0.0
        %1265 = vmatpush1.xpose.msra.mxu0 0.0
        %1266 = vmatprep.subr.mxu0 0.0
        %1267 = vmatpush1.xpose.msra.mxu0 0.0
        %1268 = vmatprep.subr.mxu0 0.0
        %1269 = vmatpush1.xpose.msra.mxu0 0.0
        %1270 = vmatprep.subr.mxu0 0.0
        %1271 = vmatpush1.xpose.msra.mxu0 0.0
        %1272 = vmatprep.subr.mxu0 0.0
        %1273 = vmatpush1.xpose.msra.mxu0 0.0
        %1274 = vmatprep.subr.mxu0 0.0
        %1275 = vmatpush1.xpose.msra.mxu0 0.0
        %1276 = vmatprep.subr.mxu0 0.0
        %1277 = vmatpush1.xpose.msra.mxu0 0.0
        %1278 = vmatprep.subr.mxu0 0.0
        %1279 = vmatpush1.xpose.msra.mxu0 0.0
        %1280 = vmatprep.subr.mxu0 0.0
        %1281 = vmatpush1.xpose.msra.mxu0 0.0
        %1282 = vmatprep.subr.mxu0 0.0
        %1283 = vmatpush1.xpose.msra.mxu0 0.0
        %1284 = vmatprep.subr.mxu0 0.0
        %1285 = vmatpush1.xpose.msra.mxu0 0.0
        %1286 = vmatprep.subr.mxu0 0.0
        %1287 = vmatpush1.xpose.msra.mxu0 0.0
        %1288 = vmatprep.subr.mxu0 0.0
        %1289 = vmatpush1.xpose.msra.mxu0 0.0
        %1290 = vmatprep.subr.mxu0 0.0
        %1291 = vmatpush1.xpose.msra.mxu0 0.0
        %1292 = vmatprep.subr.mxu0 0.0
        %1293 = vmatpush1.xpose.msra.mxu0 0.0
        %1294 = vmatprep.subr.mxu0 0.0
        %1295 = vmatpush1.xpose.msra.mxu0 0.0
        %1296 = vmatprep.subr.mxu0 0.0
        %1297 = vmatpush1.xpose.msra.mxu0 0.0
        %1298 = vmatprep.subr.mxu0 0.0
        %1299 = vmatpush1.xpose.msra.mxu0 0.0
        %1300 = vmatprep.subr.mxu0 0.0
        %1301 = vmatpush1.xpose.msra.mxu0 0.0
        %1302 = vmatprep.mubr.f32.mxu0 0.0
        %1303 = vmatmul.mubr.f32.gmra.mrb[0].mxu0 %v1224
        %v1304 = vpop.f32.mrb[0].mxu0
        %v1305 = vadd.f32 0.0, %v1304
        %v1306 = vpop.f32.mrb[0].mxu0
        %1307 = vmatprep.mubr.f32.mxu0 0.0
        %1308 = vmatmul.mubr.f32.gmra.mrb[0].mxu0 %v1227
        %v1309 = vpop.f32.mrb[0].mxu0
        %v1310 = vadd.f32 0.0, %v1309
        %v1311 = vpop.f32.mrb[0].mxu0
        %1312 = vmatprep.mubr.f32.mxu0 0.0
        %1313 = vmatmul.mubr.f32.gmra.mrb[0].mxu0 %v1230
        %v1314 = vpop.f32.mrb[0].mxu0
        %v1315 = vadd.f32 0.0, %v1314
        %v1316 = vpop.f32.mrb[0].mxu0
        %1317 = vdwg.mxu0
        %vm1318 = vcmask 138240
        %v1319 = vsel %vm1318, %v1305, -inf
        %1320 = vmax.xlane.f32.xlu0 %v1319
        %v1321 = vpop.xlane.xlu0 %1320
        %v1322 = vsel %vm1318, %v1310, -inf
        %1323 = vmax.xlane.f32.xlu0 %v1322
        %v1324 = vpop.xlane.xlu0 %1323
        %vm1325 = vcmask 131072
        %v1326 = vsel %vm1325, %v1315, -inf
        %1327 = vmax.xlane.f32.xlu0 %v1326
        %v1328 = vpop.xlane.xlu0 %1327
        %v1329 = vsub.f32 %v1305, %v1321
        %v1330 = vsub.f32 %v1310, %v1324
        %v1331 = vsub.f32 %v1315, %v1328
        %v1332 = vmul.f32 %v1329, 1.442695
        %v1333 = vpow.pop %v1332
        %v1334 = vmul.f32 %v1330, 1.442695
        %v1335 = vpow.pop %v1334
        %v1336 = vmul.f32 %v1331, 1.442695
        %v1337 = vpow.pop %v1336
        %v1338 = vsel %vm1318, %v1333, 0.0
        %1339 = vadd.xlane.f32.xlu0 %v1338
        %v1340 = vpop.xlane.xlu0 %1339
        %v1341 = vsel %vm1318, %v1335, 0.0
        %1342 = vadd.xlane.f32.xlu0 %v1341
        %v1343 = vpop.xlane.xlu0 %1342
        %v1344 = vsel %vm1325, %v1337, 0.0
        %1345 = vadd.xlane.f32.xlu0 %v1344
        %v1346 = vpop.xlane.xlu0 %1345
        %v1347 = vrcp.pop %v1340
        %v1348 = vrcp.pop %v1343
        %v1349 = vrcp.pop %v1346
        %v1350 = vmul.f32 %v1333, %v1347
        %v1351 = vmul.f32 %v1335, %v1348
        %v1352 = vmul.f32 %v1337, %v1349
        %v1354 = vsel %vm1318, %v1350, 0
        %v1357 = vsel %vm1318, %v1351, 0
        %v1360 = vsel %vm1318, %v1352, 0
        %vm1362 = vcmask 1040384
        %v1364 = vsel %vm1362, %v1208, 0
        %1366 = vmatprep.subr.mxu0 0.0
        %1367 = vmatpush1.msra.mxu0 %v1196
        %1368 = vmatprep.subr.mxu0 0.0
        %1369 = vmatpush1.msra.mxu0 %v1202
        %1370 = vmatprep.subr.mxu0 0.0
        %1371 = vmatpush1.msra.mxu0 %v1364
        %1372 = vmatprep.subr.mxu0 0.0
        %1373 = vmatpush1.msra.mxu0 0.0
        %1374 = vmatprep.subr.mxu0 0.0
        %1375 = vmatpush1.msra.mxu0 0.0
        %1376 = vmatprep.subr.mxu0 0.0
        %1377 = vmatpush1.msra.mxu0 0.0
        %1378 = vmatprep.subr.mxu0 0.0
        %1379 = vmatpush1.msra.mxu0 0.0
        %1380 = vmatprep.subr.mxu0 0.0
        %1381 = vmatpush1.msra.mxu0 0.0
        %1382 = vmatprep.subr.mxu0 0.0
        %1383 = vmatpush1.msra.mxu0 0.0
        %1384 = vmatprep.subr.mxu0 0.0
        %1385 = vmatpush1.msra.mxu0 0.0
        %1386 = vmatprep.subr.mxu0 0.0
        %1387 = vmatpush1.msra.mxu0 0.0
        %1388 = vmatprep.subr.mxu0 0.0
        %1389 = vmatpush1.msra.mxu0 0.0
        %1390 = vmatprep.subr.mxu0 0.0
        %1391 = vmatpush1.msra.mxu0 0.0
        %1392 = vmatprep.subr.mxu0 0.0
        %1393 = vmatpush1.msra.mxu0 0.0
        %1394 = vmatprep.subr.mxu0 0.0
        %1395 = vmatpush1.msra.mxu0 0.0
        %1396 = vmatprep.subr.mxu0 0.0
        %1397 = vmatpush1.msra.mxu0 0.0
        %1398 = vmatprep.subr.mxu0 0.0
        %1399 = vmatpush1.msra.mxu0 0.0
        %1400 = vmatprep.subr.mxu0 0.0
        %1401 = vmatpush1.msra.mxu0 0.0
        %1402 = vmatprep.subr.mxu0 0.0
        %1403 = vmatpush1.msra.mxu0 0.0
        %1404 = vmatprep.subr.mxu0 0.0
        %1405 = vmatpush1.msra.mxu0 0.0
        %1406 = vmatprep.subr.mxu0 0.0
        %1407 = vmatpush1.msra.mxu0 0.0
        %1408 = vmatprep.subr.mxu0 0.0
        %1409 = vmatpush1.msra.mxu0 0.0
        %1410 = vmatprep.subr.mxu0 0.0
        %1411 = vmatpush1.msra.mxu0 0.0
        %1412 = vmatprep.subr.mxu0 0.0
        %1413 = vmatpush1.msra.mxu0 0.0
        %1414 = vmatprep.subr.mxu0 0.0
        %1415 = vmatpush1.msra.mxu0 0.0
        %1416 = vmatprep.subr.mxu0 0.0
        %1417 = vmatpush1.msra.mxu0 0.0
        %1418 = vmatprep.subr.mxu0 0.0
        %1419 = vmatpush1.msra.mxu0 0.0
        %1420 = vmatprep.subr.mxu0 0.0
        %1421 = vmatpush1.msra.mxu0 0.0
        %1422 = vmatprep.subr.mxu0 0.0
        %1423 = vmatpush1.msra.mxu0 0.0
        %1424 = vmatprep.subr.mxu0 0.0
        %1425 = vmatpush1.msra.mxu0 0.0
        %1426 = vmatprep.subr.mxu0 0.0
        %1427 = vmatpush1.msra.mxu0 0.0
        %1428 = vmatprep.subr.mxu0 0.0
        %1429 = vmatpush1.msra.mxu0 0.0
        %1430 = vmatprep.mubr.f32.mxu0 0.0
        %1431 = vmatmul.mubr.f32.gmra.mrb[0].mxu0 %v1354
        %v1432 = vpop.f32.mrb[0].mxu0
        %v1433 = vadd.f32 0.0, %v1432
        %v1434 = vpop.f32.mrb[0].mxu0
        %1435 = vmatprep.mubr.f32.mxu0 0.0
        %1436 = vmatmul.mubr.f32.gmra.mrb[0].mxu0 %v1357
        %v1437 = vpop.f32.mrb[0].mxu0
        %v1438 = vadd.f32 0.0, %v1437
        %v1439 = vpop.f32.mrb[0].mxu0
        %1440 = vmatprep.mubr.f32.mxu0 0.0
        %1441 = vmatmul.mubr.f32.gmra.mrb[0].mxu0 %v1360
        %v1442 = vpop.f32.mrb[0].mxu0
        %v1443 = vadd.f32 0.0, %v1442
        %v1444 = vpop.f32.mrb[0].mxu0
        %1445 = vdwg.mxu0
        %1446 = vrot.lane.b32.xlu0 %v1210, 112
        %v1447 = vpop.permute.xlu0 %1446
        %1448 = vrot.lane.b32.xlu0 %v1211, 112
        %v1449 = vpop.permute.xlu0 %1448
        %1450 = vrot.lane.b32.xlu0 %v1212, 112
        %v1451 = vpop.permute.xlu0 %1450
        %1452 = vrot.lane.b32.xlu0 %v1194, 48
        %v1453 = vpop.permute.xlu0 %1452
        %1454 = vrot.lane.b32.xlu0 %v1200, 48
        %v1455 = vpop.permute.xlu0 %1454
        %1456 = vrot.lane.b32.xlu0 %v1206, 48
        %v1457 = vpop.permute.xlu0 %1456
        %v1458 = vsel %vm1222, %v1447, 0
        %v1460 = vsel %vm1222, %v1449, 0
        %v1462 = vsel %vm1222, %v1451, 0
        %v1464 = vsel %vm1222, %v1453, 0
        %v1466 = vsel %vm1222, %v1455, 0
        %v1468 = vsel %vm1222, %v1457, 0
        %1470 = vmatprep.subr.mxu0 0.0
        %1471 = vmatpush1.xpose.msra.mxu0 %v1464
        %1472 = vmatprep.subr.mxu0 0.0
        %1473 = vmatpush1.xpose.msra.mxu0 %v1466
        %1474 = vmatprep.subr.mxu0 0.0
        %1475 = vmatpush1.xpose.msra.mxu0 %v1468
        %1476 = vmatprep.subr.mxu0 0.0
        %1477 = vmatpush1.xpose.msra.mxu0 0.0
        %1478 = vmatprep.subr.mxu0 0.0
        %1479 = vmatpush1.xpose.msra.mxu0 0.0
        %1480 = vmatprep.subr.mxu0 0.0
        %1481 = vmatpush1.xpose.msra.mxu0 0.0
        %1482 = vmatprep.subr.mxu0 0.0
        %1483 = vmatpush1.xpose.msra.mxu0 0.0
        %1484 = vmatprep.subr.mxu0 0.0
        %1485 = vmatpush1.xpose.msra.mxu0 0.0
        %1486 = vmatprep.subr.mxu0 0.0
        %1487 = vmatpush1.xpose.msra.mxu0 0.0
        %1488 = vmatprep.subr.mxu0 0.0
        %1489 = vmatpush1.xpose.msra.mxu0 0.0
        %1490 = vmatprep.subr.mxu0 0.0
        %1491 = vmatpush1.xpose.msra.mxu0 0.0
        %1492 = vmatprep.subr.mxu0 0.0
        %1493 = vmatpush1.xpose.msra.mxu0 0.0
        %1494 = vmatprep.subr.mxu0 0.0
        %1495 = vmatpush1.xpose.msra.mxu0 0.0
        %1496 = vmatprep.subr.mxu0 0.0
        %1497 = vmatpush1.xpose.msra.mxu0 0.0
        %1498 = vmatprep.subr.mxu0 0.0
        %1499 = vmatpush1.xpose.msra.mxu0 0.0
        %1500 = vmatprep.subr.mxu0 0.0
        %1501 = vmatpush1.xpose.msra.mxu0 0.0
        %1502 = vmatprep.subr.mxu0 0.0
        %1503 = vmatpush1.xpose.msra.mxu0 0.0
        %1504 = vmatprep.subr.mxu0 0.0
        %1505 = vmatpush1.xpose.msra.mxu0 0.0
        %1506 = vmatprep.subr.mxu0 0.0
        %1507 = vmatpush1.xpose.msra.mxu0 0.0
        %1508 = vmatprep.subr.mxu0 0.0
        %1509 = vmatpush1.xpose.msra.mxu0 0.0
        %1510 = vmatprep.subr.mxu0 0.0
        %1511 = vmatpush1.xpose.msra.mxu0 0.0
        %1512 = vmatprep.subr.mxu0 0.0
        %1513 = vmatpush1.xpose.msra.mxu0 0.0
        %1514 = vmatprep.subr.mxu0 0.0
        %1515 = vmatpush1.xpose.msra.mxu0 0.0
        %1516 = vmatprep.subr.mxu0 0.0
        %1517 = vmatpush1.xpose.msra.mxu0 0.0
        %1518 = vmatprep.subr.mxu0 0.0
        %1519 = vmatpush1.xpose.msra.mxu0 0.0
        %1520 = vmatprep.subr.mxu0 0.0
        %1521 = vmatpush1.xpose.msra.mxu0 0.0
        %1522 = vmatprep.subr.mxu0 0.0
        %1523 = vmatpush1.xpose.msra.mxu0 0.0
        %1524 = vmatprep.subr.mxu0 0.0
        %1525 = vmatpush1.xpose.msra.mxu0 0.0
        %1526 = vmatprep.subr.mxu0 0.0
        %1527 = vmatpush1.xpose.msra.mxu0 0.0
        %1528 = vmatprep.subr.mxu0 0.0
        %1529 = vmatpush1.xpose.msra.mxu0 0.0
        %1530 = vmatprep.subr.mxu0 0.0
        %1531 = vmatpush1.xpose.msra.mxu0 0.0
        %1532 = vmatprep.subr.mxu0 0.0
        %1533 = vmatpush1.xpose.msra.mxu0 0.0
        %1534 = vmatprep.mubr.f32.mxu0 0.0
        %1535 = vmatmul.mubr.f32.gmra.mrb[0].mxu0 %v1458
        %v1536 = vpop.f32.mrb[0].mxu0
        %v1537 = vadd.f32 0.0, %v1536
        %v1538 = vpop.f32.mrb[0].mxu0
        %1539 = vmatprep.mubr.f32.mxu0 0.0
        %1540 = vmatmul.mubr.f32.gmra.mrb[0].mxu0 %v1460
        %v1541 = vpop.f32.mrb[0].mxu0
        %v1542 = vadd.f32 0.0, %v1541
        %v1543 = vpop.f32.mrb[0].mxu0
        %1544 = vmatprep.mubr.f32.mxu0 0.0
        %1545 = vmatmul.mubr.f32.gmra.mrb[0].mxu0 %v1462
        %v1546 = vpop.f32.mrb[0].mxu0
        %v1547 = vadd.f32 0.0, %v1546
        %v1548 = vpop.f32.mrb[0].mxu0
        %1549 = vdwg.mxu0
        %v1550 = vsel %vm1318, %v1537, -inf
        %1551 = vmax.xlane.f32.xlu0 %v1550
        %v1552 = vpop.xlane.xlu0 %1551
        %v1553 = vsel %vm1318, %v1542, -inf
        %1554 = vmax.xlane.f32.xlu0 %v1553
        %v1555 = vpop.xlane.xlu0 %1554
        %v1556 = vsel %vm1325, %v1547, -inf
        %1557 = vmax.xlane.f32.xlu0 %v1556
        %v1558 = vpop.xlane.xlu0 %1557
        %v1559 = vsub.f32 %v1537, %v1552
        %v1560 = vsub.f32 %v1542, %v1555
        %v1561 = vsub.f32 %v1547, %v1558
        %v1562 = vmul.f32 %v1559, 1.442695
        %v1563 = vpow.pop %v1562
        %v1564 = vmul.f32 %v1560, 1.442695
        %v1565 = vpow.pop %v1564
        %v1566 = vmul.f32 %v1561, 1.442695
        %v1567 = vpow.pop %v1566
        %v1568 = vsel %vm1318, %v1563, 0.0
        %1569 = vadd.xlane.f32.xlu0 %v1568
        %v1570 = vpop.xlane.xlu0 %1569
        %v1571 = vsel %vm1318, %v1565, 0.0
        %1572 = vadd.xlane.f32.xlu0 %v1571
        %v1573 = vpop.xlane.xlu0 %1572
        %v1574 = vsel %vm1325, %v1567, 0.0
        %1575 = vadd.xlane.f32.xlu0 %v1574
        %v1576 = vpop.xlane.xlu0 %1575
        %v1577 = vrcp.pop %v1570
        %v1578 = vrcp.pop %v1573
        %v1579 = vrcp.pop %v1576
        %v1580 = vmul.f32 %v1563, %v1577
        %v1581 = vmul.f32 %v1565, %v1578
        %v1582 = vmul.f32 %v1567, %v1579
        %1585 = vrot.lane.b32.xlu0 %v1196, 112
        %v1586 = vpop.permute.xlu0 %1585
        %1587 = vrot.lane.b32.xlu0 %v1202, 112
        %v1588 = vpop.permute.xlu0 %1587
        %1589 = vrot.lane.b32.xlu0 %v1208, 112
        %v1590 = vpop.permute.xlu0 %1589
        %v1594 = vsel %vm1318, %v1580, 0
        %v1597 = vsel %vm1318, %v1581, 0
        %v1600 = vsel %vm1318, %v1582, 0
        %v1602 = vsel %vm1362, %v1590, 0
        %1604 = vmatprep.subr.mxu0 0.0
        %1605 = vmatpush1.msra.mxu0 %v1586
        %1606 = vmatprep.subr.mxu0 0.0
        %1607 = vmatpush1.msra.mxu0 %v1588
        %1608 = vmatprep.subr.mxu0 0.0
        %1609 = vmatpush1.msra.mxu0 %v1602
        %1610 = vmatprep.subr.mxu0 0.0
        %1611 = vmatpush1.msra.mxu0 0.0
        %1612 = vmatprep.subr.mxu0 0.0
        %1613 = vmatpush1.msra.mxu0 0.0
        %1614 = vmatprep.subr.mxu0 0.0
        %1615 = vmatpush1.msra.mxu0 0.0
        %1616 = vmatprep.subr.mxu0 0.0
        %1617 = vmatpush1.msra.mxu0 0.0
        %1618 = vmatprep.subr.mxu0 0.0
        %1619 = vmatpush1.msra.mxu0 0.0
        %1620 = vmatprep.subr.mxu0 0.0
        %1621 = vmatpush1.msra.mxu0 0.0
        %1622 = vmatprep.subr.mxu0 0.0
        %1623 = vmatpush1.msra.mxu0 0.0
        %1624 = vmatprep.subr.mxu0 0.0
        %1625 = vmatpush1.msra.mxu0 0.0
        %1626 = vmatprep.subr.mxu0 0.0
        %1627 = vmatpush1.msra.mxu0 0.0
        %1628 = vmatprep.subr.mxu0 0.0
        %1629 = vmatpush1.msra.mxu0 0.0
        %1630 = vmatprep.subr.mxu0 0.0
        %1631 = vmatpush1.msra.mxu0 0.0
        %1632 = vmatprep.subr.mxu0 0.0
        %1633 = vmatpush1.msra.mxu0 0.0
        %1634 = vmatprep.subr.mxu0 0.0
        %1635 = vmatpush1.msra.mxu0 0.0
        %1636 = vmatprep.subr.mxu0 0.0
        %1637 = vmatpush1.msra.mxu0 0.0
        %1638 = vmatprep.subr.mxu0 0.0
        %1639 = vmatpush1.msra.mxu0 0.0
        %1640 = vmatprep.subr.mxu0 0.0
        %1641 = vmatpush1.msra.mxu0 0.0
        %1642 = vmatprep.subr.mxu0 0.0
        %1643 = vmatpush1.msra.mxu0 0.0
        %1644 = vmatprep.subr.mxu0 0.0
        %1645 = vmatpush1.msra.mxu0 0.0
        %1646 = vmatprep.subr.mxu0 0.0
        %1647 = vmatpush1.msra.mxu0 0.0
        %1648 = vmatprep.subr.mxu0 0.0
        %1649 = vmatpush1.msra.mxu0 0.0
        %1650 = vmatprep.subr.mxu0 0.0
        %1651 = vmatpush1.msra.mxu0 0.0
        %1652 = vmatprep.subr.mxu0 0.0
        %1653 = vmatpush1.msra.mxu0 0.0
        %1654 = vmatprep.subr.mxu0 0.0
        %1655 = vmatpush1.msra.mxu0 0.0
        %1656 = vmatprep.subr.mxu0 0.0
        %1657 = vmatpush1.msra.mxu0 0.0
        %1658 = vmatprep.subr.mxu0 0.0
        %1659 = vmatpush1.msra.mxu0 0.0
        %1660 = vmatprep.subr.mxu0 0.0
        %1661 = vmatpush1.msra.mxu0 0.0
        %1662 = vmatprep.subr.mxu0 0.0
        %1663 = vmatpush1.msra.mxu0 0.0
        %1664 = vmatprep.subr.mxu0 0.0
        %1665 = vmatpush1.msra.mxu0 0.0
        %1666 = vmatprep.subr.mxu0 0.0
        %1667 = vmatpush1.msra.mxu0 0.0
        %1668 = vmatprep.mubr.f32.mxu0 0.0
        %1669 = vmatmul.mubr.f32.gmra.mrb[0].mxu0 %v1594
        %v1670 = vpop.f32.mrb[0].mxu0
        %v1671 = vadd.f32 0.0, %v1670
        %v1672 = vpop.f32.mrb[0].mxu0
        %1673 = vmatprep.mubr.f32.mxu0 0.0
        %1674 = vmatmul.mubr.f32.gmra.mrb[0].mxu0 %v1597
        %v1675 = vpop.f32.mrb[0].mxu0
        %v1676 = vadd.f32 0.0, %v1675
        %v1677 = vpop.f32.mrb[0].mxu0
        %1678 = vmatprep.mubr.f32.mxu0 0.0
        %1679 = vmatmul.mubr.f32.gmra.mrb[0].mxu0 %v1600
        %v1680 = vpop.f32.mrb[0].mxu0
        %v1681 = vadd.f32 0.0, %v1680
        %v1682 = vpop.f32.mrb[0].mxu0
        %1683 = vdwg.mxu0
        %1684 = vrot.lane.b32.xlu0 %v1210, 96
        %v1685 = vpop.permute.xlu0 %1684
        %1686 = vrot.lane.b32.xlu0 %v1211, 96
        %v1687 = vpop.permute.xlu0 %1686
        %1688 = vrot.lane.b32.xlu0 %v1212, 96
        %v1689 = vpop.permute.xlu0 %1688
        %1690 = vrot.lane.b32.xlu0 %v1194, 32
        %v1691 = vpop.permute.xlu0 %1690
        %1692 = vrot.lane.b32.xlu0 %v1200, 32
        %v1693 = vpop.permute.xlu0 %1692
        %1694 = vrot.lane.b32.xlu0 %v1206, 32
        %v1695 = vpop.permute.xlu0 %1694
        %v1696 = vsel %vm1222, %v1685, 0
        %v1698 = vsel %vm1222, %v1687, 0
        %v1700 = vsel %vm1222, %v1689, 0
        %v1702 = vsel %vm1222, %v1691, 0
        %v1704 = vsel %vm1222, %v1693, 0
        %v1706 = vsel %vm1222, %v1695, 0
        %1708 = vmatprep.subr.mxu0 0.0
        %1709 = vmatpush1.xpose.msra.mxu0 %v1702
        %1710 = vmatprep.subr.mxu0 0.0
        %1711 = vmatpush1.xpose.msra.mxu0 %v1704
        %1712 = vmatprep.subr.mxu0 0.0
        %1713 = vmatpush1.xpose.msra.mxu0 %v1706
        %1714 = vmatprep.subr.mxu0 0.0
        %1715 = vmatpush1.xpose.msra.mxu0 0.0
        %1716 = vmatprep.subr.mxu0 0.0
        %1717 = vmatpush1.xpose.msra.mxu0 0.0
        %1718 = vmatprep.subr.mxu0 0.0
        %1719 = vmatpush1.xpose.msra.mxu0 0.0
        %1720 = vmatprep.subr.mxu0 0.0
        %1721 = vmatpush1.xpose.msra.mxu0 0.0
        %1722 = vmatprep.subr.mxu0 0.0
        %1723 = vmatpush1.xpose.msra.mxu0 0.0
        %1724 = vmatprep.subr.mxu0 0.0
        %1725 = vmatpush1.xpose.msra.mxu0 0.0
        %1726 = vmatprep.subr.mxu0 0.0
        %1727 = vmatpush1.xpose.msra.mxu0 0.0
        %1728 = vmatprep.subr.mxu0 0.0
        %1729 = vmatpush1.xpose.msra.mxu0 0.0
        %1730 = vmatprep.subr.mxu0 0.0
        %1731 = vmatpush1.xpose.msra.mxu0 0.0
        %1732 = vmatprep.subr.mxu0 0.0
        %1733 = vmatpush1.xpose.msra.mxu0 0.0
        %1734 = vmatprep.subr.mxu0 0.0
        %1735 = vmatpush1.xpose.msra.mxu0 0.0
        %1736 = vmatprep.subr.mxu0 0.0
        %1737 = vmatpush1.xpose.msra.mxu0 0.0
        %1738 = vmatprep.subr.mxu0 0.0
        %1739 = vmatpush1.xpose.msra.mxu0 0.0
        %1740 = vmatprep.subr.mxu0 0.0
        %1741 = vmatpush1.xpose.msra.mxu0 0.0
        %1742 = vmatprep.subr.mxu0 0.0
        %1743 = vmatpush1.xpose.msra.mxu0 0.0
        %1744 = vmatprep.subr.mxu0 0.0
        %1745 = vmatpush1.xpose.msra.mxu0 0.0
        %1746 = vmatprep.subr.mxu0 0.0
        %1747 = vmatpush1.xpose.msra.mxu0 0.0
        %1748 = vmatprep.subr.mxu0 0.0
        %1749 = vmatpush1.xpose.msra.mxu0 0.0
        %1750 = vmatprep.subr.mxu0 0.0
        %1751 = vmatpush1.xpose.msra.mxu0 0.0
        %1752 = vmatprep.subr.mxu0 0.0
        %1753 = vmatpush1.xpose.msra.mxu0 0.0
        %1754 = vmatprep.subr.mxu0 0.0
        %1755 = vmatpush1.xpose.msra.mxu0 0.0
        %1756 = vmatprep.subr.mxu0 0.0
        %1757 = vmatpush1.xpose.msra.mxu0 0.0
        %1758 = vmatprep.subr.mxu0 0.0
        %1759 = vmatpush1.xpose.msra.mxu0 0.0
        %1760 = vmatprep.subr.mxu0 0.0
        %1761 = vmatpush1.xpose.msra.mxu0 0.0
        %1762 = vmatprep.subr.mxu0 0.0
        %1763 = vmatpush1.xpose.msra.mxu0 0.0
        %1764 = vmatprep.subr.mxu0 0.0
        %1765 = vmatpush1.xpose.msra.mxu0 0.0
        %1766 = vmatprep.subr.mxu0 0.0
        %1767 = vmatpush1.xpose.msra.mxu0 0.0
        %1768 = vmatprep.subr.mxu0 0.0
        %1769 = vmatpush1.xpose.msra.mxu0 0.0
        %1770 = vmatprep.subr.mxu0 0.0
        %1771 = vmatpush1.xpose.msra.mxu0 0.0
        %1772 = vmatprep.mubr.f32.mxu0 0.0
        %1773 = vmatmul.mubr.f32.gmra.mrb[0].mxu0 %v1696
        %v1774 = vpop.f32.mrb[0].mxu0
        %v1775 = vadd.f32 0.0, %v1774
        %v1776 = vpop.f32.mrb[0].mxu0
        %1777 = vmatprep.mubr.f32.mxu0 0.0
        %1778 = vmatmul.mubr.f32.gmra.mrb[0].mxu0 %v1698
        %v1779 = vpop.f32.mrb[0].mxu0
        %v1780 = vadd.f32 0.0, %v1779
        %v1781 = vpop.f32.mrb[0].mxu0
        %1782 = vmatprep.mubr.f32.mxu0 0.0
        %1783 = vmatmul.mubr.f32.gmra.mrb[0].mxu0 %v1700
        %v1784 = vpop.f32.mrb[0].mxu0
        %v1785 = vadd.f32 0.0, %v1784
        %v1786 = vpop.f32.mrb[0].mxu0
        %1787 = vdwg.mxu0
        %v1788 = vsel %vm1318, %v1775, -inf
        %1789 = vmax.xlane.f32.xlu0 %v1788
        %v1790 = vpop.xlane.xlu0 %1789
        %v1791 = vsel %vm1318, %v1780, -inf
        %1792 = vmax.xlane.f32.xlu0 %v1791
        %v1793 = vpop.xlane.xlu0 %1792
        %v1794 = vsel %vm1325, %v1785, -inf
        %1795 = vmax.xlane.f32.xlu0 %v1794
        %v1796 = vpop.xlane.xlu0 %1795
        %v1797 = vsub.f32 %v1775, %v1790
        %v1798 = vsub.f32 %v1780, %v1793
        %v1799 = vsub.f32 %v1785, %v1796
        %v1800 = vmul.f32 %v1797, 1.442695
        %v1801 = vpow.pop %v1800
        %v1802 = vmul.f32 %v1798, 1.442695
        %v1803 = vpow.pop %v1802
        %v1804 = vmul.f32 %v1799, 1.442695
        %v1805 = vpow.pop %v1804
        %v1806 = vsel %vm1318, %v1801, 0.0
        %1807 = vadd.xlane.f32.xlu0 %v1806
        %v1808 = vpop.xlane.xlu0 %1807
        %v1809 = vsel %vm1318, %v1803, 0.0
        %1810 = vadd.xlane.f32.xlu0 %v1809
        %v1811 = vpop.xlane.xlu0 %1810
        %v1812 = vsel %vm1325, %v1805, 0.0
        %1813 = vadd.xlane.f32.xlu0 %v1812
        %v1814 = vpop.xlane.xlu0 %1813
        %v1815 = vrcp.pop %v1808
        %v1816 = vrcp.pop %v1811
        %v1817 = vrcp.pop %v1814
        %v1818 = vmul.f32 %v1801, %v1815
        %v1819 = vmul.f32 %v1803, %v1816
        %v1820 = vmul.f32 %v1805, %v1817
        %1821 = vrot.lane.b32.xlu0 %v1196, 96
        %v1822 = vpop.permute.xlu0 %1821
        %1823 = vrot.lane.b32.xlu0 %v1202, 96
        %v1824 = vpop.permute.xlu0 %1823
        %1825 = vrot.lane.b32.xlu0 %v1208, 96
        %v1826 = vpop.permute.xlu0 %1825
        %v1830 = vsel %vm1318, %v1818, 0
        %v1833 = vsel %vm1318, %v1819, 0
        %v1836 = vsel %vm1318, %v1820, 0
        %v1838 = vsel %vm1362, %v1826, 0
        %1840 = vmatprep.subr.mxu0 0.0
        %1841 = vmatpush1.msra.mxu0 %v1822
        %1842 = vmatprep.subr.mxu0 0.0
        %1843 = vmatpush1.msra.mxu0 %v1824
        %1844 = vmatprep.subr.mxu0 0.0
        %1845 = vmatpush1.msra.mxu0 %v1838
        %1846 = vmatprep.subr.mxu0 0.0
        %1847 = vmatpush1.msra.mxu0 0.0
        %1848 = vmatprep.subr.mxu0 0.0
        %1849 = vmatpush1.msra.mxu0 0.0
        %1850 = vmatprep.subr.mxu0 0.0
        %1851 = vmatpush1.msra.mxu0 0.0
        %1852 = vmatprep.subr.mxu0 0.0
        %1853 = vmatpush1.msra.mxu0 0.0
        %1854 = vmatprep.subr.mxu0 0.0
        %1855 = vmatpush1.msra.mxu0 0.0
        %1856 = vmatprep.subr.mxu0 0.0
        %1857 = vmatpush1.msra.mxu0 0.0
        %1858 = vmatprep.subr.mxu0 0.0
        %1859 = vmatpush1.msra.mxu0 0.0
        %1860 = vmatprep.subr.mxu0 0.0
        %1861 = vmatpush1.msra.mxu0 0.0
        %1862 = vmatprep.subr.mxu0 0.0
        %1863 = vmatpush1.msra.mxu0 0.0
        %1864 = vmatprep.subr.mxu0 0.0
        %1865 = vmatpush1.msra.mxu0 0.0
        %1866 = vmatprep.subr.mxu0 0.0
        %1867 = vmatpush1.msra.mxu0 0.0
        %1868 = vmatprep.subr.mxu0 0.0
        %1869 = vmatpush1.msra.mxu0 0.0
        %1870 = vmatprep.subr.mxu0 0.0
        %1871 = vmatpush1.msra.mxu0 0.0
        %1872 = vmatprep.subr.mxu0 0.0
        %1873 = vmatpush1.msra.mxu0 0.0
        %1874 = vmatprep.subr.mxu0 0.0
        %1875 = vmatpush1.msra.mxu0 0.0
        %1876 = vmatprep.subr.mxu0 0.0
        %1877 = vmatpush1.msra.mxu0 0.0
        %1878 = vmatprep.subr.mxu0 0.0
        %1879 = vmatpush1.msra.mxu0 0.0
        %1880 = vmatprep.subr.mxu0 0.0
        %1881 = vmatpush1.msra.mxu0 0.0
        %1882 = vmatprep.subr.mxu0 0.0
        %1883 = vmatpush1.msra.mxu0 0.0
        %1884 = vmatprep.subr.mxu0 0.0
        %1885 = vmatpush1.msra.mxu0 0.0
        %1886 = vmatprep.subr.mxu0 0.0
        %1887 = vmatpush1.msra.mxu0 0.0
        %1888 = vmatprep.subr.mxu0 0.0
        %1889 = vmatpush1.msra.mxu0 0.0
        %1890 = vmatprep.subr.mxu0 0.0
        %1891 = vmatpush1.msra.mxu0 0.0
        %1892 = vmatprep.subr.mxu0 0.0
        %1893 = vmatpush1.msra.mxu0 0.0
        %1894 = vmatprep.subr.mxu0 0.0
        %1895 = vmatpush1.msra.mxu0 0.0
        %1896 = vmatprep.subr.mxu0 0.0
        %1897 = vmatpush1.msra.mxu0 0.0
        %1898 = vmatprep.subr.mxu0 0.0
        %1899 = vmatpush1.msra.mxu0 0.0
        %1900 = vmatprep.subr.mxu0 0.0
        %1901 = vmatpush1.msra.mxu0 0.0
        %1902 = vmatprep.subr.mxu0 0.0
        %1903 = vmatpush1.msra.mxu0 0.0
        %1904 = vmatprep.mubr.f32.mxu0 0.0
        %1905 = vmatmul.mubr.f32.gmra.mrb[0].mxu0 %v1830
        %v1906 = vpop.f32.mrb[0].mxu0
        %v1907 = vadd.f32 0.0, %v1906
        %v1908 = vpop.f32.mrb[0].mxu0
        %1909 = vmatprep.mubr.f32.mxu0 0.0
        %1910 = vmatmul.mubr.f32.gmra.mrb[0].mxu0 %v1833
        %v1911 = vpop.f32.mrb[0].mxu0
        %v1912 = vadd.f32 0.0, %v1911
        %v1913 = vpop.f32.mrb[0].mxu0
        %1914 = vmatprep.mubr.f32.mxu0 0.0
        %1915 = vmatmul.mubr.f32.gmra.mrb[0].mxu0 %v1836
        %v1916 = vpop.f32.mrb[0].mxu0
        %v1917 = vadd.f32 0.0, %v1916
        %v1918 = vpop.f32.mrb[0].mxu0
        %1919 = vdwg.mxu0
        %1920 = vrot.lane.b32.xlu0 %v1210, 80
        %v1921 = vpop.permute.xlu0 %1920
        %1922 = vrot.lane.b32.xlu0 %v1211, 80
        %v1923 = vpop.permute.xlu0 %1922
        %1924 = vrot.lane.b32.xlu0 %v1212, 80
        %v1925 = vpop.permute.xlu0 %1924
        %1926 = vrot.lane.b32.xlu0 %v1194, 16
        %v1927 = vpop.permute.xlu0 %1926
        %1928 = vrot.lane.b32.xlu0 %v1200, 16
        %v1929 = vpop.permute.xlu0 %1928
        %1930 = vrot.lane.b32.xlu0 %v1206, 16
        %v1931 = vpop.permute.xlu0 %1930
        %v1932 = vsel %vm1222, %v1921, 0
        %v1934 = vsel %vm1222, %v1923, 0
        %v1936 = vsel %vm1222, %v1925, 0
        %v1938 = vsel %vm1222, %v1927, 0
        %v1940 = vsel %vm1222, %v1929, 0
        %v1942 = vsel %vm1222, %v1931, 0
        %1944 = vmatprep.subr.mxu0 0.0
        %1945 = vmatpush1.xpose.msra.mxu0 %v1938
        %1946 = vmatprep.subr.mxu0 0.0
        %1947 = vmatpush1.xpose.msra.mxu0 %v1940
        %1948 = vmatprep.subr.mxu0 0.0
        %1949 = vmatpush1.xpose.msra.mxu0 %v1942
        %1950 = vmatprep.subr.mxu0 0.0
        %1951 = vmatpush1.xpose.msra.mxu0 0.0
        %1952 = vmatprep.subr.mxu0 0.0
        %1953 = vmatpush1.xpose.msra.mxu0 0.0
        %1954 = vmatprep.subr.mxu0 0.0
        %1955 = vmatpush1.xpose.msra.mxu0 0.0
        %1956 = vmatprep.subr.mxu0 0.0
        %1957 = vmatpush1.xpose.msra.mxu0 0.0
        %1958 = vmatprep.subr.mxu0 0.0
        %1959 = vmatpush1.xpose.msra.mxu0 0.0
        %1960 = vmatprep.subr.mxu0 0.0
        %1961 = vmatpush1.xpose.msra.mxu0 0.0
        %1962 = vmatprep.subr.mxu0 0.0
        %1963 = vmatpush1.xpose.msra.mxu0 0.0
        %1964 = vmatprep.subr.mxu0 0.0
        %1965 = vmatpush1.xpose.msra.mxu0 0.0
        %1966 = vmatprep.subr.mxu0 0.0
        %1967 = vmatpush1.xpose.msra.mxu0 0.0
        %1968 = vmatprep.subr.mxu0 0.0
        %1969 = vmatpush1.xpose.msra.mxu0 0.0
        %1970 = vmatprep.subr.mxu0 0.0
        %1971 = vmatpush1.xpose.msra.mxu0 0.0
        %1972 = vmatprep.subr.mxu0 0.0
        %1973 = vmatpush1.xpose.msra.mxu0 0.0
        %1974 = vmatprep.subr.mxu0 0.0
        %1975 = vmatpush1.xpose.msra.mxu0 0.0
        %1976 = vmatprep.subr.mxu0 0.0
        %1977 = vmatpush1.xpose.msra.mxu0 0.0
        %1978 = vmatprep.subr.mxu0 0.0
        %1979 = vmatpush1.xpose.msra.mxu0 0.0
        %1980 = vmatprep.subr.mxu0 0.0
        %1981 = vmatpush1.xpose.msra.mxu0 0.0
        %1982 = vmatprep.subr.mxu0 0.0
        %1983 = vmatpush1.xpose.msra.mxu0 0.0
        %1984 = vmatprep.subr.mxu0 0.0
        %1985 = vmatpush1.xpose.msra.mxu0 0.0
        %1986 = vmatprep.subr.mxu0 0.0
        %1987 = vmatpush1.xpose.msra.mxu0 0.0
        %1988 = vmatprep.subr.mxu0 0.0
        %1989 = vmatpush1.xpose.msra.mxu0 0.0
        %1990 = vmatprep.subr.mxu0 0.0
        %1991 = vmatpush1.xpose.msra.mxu0 0.0
        %1992 = vmatprep.subr.mxu0 0.0
        %1993 = vmatpush1.xpose.msra.mxu0 0.0
        %1994 = vmatprep.subr.mxu0 0.0
        %1995 = vmatpush1.xpose.msra.mxu0 0.0
        %1996 = vmatprep.subr.mxu0 0.0
        %1997 = vmatpush1.xpose.msra.mxu0 0.0
        %1998 = vmatprep.subr.mxu0 0.0
        %1999 = vmatpush1.xpose.msra.mxu0 0.0
        %2000 = vmatprep.subr.mxu0 0.0
        %2001 = vmatpush1.xpose.msra.mxu0 0.0
        %2002 = vmatprep.subr.mxu0 0.0
        %2003 = vmatpush1.xpose.msra.mxu0 0.0
        %2004 = vmatprep.subr.mxu0 0.0
        %2005 = vmatpush1.xpose.msra.mxu0 0.0
        %2006 = vmatprep.subr.mxu0 0.0
        %2007 = vmatpush1.xpose.msra.mxu0 0.0
        %2008 = vmatprep.mubr.f32.mxu0 0.0
        %2009 = vmatmul.mubr.f32.gmra.mrb[0].mxu0 %v1932
        %v2010 = vpop.f32.mrb[0].mxu0
        %v2011 = vadd.f32 0.0, %v2010
        %v2012 = vpop.f32.mrb[0].mxu0
        %2013 = vmatprep.mubr.f32.mxu0 0.0
        %2014 = vmatmul.mubr.f32.gmra.mrb[0].mxu0 %v1934
        %v2015 = vpop.f32.mrb[0].mxu0
        %v2016 = vadd.f32 0.0, %v2015
        %v2017 = vpop.f32.mrb[0].mxu0
        %2018 = vmatprep.mubr.f32.mxu0 0.0
        %2019 = vmatmul.mubr.f32.gmra.mrb[0].mxu0 %v1936
        %v2020 = vpop.f32.mrb[0].mxu0
        %v2021 = vadd.f32 0.0, %v2020
        %v2022 = vpop.f32.mrb[0].mxu0
        %2023 = vdwg.mxu0
        %v2024 = vsel %vm1318, %v2011, -inf
        %2025 = vmax.xlane.f32.xlu0 %v2024
        %v2026 = vpop.xlane.xlu0 %2025
        %v2027 = vsel %vm1318, %v2016, -inf
        %2028 = vmax.xlane.f32.xlu0 %v2027
        %v2029 = vpop.xlane.xlu0 %2028
        %v2030 = vsel %vm1325, %v2021, -inf
        %2031 = vmax.xlane.f32.xlu0 %v2030
        %v2032 = vpop.xlane.xlu0 %2031
        %v2033 = vsub.f32 %v2011, %v2026
        %v2034 = vsub.f32 %v2016, %v2029
        %v2035 = vsub.f32 %v2021, %v2032
        %v2036 = vmul.f32 %v2033, 1.442695
        %v2037 = vpow.pop %v2036
        %v2038 = vmul.f32 %v2034, 1.442695
        %v2039 = vpow.pop %v2038
        %v2040 = vmul.f32 %v2035, 1.442695
        %v2041 = vpow.pop %v2040
        %v2042 = vsel %vm1318, %v2037, 0.0
        %2043 = vadd.xlane.f32.xlu0 %v2042
        %v2044 = vpop.xlane.xlu0 %2043
        %v2045 = vsel %vm1318, %v2039, 0.0
        %2046 = vadd.xlane.f32.xlu0 %v2045
        %v2047 = vpop.xlane.xlu0 %2046
        %v2048 = vsel %vm1325, %v2041, 0.0
        %2049 = vadd.xlane.f32.xlu0 %v2048
        %v2050 = vpop.xlane.xlu0 %2049
        %v2051 = vrcp.pop %v2044
        %v2052 = vrcp.pop %v2047
        %v2053 = vrcp.pop %v2050
        %v2054 = vmul.f32 %v2037, %v2051
        %v2055 = vmul.f32 %v2039, %v2052
        %v2056 = vmul.f32 %v2041, %v2053
        %2057 = vrot.lane.b32.xlu0 %v1196, 80
        %v2058 = vpop.permute.xlu0 %2057
        %2059 = vrot.lane.b32.xlu0 %v1202, 80
        %v2060 = vpop.permute.xlu0 %2059
        %2061 = vrot.lane.b32.xlu0 %v1208, 80
        %v2062 = vpop.permute.xlu0 %2061
        %v2066 = vsel %vm1318, %v2054, 0
        %v2069 = vsel %vm1318, %v2055, 0
        %v2072 = vsel %vm1318, %v2056, 0
        %v2074 = vsel %vm1362, %v2062, 0
        %2076 = vmatprep.subr.mxu0 0.0
        %2077 = vmatpush1.msra.mxu0 %v2058
        %2078 = vmatprep.subr.mxu0 0.0
        %2079 = vmatpush1.msra.mxu0 %v2060
        %2080 = vmatprep.subr.mxu0 0.0
        %2081 = vmatpush1.msra.mxu0 %v2074
        %2082 = vmatprep.subr.mxu0 0.0
        %2083 = vmatpush1.msra.mxu0 0.0
        %2084 = vmatprep.subr.mxu0 0.0
        %2085 = vmatpush1.msra.mxu0 0.0
        %2086 = vmatprep.subr.mxu0 0.0
        %2087 = vmatpush1.msra.mxu0 0.0
        %2088 = vmatprep.subr.mxu0 0.0
        %2089 = vmatpush1.msra.mxu0 0.0
        %2090 = vmatprep.subr.mxu0 0.0
        %2091 = vmatpush1.msra.mxu0 0.0
        %2092 = vmatprep.subr.mxu0 0.0
        %2093 = vmatpush1.msra.mxu0 0.0
        %2094 = vmatprep.subr.mxu0 0.0
        %2095 = vmatpush1.msra.mxu0 0.0
        %2096 = vmatprep.subr.mxu0 0.0
        %2097 = vmatpush1.msra.mxu0 0.0
        %2098 = vmatprep.subr.mxu0 0.0
        %2099 = vmatpush1.msra.mxu0 0.0
        %2100 = vmatprep.subr.mxu0 0.0
        %2101 = vmatpush1.msra.mxu0 0.0
        %2102 = vmatprep.subr.mxu0 0.0
        %2103 = vmatpush1.msra.mxu0 0.0
        %2104 = vmatprep.subr.mxu0 0.0
        %2105 = vmatpush1.msra.mxu0 0.0
        %2106 = vmatprep.subr.mxu0 0.0
        %2107 = vmatpush1.msra.mxu0 0.0
        %2108 = vmatprep.subr.mxu0 0.0
        %2109 = vmatpush1.msra.mxu0 0.0
        %2110 = vmatprep.subr.mxu0 0.0
        %2111 = vmatpush1.msra.mxu0 0.0
        %2112 = vmatprep.subr.mxu0 0.0
        %2113 = vmatpush1.msra.mxu0 0.0
        %2114 = vmatprep.subr.mxu0 0.0
        %2115 = vmatpush1.msra.mxu0 0.0
        %2116 = vmatprep.subr.mxu0 0.0
        %2117 = vmatpush1.msra.mxu0 0.0
        %2118 = vmatprep.subr.mxu0 0.0
        %2119 = vmatpush1.msra.mxu0 0.0
        %2120 = vmatprep.subr.mxu0 0.0
        %2121 = vmatpush1.msra.mxu0 0.0
        %2122 = vmatprep.subr.mxu0 0.0
        %2123 = vmatpush1.msra.mxu0 0.0
        %2124 = vmatprep.subr.mxu0 0.0
        %2125 = vmatpush1.msra.mxu0 0.0
        %2126 = vmatprep.subr.mxu0 0.0
        %2127 = vmatpush1.msra.mxu0 0.0
        %2128 = vmatprep.subr.mxu0 0.0
        %2129 = vmatpush1.msra.mxu0 0.0
        %2130 = vmatprep.subr.mxu0 0.0
        %2131 = vmatpush1.msra.mxu0 0.0
        %2132 = vmatprep.subr.mxu0 0.0
        %2133 = vmatpush1.msra.mxu0 0.0
        %2134 = vmatprep.subr.mxu0 0.0
        %2135 = vmatpush1.msra.mxu0 0.0
        %2136 = vmatprep.subr.mxu0 0.0
        %2137 = vmatpush1.msra.mxu0 0.0
        %2138 = vmatprep.subr.mxu0 0.0
        %2139 = vmatpush1.msra.mxu0 0.0
        %2140 = vmatprep.mubr.f32.mxu0 0.0
        %2141 = vmatmul.mubr.f32.gmra.mrb[0].mxu0 %v2066
        %v2142 = vpop.f32.mrb[0].mxu0
        %v2143 = vadd.f32 0.0, %v2142
        %v2144 = vpop.f32.mrb[0].mxu0
        %2145 = vmatprep.mubr.f32.mxu0 0.0
        %2146 = vmatmul.mubr.f32.gmra.mrb[0].mxu0 %v2069
        %v2147 = vpop.f32.mrb[0].mxu0
        %v2148 = vadd.f32 0.0, %v2147
        %v2149 = vpop.f32.mrb[0].mxu0
        %2150 = vmatprep.mubr.f32.mxu0 0.0
        %2151 = vmatmul.mubr.f32.gmra.mrb[0].mxu0 %v2072
        %v2152 = vpop.f32.mrb[0].mxu0
        %v2153 = vadd.f32 0.0, %v2152
        %v2154 = vpop.f32.mrb[0].mxu0
        %2155 = vdwg.mxu0
        %2159 = vrot.lane.b32.xlu0 %v1671, 16
        %v2160 = vpop.permute.xlu0 %2159
        %2161 = vrot.lane.b32.xlu0 %v1676, 16
        %v2162 = vpop.permute.xlu0 %2161
        %2163 = vrot.lane.b32.xlu0 %v1681, 16
        %v2164 = vpop.permute.xlu0 %2163
        %2171 = vrot.lane.b32.xlu0 %v1907, 32
        %v2172 = vpop.permute.xlu0 %2171
        %2173 = vrot.lane.b32.xlu0 %v1912, 32
        %v2174 = vpop.permute.xlu0 %2173
        %2175 = vrot.lane.b32.xlu0 %v1917, 32
        %v2176 = vpop.permute.xlu0 %2175
        %2183 = vrot.lane.b32.xlu0 %v2143, 48
        %v2184 = vpop.permute.xlu0 %2183
        %2185 = vrot.lane.b32.xlu0 %v2148, 48
        %v2186 = vpop.permute.xlu0 %2185
        %2187 = vrot.lane.b32.xlu0 %v2153, 48
        %v2188 = vpop.permute.xlu0 %2187
        %v2192 = vsel %vm1222, %v1433, %v2160
        %v2193 = vsel %vm1222, %v1438, %v2162
        %v2194 = vsel %vm1222, %v1443, %v2164
        %vm2195 = vcmask 261120
        %v2196 = vsel %vm2195, %v2192, %v2172
        %v2197 = vsel %vm2195, %v2193, %v2174
        %v2198 = vsel %vm2195, %v2194, %v2176
        %v2199 = vsel %vm1034, %v2196, %v2184
        %v2200 = vsel %vm1034, %v2197, %v2186
        %v2201 = vsel %vm1034, %v2198, %v2188
        %v2202 = vld [vmem:[%s780] sm:$0xff]
        %v2203 = vld [vmem:[%s780 + $0x8] sm:$0xff]
        %v2204 = vld [vmem:[%s780 + $0x10] sm:$0xff]
        %v2205 = vld [vmem:[%s780 + $0x18] sm:$0xff]
        %v2206 = vld [vmem:[%s780 + $0x20] sm:$0xff]
        %v2207 = vld [vmem:[%s780 + $0x28] sm:$0xff]
        %v2208 = vld [vmem:[%s780 + $0x30] sm:$0xff]
        %v2209 = vld [vmem:[%s780 + $0x38] sm:$0xff]
        %vm2210 = vcmask 523264
        %v2212 = vsel %vm2210, %v2199, 0
        %v2215 = vsel %vm2210, %v2200, 0
        %v2218 = vsel %vm2210, %v2201, 0
        %2220 = vmatprep.subr.mxu0 0.0
        %2221 = vmatpush1.msra.mxu0 %v2202
        %2222 = vmatprep.subr.mxu0 0.0
        %2223 = vmatpush1.msra.mxu0 %v2203
        %2224 = vmatprep.subr.mxu0 0.0
        %2225 = vmatpush1.msra.mxu0 %v2204
        %2226 = vmatprep.subr.mxu0 0.0
        %2227 = vmatpush1.msra.mxu0 %v2205
        %2228 = vmatprep.subr.mxu0 0.0
        %2229 = vmatpush1.msra.mxu0 %v2206
        %2230 = vmatprep.subr.mxu0 0.0
        %2231 = vmatpush1.msra.mxu0 %v2207
        %2232 = vmatprep.subr.mxu0 0.0
        %2233 = vmatpush1.msra.mxu0 %v2208
        %2234 = vmatprep.subr.mxu0 0.0
        %2235 = vmatpush1.msra.mxu0 %v2209
        %2236 = vmatprep.subr.mxu0 0.0
        %2237 = vmatpush1.msra.mxu0 0.0
        %2238 = vmatprep.subr.mxu0 0.0
        %2239 = vmatpush1.msra.mxu0 0.0
        %2240 = vmatprep.subr.mxu0 0.0
        %2241 = vmatpush1.msra.mxu0 0.0
        %2242 = vmatprep.subr.mxu0 0.0
        %2243 = vmatpush1.msra.mxu0 0.0
        %2244 = vmatprep.subr.mxu0 0.0
        %2245 = vmatpush1.msra.mxu0 0.0
        %2246 = vmatprep.subr.mxu0 0.0
        %2247 = vmatpush1.msra.mxu0 0.0
        %2248 = vmatprep.subr.mxu0 0.0
        %2249 = vmatpush1.msra.mxu0 0.0
        %2250 = vmatprep.subr.mxu0 0.0
        %2251 = vmatpush1.msra.mxu0 0.0
        %2252 = vmatprep.subr.mxu0 0.0
        %2253 = vmatpush1.msra.mxu0 0.0
        %2254 = vmatprep.subr.mxu0 0.0
        %2255 = vmatpush1.msra.mxu0 0.0
        %2256 = vmatprep.subr.mxu0 0.0
        %2257 = vmatpush1.msra.mxu0 0.0
        %2258 = vmatprep.subr.mxu0 0.0
        %2259 = vmatpush1.msra.mxu0 0.0
        %2260 = vmatprep.subr.mxu0 0.0
        %2261 = vmatpush1.msra.mxu0 0.0
        %2262 = vmatprep.subr.mxu0 0.0
        %2263 = vmatpush1.msra.mxu0 0.0
        %2264 = vmatprep.subr.mxu0 0.0
        %2265 = vmatpush1.msra.mxu0 0.0
        %2266 = vmatprep.subr.mxu0 0.0
        %2267 = vmatpush1.msra.mxu0 0.0
        %2268 = vmatprep.subr.mxu0 0.0
        %2269 = vmatpush1.msra.mxu0 0.0
        %2270 = vmatprep.subr.mxu0 0.0
        %2271 = vmatpush1.msra.mxu0 0.0
        %2272 = vmatprep.subr.mxu0 0.0
        %2273 = vmatpush1.msra.mxu0 0.0
        %2274 = vmatprep.subr.mxu0 0.0
        %2275 = vmatpush1.msra.mxu0 0.0
        %2276 = vmatprep.subr.mxu0 0.0
        %2277 = vmatpush1.msra.mxu0 0.0
        %2278 = vmatprep.subr.mxu0 0.0
        %2279 = vmatpush1.msra.mxu0 0.0
        %2280 = vmatprep.subr.mxu0 0.0
        %2281 = vmatpush1.msra.mxu0 0.0
        %2282 = vmatprep.subr.mxu0 0.0
        %2283 = vmatpush1.msra.mxu0 0.0
        %2284 = vmatprep.mubr.f32.mxu0 0.0
        %2285 = vmatmul.mubr.f32.gmra.mrb[0].mxu0 %v2212
        %v2286 = vpop.f32.mrb[0].mxu0
        %v2287 = vadd.f32 0.0, %v2286
        %v2288 = vpop.f32.mrb[0].mxu0
        %2289 = vmatprep.mubr.f32.mxu0 0.0
        %2290 = vmatmul.mubr.f32.gmra.mrb[0].mxu0 %v2215
        %v2291 = vpop.f32.mrb[0].mxu0
        %v2292 = vadd.f32 0.0, %v2291
        %v2293 = vpop.f32.mrb[0].mxu0
        %2294 = vmatprep.mubr.f32.mxu0 0.0
        %2295 = vmatmul.mubr.f32.gmra.mrb[0].mxu0 %v2218
        %v2296 = vpop.f32.mrb[0].mxu0
        %v2297 = vadd.f32 0.0, %v2296
        %v2298 = vpop.f32.mrb[0].mxu0
        %2299 = vdwg.mxu0
        %v2300 = vadd.f32 %v1029, %v2287
        %v2301 = vadd.f32 %v1030, %v2292
        %v2302 = vadd.f32 %v1031, %v2297
        %v2303 = vld [vmem:[%s783] sm:$0x1]
        %v2305 = vlaneseq
        %v2306 = vshrl.u32 %v2305, 7
        %v2307 = vsub.s32 0, %v2306
        %v2308 = vrot.slane %v2303, %v2307
        %v2310 = vadd.f32 %v2300, %v2308
        %v2311 = vadd.f32 %v2301, %v2308
        %v2312 = vadd.f32 %v2302, %v2308
        %v2313 = vld [vmem:[%s786] sm:$0x1]
        %v2314 = vld [vmem:[%s789] sm:$0x1]
        %v2315 = vsel %vm1034, %v2310, 0.0
        %2316 = vadd.xlane.f32.xlu0 %v2315
        %v2317 = vpop.xlane.xlu0 %2316
        %v2318 = vsel %vm1034, %v2311, 0.0
        %2319 = vadd.xlane.f32.xlu0 %v2318
        %v2320 = vpop.xlane.xlu0 %2319
        %v2321 = vsel %vm1041, %v2312, 0.0
        %2322 = vadd.xlane.f32.xlu0 %v2321
        %v2323 = vpop.xlane.xlu0 %2322
        %v2324 = vmul.f32 %v2317, %v1045
        %v2325 = vmul.f32 %v2320, %v1045
        %v2326 = vmul.f32 %v2323, %v1045
        %v2327 = vsub.f32 %v2310, %v2324
        %v2328 = vsub.f32 %v2311, %v2325
        %v2329 = vsub.f32 %v2312, %v2326
        %v2330 = vmul.f32 %v2327, %v2327
        %v2331 = vmul.f32 %v2328, %v2328
        %v2332 = vmul.f32 %v2329, %v2329
        %v2333 = vsel %vm1034, %v2330, 0.0
        %2334 = vadd.xlane.f32.xlu0 %v2333
        %v2335 = vpop.xlane.xlu0 %2334
        %v2336 = vsel %vm1034, %v2331, 0.0
        %2337 = vadd.xlane.f32.xlu0 %v2336
        %v2338 = vpop.xlane.xlu0 %2337
        %v2339 = vsel %vm1041, %v2332, 0.0
        %2340 = vadd.xlane.f32.xlu0 %v2339
        %v2341 = vpop.xlane.xlu0 %2340
        %v2342 = vmul.f32 %v2335, %v1045
        %v2343 = vmul.f32 %v2338, %v1045
        %v2344 = vmul.f32 %v2341, %v1045
        %v2345 = vadd.f32 %v2342, 1e-05
        %v2346 = vadd.f32 %v2343, 1e-05
        %v2347 = vadd.f32 %v2344, 1e-05
        %v2348 = vrsqrt.pop %v2345
        %v2349 = vrsqrt.pop %v2346
        %v2350 = vrsqrt.pop %v2347
        %v2351 = vmul.f32 %v2327, %v2348
        %v2352 = vmul.f32 %v2328, %v2349
        %v2353 = vmul.f32 %v2329, %v2350
        %v2355 = vlaneseq
        %v2356 = vshrl.u32 %v2355, 7
        %v2357 = vsub.s32 0, %v2356
        %v2358 = vrot.slane %v2313, %v2357
        %v2360 = vmul.f32 %v2351, %v2358
        %v2361 = vmul.f32 %v2352, %v2358
        %v2362 = vmul.f32 %v2353, %v2358
        %v2364 = vlaneseq
        %v2365 = vshrl.u32 %v2364, 7
        %v2366 = vsub.s32 0, %v2365
        %v2367 = vrot.slane %v2314, %v2366
        %v2369 = vadd.f32 %v2360, %v2367
        %v2370 = vadd.f32 %v2361, %v2367
        %v2371 = vadd.f32 %v2362, %v2367
        %v2372 = vld [vmem:[%s794] sm:$0xff]
        %v2373 = vld [vmem:[%s794 + $0x8] sm:$0xff]
        %v2374 = vld [vmem:[%s794 + $0x10] sm:$0xff]
        %v2375 = vld [vmem:[%s794 + $0x18] sm:$0xff]
        %v2376 = vld [vmem:[%s794 + $0x20] sm:$0xff]
        %v2377 = vld [vmem:[%s794 + $0x28] sm:$0xff]
        %v2378 = vld [vmem:[%s797] sm:$0x1]
        %v2380 = vlaneseq
        %v2381 = vshrl.u32 %v2380, 7
        %v2382 = vsub.s32 0, %v2381
        %v2383 = vrot.slane %v2378, %v2382
        %v2386 = vsel %vm1034, %v2369, 0
        %v2389 = vsel %vm1034, %v2370, 0
        %v2392 = vsel %vm1034, %v2371, 0
        %2394 = vmatprep.subr.mxu0 0.0
        %2395 = vmatpush1.msra.mxu0 %v2372
        %2396 = vmatprep.subr.mxu0 0.0
        %2397 = vmatpush1.msra.mxu0 %v2373
        %2398 = vmatprep.subr.mxu0 0.0
        %2399 = vmatpush1.msra.mxu0 %v2374
        %2400 = vmatprep.subr.mxu0 0.0
        %2401 = vmatpush1.msra.mxu0 %v2375
        %2402 = vmatprep.subr.mxu0 0.0
        %2403 = vmatpush1.msra.mxu0 %v2376
        %2404 = vmatprep.subr.mxu0 0.0
        %2405 = vmatpush1.msra.mxu0 %v2377
        %2406 = vmatprep.subr.mxu0 0.0
        %2407 = vmatpush1.msra.mxu0 0.0
        %2408 = vmatprep.subr.mxu0 0.0
        %2409 = vmatpush1.msra.mxu0 0.0
        %2410 = vmatprep.subr.mxu0 0.0
        %2411 = vmatpush1.msra.mxu0 0.0
        %2412 = vmatprep.subr.mxu0 0.0
        %2413 = vmatpush1.msra.mxu0 0.0
        %2414 = vmatprep.subr.mxu0 0.0
        %2415 = vmatpush1.msra.mxu0 0.0
        %2416 = vmatprep.subr.mxu0 0.0
        %2417 = vmatpush1.msra.mxu0 0.0
        %2418 = vmatprep.subr.mxu0 0.0
        %2419 = vmatpush1.msra.mxu0 0.0
        %2420 = vmatprep.subr.mxu0 0.0
        %2421 = vmatpush1.msra.mxu0 0.0
        %2422 = vmatprep.subr.mxu0 0.0
        %2423 = vmatpush1.msra.mxu0 0.0
        %2424 = vmatprep.subr.mxu0 0.0
        %2425 = vmatpush1.msra.mxu0 0.0
        %2426 = vmatprep.subr.mxu0 0.0
        %2427 = vmatpush1.msra.mxu0 0.0
        %2428 = vmatprep.subr.mxu0 0.0
        %2429 = vmatpush1.msra.mxu0 0.0
        %2430 = vmatprep.subr.mxu0 0.0
        %2431 = vmatpush1.msra.mxu0 0.0
        %2432 = vmatprep.subr.mxu0 0.0
        %2433 = vmatpush1.msra.mxu0 0.0
        %2434 = vmatprep.subr.mxu0 0.0
        %2435 = vmatpush1.msra.mxu0 0.0
        %2436 = vmatprep.subr.mxu0 0.0
        %2437 = vmatpush1.msra.mxu0 0.0
        %2438 = vmatprep.subr.mxu0 0.0
        %2439 = vmatpush1.msra.mxu0 0.0
        %2440 = vmatprep.subr.mxu0 0.0
        %2441 = vmatpush1.msra.mxu0 0.0
        %2442 = vmatprep.subr.mxu0 0.0
        %2443 = vmatpush1.msra.mxu0 0.0
        %2444 = vmatprep.subr.mxu0 0.0
        %2445 = vmatpush1.msra.mxu0 0.0
        %2446 = vmatprep.subr.mxu0 0.0
        %2447 = vmatpush1.msra.mxu0 0.0
        %2448 = vmatprep.subr.mxu0 0.0
        %2449 = vmatpush1.msra.mxu0 0.0
        %2450 = vmatprep.subr.mxu0 0.0
        %2451 = vmatpush1.msra.mxu0 0.0
        %2452 = vmatprep.subr.mxu0 0.0
        %2453 = vmatpush1.msra.mxu0 0.0
        %2454 = vmatprep.subr.mxu0 0.0
        %2455 = vmatpush1.msra.mxu0 0.0
        %2456 = vmatprep.subr.mxu0 0.0
        %2457 = vmatpush1.msra.mxu0 0.0
        %2458 = vmatprep.mubr.f32.mxu0 0.0
        %2459 = vmatmul.mubr.f32.gmra.mrb[0].mxu0 %v2386
        %v2460 = vpop.f32.mrb[0].mxu0
        %v2461 = vadd.f32 %v2383, %v2460
        %v2462 = vpop.f32.mrb[0].mxu0
        %2463 = vmatprep.mubr.f32.mxu0 0.0
        %2464 = vmatmul.mubr.f32.gmra.mrb[0].mxu0 %v2389
        %v2465 = vpop.f32.mrb[0].mxu0
        %v2466 = vadd.f32 %v2383, %v2465
        %v2467 = vpop.f32.mrb[0].mxu0
        %2468 = vmatprep.mubr.f32.mxu0 0.0
        %2469 = vmatmul.mubr.f32.gmra.mrb[0].mxu0 %v2392
        %v2470 = vpop.f32.mrb[0].mxu0
        %v2471 = vadd.f32 %v2383, %v2470
        %v2472 = vpop.f32.mrb[0].mxu0
        %2473 = vdwg.mxu0
        %v2474 = vmul.f32 %v2461, 0.5
        %v2475 = vmul.f32 %v2466, 0.5
        %v2476 = vmul.f32 %v2471, 0.5
        %v2477 = vmul.f32 %v2461, 0.70710677
        %v2478 = vmul.f32 %v2466, 0.70710677
        %v2479 = vmul.f32 %v2471, 0.70710677
        %v2480 = vand.u32 2147483647, %v2477
        %v2481 = vand.u32 2147483647, %v2478
        %v2482 = vand.u32 2147483647, %v2479
        %v2483 = vmul.f32 %v2480, 0.3275911
        %v2484 = vmul.f32 %v2481, 0.3275911
        %v2485 = vmul.f32 %v2482, 0.3275911
        %v2486 = vadd.f32 %v2483, 1.0
        %v2487 = vadd.f32 %v2484, 1.0
        %v2488 = vadd.f32 %v2485, 1.0
        %v2489 = vrcp.pop %v2486
        %v2490 = vmul.f32 1.0, %v2489
        %v2491 = vrcp.pop %v2487
        %v2492 = vmul.f32 1.0, %v2491
        %v2493 = vrcp.pop %v2488
        %v2494 = vmul.f32 1.0, %v2493
        %v2495 = vmul.f32 %v2490, 1.0614054
        %v2496 = vmul.f32 %v2492, 1.0614054
        %v2497 = vmul.f32 %v2494, 1.0614054
        %v2498 = vadd.f32 %v2495, -1.4531521
        %v2499 = vadd.f32 %v2496, -1.4531521
        %v2500 = vadd.f32 %v2497, -1.4531521
        %v2501 = vmul.f32 %v2490, %v2498
        %v2502 = vmul.f32 %v2492, %v2499
        %v2503 = vmul.f32 %v2494, %v2500
        %v2504 = vadd.f32 %v2501, 1.4214138
        %v2505 = vadd.f32 %v2502, 1.4214138
        %v2506 = vadd.f32 %v2503, 1.4214138
        %v2507 = vmul.f32 %v2490, %v2504
        %v2508 = vmul.f32 %v2492, %v2505
        %v2509 = vmul.f32 %v2494, %v2506
        %v2510 = vadd.f32 %v2507, -0.28449672
        %v2511 = vadd.f32 %v2508, -0.28449672
        %v2512 = vadd.f32 %v2509, -0.28449672
        %v2513 = vmul.f32 %v2490, %v2510
        %v2514 = vmul.f32 %v2492, %v2511
        %v2515 = vmul.f32 %v2494, %v2512
        %v2516 = vadd.f32 %v2513, 0.2548296
        %v2517 = vadd.f32 %v2514, 0.2548296
        %v2518 = vadd.f32 %v2515, 0.2548296
        %v2519 = vmul.f32 %v2490, %v2516
        %v2520 = vmul.f32 %v2492, %v2517
        %v2521 = vmul.f32 %v2494, %v2518
        %v2522 = vsub.f32 0.0, %v2480
        %v2523 = vsub.f32 0.0, %v2481
        %v2524 = vsub.f32 0.0, %v2482
        %v2525 = vmul.f32 %v2522, %v2480
        %v2526 = vmul.f32 %v2523, %v2481
        %v2527 = vmul.f32 %v2524, %v2482
        %v2528 = vmul.f32 %v2525, 1.442695
        %v2529 = vpow.pop %v2528
        %v2530 = vmul.f32 %v2526, 1.442695
        %v2531 = vpow.pop %v2530
        %v2532 = vmul.f32 %v2527, 1.442695
        %v2533 = vpow.pop %v2532
        %v2534 = vmul.f32 %v2519, %v2529
        %v2535 = vmul.f32 %v2520, %v2531
        %v2536 = vmul.f32 %v2521, %v2533
        %v2537 = vsub.f32 1.0, %v2534
        %v2538 = vsub.f32 1.0, %v2535
        %v2539 = vsub.f32 1.0, %v2536
        %vm2540 = vcmp.lt.f32.partialorder %v2477, 0.0
        %vm2541 = vcmp.lt.f32.partialorder %v2478, 0.0
        %vm2542 = vcmp.lt.f32.partialorder %v2479, 0.0
        %v2543 = vsub.f32 0.0, %v2537
        %v2544 = vsub.f32 0.0, %v2538
        %v2545 = vsub.f32 0.0, %v2539
        %v2546 = vsel %vm2540, %v2543, %v2537
        %v2547 = vsel %vm2541, %v2544, %v2538
        %v2548 = vsel %vm2542, %v2545, %v2539
        %v2549 = vadd.f32 %v2546, 1.0
        %v2550 = vadd.f32 %v2547, 1.0
        %v2551 = vadd.f32 %v2548, 1.0
        %v2552 = vmul.f32 %v2474, %v2549
        %v2553 = vmul.f32 %v2475, %v2550
        %v2554 = vmul.f32 %v2476, %v2551
        %v2555 = vld [vmem:[%s802] sm:$0xff]
        %v2556 = vld [vmem:[%s802 + $0x8] sm:$0xff]
        %v2557 = vld [vmem:[%s802 + $0x10] sm:$0xff]
        %v2558 = vld [vmem:[%s802 + $0x18] sm:$0xff]
        %v2559 = vld [vmem:[%s802 + $0x20] sm:$0xff]
        %v2560 = vld [vmem:[%s802 + $0x28] sm:$0xff]
        %v2561 = vld [vmem:[%s802 + $0x30] sm:$0xff]
        %v2562 = vld [vmem:[%s802 + $0x38] sm:$0xff]
        %v2563 = vld [vmem:[%s805] sm:$0x1]
        %v2565 = vlaneseq
        %v2566 = vshrl.u32 %v2565, 7
        %v2567 = vsub.s32 0, %v2566
        %v2568 = vrot.slane %v2563, %v2567
        %v2571 = vsel %vm2210, %v2552, 0
        %v2574 = vsel %vm2210, %v2553, 0
        %v2577 = vsel %vm2210, %v2554, 0
        %2579 = vmatprep.subr.mxu0 0.0
        %2580 = vmatpush1.msra.mxu0 %v2555
        %2581 = vmatprep.subr.mxu0 0.0
        %2582 = vmatpush1.msra.mxu0 %v2556
        %2583 = vmatprep.subr.mxu0 0.0
        %2584 = vmatpush1.msra.mxu0 %v2557
        %2585 = vmatprep.subr.mxu0 0.0
        %2586 = vmatpush1.msra.mxu0 %v2558
        %2587 = vmatprep.subr.mxu0 0.0
        %2588 = vmatpush1.msra.mxu0 %v2559
        %2589 = vmatprep.subr.mxu0 0.0
        %2590 = vmatpush1.msra.mxu0 %v2560
        %2591 = vmatprep.subr.mxu0 0.0
        %2592 = vmatpush1.msra.mxu0 %v2561
        %2593 = vmatprep.subr.mxu0 0.0
        %2594 = vmatpush1.msra.mxu0 %v2562
        %2595 = vmatprep.subr.mxu0 0.0
        %2596 = vmatpush1.msra.mxu0 0.0
        %2597 = vmatprep.subr.mxu0 0.0
        %2598 = vmatpush1.msra.mxu0 0.0
        %2599 = vmatprep.subr.mxu0 0.0
        %2600 = vmatpush1.msra.mxu0 0.0
        %2601 = vmatprep.subr.mxu0 0.0
        %2602 = vmatpush1.msra.mxu0 0.0
        %2603 = vmatprep.subr.mxu0 0.0
        %2604 = vmatpush1.msra.mxu0 0.0
        %2605 = vmatprep.subr.mxu0 0.0
        %2606 = vmatpush1.msra.mxu0 0.0
        %2607 = vmatprep.subr.mxu0 0.0
        %2608 = vmatpush1.msra.mxu0 0.0
        %2609 = vmatprep.subr.mxu0 0.0
        %2610 = vmatpush1.msra.mxu0 0.0
        %2611 = vmatprep.subr.mxu0 0.0
        %2612 = vmatpush1.msra.mxu0 0.0
        %2613 = vmatprep.subr.mxu0 0.0
        %2614 = vmatpush1.msra.mxu0 0.0
        %2615 = vmatprep.subr.mxu0 0.0
        %2616 = vmatpush1.msra.mxu0 0.0
        %2617 = vmatprep.subr.mxu0 0.0
        %2618 = vmatpush1.msra.mxu0 0.0
        %2619 = vmatprep.subr.mxu0 0.0
        %2620 = vmatpush1.msra.mxu0 0.0
        %2621 = vmatprep.subr.mxu0 0.0
        %2622 = vmatpush1.msra.mxu0 0.0
        %2623 = vmatprep.subr.mxu0 0.0
        %2624 = vmatpush1.msra.mxu0 0.0
        %2625 = vmatprep.subr.mxu0 0.0
        %2626 = vmatpush1.msra.mxu0 0.0
        %2627 = vmatprep.subr.mxu0 0.0
        %2628 = vmatpush1.msra.mxu0 0.0
        %2629 = vmatprep.subr.mxu0 0.0
        %2630 = vmatpush1.msra.mxu0 0.0
        %2631 = vmatprep.subr.mxu0 0.0
        %2632 = vmatpush1.msra.mxu0 0.0
        %2633 = vmatprep.subr.mxu0 0.0
        %2634 = vmatpush1.msra.mxu0 0.0
        %2635 = vmatprep.subr.mxu0 0.0
        %2636 = vmatpush1.msra.mxu0 0.0
        %2637 = vmatprep.subr.mxu0 0.0
        %2638 = vmatpush1.msra.mxu0 0.0
        %2639 = vmatprep.subr.mxu0 0.0
        %2640 = vmatpush1.msra.mxu0 0.0
        %2641 = vmatprep.subr.mxu0 0.0
        %2642 = vmatpush1.msra.mxu0 0.0
        %2643 = vmatprep.mubr.f32.mxu0 0.0
        %2644 = vmatmul.mubr.f32.gmra.mrb[0].mxu0 %v2571
        %v2645 = vpop.f32.mrb[0].mxu0
        %v2646 = vadd.f32 %v2568, %v2645
        %v2647 = vpop.f32.mrb[0].mxu0
        %2648 = vmatprep.mubr.f32.mxu0 0.0
        %2649 = vmatmul.mubr.f32.gmra.mrb[0].mxu0 %v2574
        %v2650 = vpop.f32.mrb[0].mxu0
        %v2651 = vadd.f32 %v2568, %v2650
        %v2652 = vpop.f32.mrb[0].mxu0
        %2653 = vmatprep.mubr.f32.mxu0 0.0
        %2654 = vmatmul.mubr.f32.gmra.mrb[0].mxu0 %v2577
        %v2655 = vpop.f32.mrb[0].mxu0
        %v2656 = vadd.f32 %v2568, %v2655
        %v2657 = vpop.f32.mrb[0].mxu0
        %2658 = vdwg.mxu0
        %v2659 = vmul.f32 %v2646, 0.5
        %v2660 = vmul.f32 %v2651, 0.5
        %v2661 = vmul.f32 %v2656, 0.5
        %v2662 = vmul.f32 %v2646, 0.70710677
        %v2663 = vmul.f32 %v2651, 0.70710677
        %v2664 = vmul.f32 %v2656, 0.70710677
        %v2665 = vand.u32 2147483647, %v2662
        %v2666 = vand.u32 2147483647, %v2663
        %v2667 = vand.u32 2147483647, %v2664
        %v2668 = vmul.f32 %v2665, 0.3275911
        %v2669 = vmul.f32 %v2666, 0.3275911
        %v2670 = vmul.f32 %v2667, 0.3275911
        %v2671 = vadd.f32 %v2668, 1.0
        %v2672 = vadd.f32 %v2669, 1.0
        %v2673 = vadd.f32 %v2670, 1.0
        %v2674 = vrcp.pop %v2671
        %v2675 = vmul.f32 1.0, %v2674
        %v2676 = vrcp.pop %v2672
        %v2677 = vmul.f32 1.0, %v2676
        %v2678 = vrcp.pop %v2673
        %v2679 = vmul.f32 1.0, %v2678
        %v2680 = vmul.f32 %v2675, 1.0614054
        %v2681 = vmul.f32 %v2677, 1.0614054
        %v2682 = vmul.f32 %v2679, 1.0614054
        %v2683 = vadd.f32 %v2680, -1.4531521
        %v2684 = vadd.f32 %v2681, -1.4531521
        %v2685 = vadd.f32 %v2682, -1.4531521
        %v2686 = vmul.f32 %v2675, %v2683
        %v2687 = vmul.f32 %v2677, %v2684
        %v2688 = vmul.f32 %v2679, %v2685
        %v2689 = vadd.f32 %v2686, 1.4214138
        %v2690 = vadd.f32 %v2687, 1.4214138
        %v2691 = vadd.f32 %v2688, 1.4214138
        %v2692 = vmul.f32 %v2675, %v2689
        %v2693 = vmul.f32 %v2677, %v2690
        %v2694 = vmul.f32 %v2679, %v2691
        %v2695 = vadd.f32 %v2692, -0.28449672
        %v2696 = vadd.f32 %v2693, -0.28449672
        %v2697 = vadd.f32 %v2694, -0.28449672
        %v2698 = vmul.f32 %v2675, %v2695
        %v2699 = vmul.f32 %v2677, %v2696
        %v2700 = vmul.f32 %v2679, %v2697
        %v2701 = vadd.f32 %v2698, 0.2548296
        %v2702 = vadd.f32 %v2699, 0.2548296
        %v2703 = vadd.f32 %v2700, 0.2548296
        %v2704 = vmul.f32 %v2675, %v2701
        %v2705 = vmul.f32 %v2677, %v2702
        %v2706 = vmul.f32 %v2679, %v2703
        %v2707 = vsub.f32 0.0, %v2665
        %v2708 = vsub.f32 0.0, %v2666
        %v2709 = vsub.f32 0.0, %v2667
        %v2710 = vmul.f32 %v2707, %v2665
        %v2711 = vmul.f32 %v2708, %v2666
        %v2712 = vmul.f32 %v2709, %v2667
        %v2713 = vmul.f32 %v2710, 1.442695
        %v2714 = vpow.pop %v2713
        %v2715 = vmul.f32 %v2711, 1.442695
        %v2716 = vpow.pop %v2715
        %v2717 = vmul.f32 %v2712, 1.442695
        %v2718 = vpow.pop %v2717
        %v2719 = vmul.f32 %v2704, %v2714
        %v2720 = vmul.f32 %v2705, %v2716
        %v2721 = vmul.f32 %v2706, %v2718
        %v2722 = vsub.f32 1.0, %v2719
        %v2723 = vsub.f32 1.0, %v2720
        %v2724 = vsub.f32 1.0, %v2721
        %vm2725 = vcmp.lt.f32.partialorder %v2662, 0.0
        %vm2726 = vcmp.lt.f32.partialorder %v2663, 0.0
        %vm2727 = vcmp.lt.f32.partialorder %v2664, 0.0
        %v2728 = vsub.f32 0.0, %v2722
        %v2729 = vsub.f32 0.0, %v2723
        %v2730 = vsub.f32 0.0, %v2724
        %v2731 = vsel %vm2725, %v2728, %v2722
        %v2732 = vsel %vm2726, %v2729, %v2723
        %v2733 = vsel %vm2727, %v2730, %v2724
        %v2734 = vadd.f32 %v2731, 1.0
        %v2735 = vadd.f32 %v2732, 1.0
        %v2736 = vadd.f32 %v2733, 1.0
        %v2737 = vmul.f32 %v2659, %v2734
        %v2738 = vmul.f32 %v2660, %v2735
        %v2739 = vmul.f32 %v2661, %v2736
        %v2740 = vadd.f32 %v2310, %v2737
        %v2741 = vadd.f32 %v2311, %v2738
        %v2742 = vadd.f32 %v2312, %v2739
        %2743 = vst.msk [vmem:[#allocation2] sm:$0xff] %vm1034, %v2740
        %2744 = vst.msk [vmem:[#allocation2 + $0x8] sm:$0xff] %vm1034, %v2741
        %2745 = vst.msk [vmem:[#allocation2 + $0x10] sm:$0x1] %vm1041, %v2742
        %s2746 = scalar_lea.vmem [#allocation2], 24
        %v2747 = vld [vmem:[%s2746] sm:$0xff]
        %v2748 = vld [vmem:[%s2746 + $0x8] sm:$0xff]
        %v2749 = vld [vmem:[%s2746 + $0x10] sm:$0x1]
        %v2750 = vld [vmem:[%s763] sm:$0x1]
        %v2751 = vld [vmem:[%s766] sm:$0x1]
        %v2752 = vsel %vm1034, %v2747, 0.0
        %2753 = vadd.xlane.f32.xlu0 %v2752
        %v2754 = vpop.xlane.xlu0 %2753
        %v2755 = vsel %vm1034, %v2748, 0.0
        %2756 = vadd.xlane.f32.xlu0 %v2755
        %v2757 = vpop.xlane.xlu0 %2756
        %v2758 = vsel %vm1041, %v2749, 0.0
        %2759 = vadd.xlane.f32.xlu0 %v2758
        %v2760 = vpop.xlane.xlu0 %2759
        %v2761 = vmul.f32 %v2754, %v1045
        %v2762 = vmul.f32 %v2757, %v1045
        %v2763 = vmul.f32 %v2760, %v1045
        %v2764 = vsub.f32 %v2747, %v2761
        %v2765 = vsub.f32 %v2748, %v2762
        %v2766 = vsub.f32 %v2749, %v2763
        %v2767 = vmul.f32 %v2764, %v2764
        %v2768 = vmul.f32 %v2765, %v2765
        %v2769 = vmul.f32 %v2766, %v2766
        %v2770 = vsel %vm1034, %v2767, 0.0
        %2771 = vadd.xlane.f32.xlu0 %v2770
        %v2772 = vpop.xlane.xlu0 %2771
        %v2773 = vsel %vm1034, %v2768, 0.0
        %2774 = vadd.xlane.f32.xlu0 %v2773
        %v2775 = vpop.xlane.xlu0 %2774
        %v2776 = vsel %vm1041, %v2769, 0.0
        %2777 = vadd.xlane.f32.xlu0 %v2776
        %v2778 = vpop.xlane.xlu0 %2777
        %v2779 = vmul.f32 %v2772, %v1045
        %v2780 = vmul.f32 %v2775, %v1045
        %v2781 = vmul.f32 %v2778, %v1045
        %v2782 = vadd.f32 %v2779, 1e-05
        %v2783 = vadd.f32 %v2780, 1e-05
        %v2784 = vadd.f32 %v2781, 1e-05
        %v2785 = vrsqrt.pop %v2782
        %v2786 = vrsqrt.pop %v2783
        %v2787 = vrsqrt.pop %v2784
        %v2788 = vmul.f32 %v2764, %v2785
        %v2789 = vmul.f32 %v2765, %v2786
        %v2790 = vmul.f32 %v2766, %v2787
        %v2792 = vlaneseq
        %v2793 = vshrl.u32 %v2792, 7
        %v2794 = vsub.s32 0, %v2793
        %v2795 = vrot.slane %v2750, %v2794
        %v2797 = vmul.f32 %v2788, %v2795
        %v2798 = vmul.f32 %v2789, %v2795
        %v2799 = vmul.f32 %v2790, %v2795
        %v2801 = vlaneseq
        %v2802 = vshrl.u32 %v2801, 7
        %v2803 = vsub.s32 0, %v2802
        %v2804 = vrot.slane %v2751, %v2803
        %v2806 = vadd.f32 %v2797, %v2804
        %v2807 = vadd.f32 %v2798, %v2804
        %v2808 = vadd.f32 %v2799, %v2804
        %v2809 = vld [vmem:[%s771] sm:$0xff]
        %v2810 = vld [vmem:[%s771 + $0x8] sm:$0xff]
        %v2811 = vld [vmem:[%s771 + $0x10] sm:$0xff]
        %v2812 = vld [vmem:[%s771 + $0x18] sm:$0xff]
        %v2813 = vld [vmem:[%s771 + $0x20] sm:$0xff]
        %v2814 = vld [vmem:[%s771 + $0x28] sm:$0xff]
        %v2815 = vld [vmem:[%s771 + $0x30] sm:$0xff]
        %v2816 = vld [vmem:[%s771 + $0x38] sm:$0xff]
        %v2817 = vld [vmem:[%s771 + $0x40] sm:$0xff]
        %v2818 = vld [vmem:[%s771 + $0x48] sm:$0xff]
        %v2819 = vld [vmem:[%s771 + $0x50] sm:$0xff]
        %v2820 = vld [vmem:[%s771 + $0x58] sm:$0xff]
        %v2821 = vld [vmem:[%s775] sm:$0x3]
        %v2823 = vlaneseq
        %v2824 = vshrl.u32 %v2823, 7
        %v2825 = vsub.s32 0, %v2824
        %v2826 = vrot.slane %v2821, %v2825
        %v2827 = vlaneseq
        %v2828 = vshrl.u32 %v2827, 7
        %v2829 = vsub.s32 1, %v2828
        %v2830 = vrot.slane %v2821, %v2829
        %v2834 = vsel %vm1034, %v2806, 0
        %v2837 = vsel %vm1034, %v2807, 0
        %v2840 = vsel %vm1034, %v2808, 0
        %2842 = vmatprep.subr.mxu0 %v2810
        %2843 = vmatpush1.msra.mxu0 %v2809
        %2844 = vmatprep.subr.mxu0 %v2812
        %2845 = vmatpush1.msra.mxu0 %v2811
        %2846 = vmatprep.subr.mxu0 %v2814
        %2847 = vmatpush1.msra.mxu0 %v2813
        %2848 = vmatprep.subr.mxu0 %v2816
        %2849 = vmatpush1.msra.mxu0 %v2815
        %2850 = vmatprep.subr.mxu0 %v2818
        %2851 = vmatpush1.msra.mxu0 %v2817
        %2852 = vmatprep.subr.mxu0 %v2820
        %2853 = vmatpush1.msra.mxu0 %v2819
        %2854 = vmatprep.subr.mxu0 0.0
        %2855 = vmatpush1.msra.mxu0 0.0
        %2856 = vmatprep.subr.mxu0 0.0
        %2857 = vmatpush1.msra.mxu0 0.0
        %2858 = vmatprep.subr.mxu0 0.0
        %2859 = vmatpush1.msra.mxu0 0.0
        %2860 = vmatprep.subr.mxu0 0.0
        %2861 = vmatpush1.msra.mxu0 0.0
        %2862 = vmatprep.subr.mxu0 0.0
        %2863 = vmatpush1.msra.mxu0 0.0
        %2864 = vmatprep.subr.mxu0 0.0
        %2865 = vmatpush1.msra.mxu0 0.0
        %2866 = vmatprep.subr.mxu0 0.0
        %2867 = vmatpush1.msra.mxu0 0.0
        %2868 = vmatprep.subr.mxu0 0.0
        %2869 = vmatpush1.msra.mxu0 0.0
        %2870 = vmatprep.subr.mxu0 0.0
        %2871 = vmatpush1.msra.mxu0 0.0
        %2872 = vmatprep.subr.mxu0 0.0
        %2873 = vmatpush1.msra.mxu0 0.0
        %2874 = vmatprep.subr.mxu0 0.0
        %2875 = vmatpush1.msra.mxu0 0.0
        %2876 = vmatprep.subr.mxu0 0.0
        %2877 = vmatpush1.msra.mxu0 0.0
        %2878 = vmatprep.subr.mxu0 0.0
        %2879 = vmatpush1.msra.mxu0 0.0
        %2880 = vmatprep.subr.mxu0 0.0
        %2881 = vmatpush1.msra.mxu0 0.0
        %2882 = vmatprep.subr.mxu0 0.0
        %2883 = vmatpush1.msra.mxu0 0.0
        %2884 = vmatprep.subr.mxu0 0.0
        %2885 = vmatpush1.msra.mxu0 0.0
        %2886 = vmatprep.subr.mxu0 0.0
        %2887 = vmatpush1.msra.mxu0 0.0
        %2888 = vmatprep.subr.mxu0 0.0
        %2889 = vmatpush1.msra.mxu0 0.0
        %2890 = vmatprep.subr.mxu0 0.0
        %2891 = vmatpush1.msra.mxu0 0.0
        %2892 = vmatprep.subr.mxu0 0.0
        %2893 = vmatpush1.msra.mxu0 0.0
        %2894 = vmatprep.subr.mxu0 0.0
        %2895 = vmatpush1.msra.mxu0 0.0
        %2896 = vmatprep.subr.mxu0 0.0
        %2897 = vmatpush1.msra.mxu0 0.0
        %2898 = vmatprep.subr.mxu0 0.0
        %2899 = vmatpush1.msra.mxu0 0.0
        %2900 = vmatprep.subr.mxu0 0.0
        %2901 = vmatpush1.msra.mxu0 0.0
        %2902 = vmatprep.subr.mxu0 0.0
        %2903 = vmatpush1.msra.mxu0 0.0
        %2904 = vmatprep.subr.mxu0 0.0
        %2905 = vmatpush1.msra.mxu0 0.0
        %2906 = vmatprep.mubr.f32.mxu0 0.0
        %2907 = vmatmul.mubr.f32.gmra.mrb[0].mxu0 %v2834
        %v2908 = vpop.f32.mrb[0].mxu0
        %v2909 = vadd.f32 %v2826, %v2908
        %v2910 = vpop.f32.mrb[0].mxu0
        %v2911 = vadd.f32 %v2830, %v2910
        %2912 = vmatprep.mubr.f32.mxu0 0.0
        %2913 = vmatmul.mubr.f32.gmra.mrb[0].mxu0 %v2837
        %v2914 = vpop.f32.mrb[0].mxu0
        %v2915 = vadd.f32 %v2826, %v2914
        %v2916 = vpop.f32.mrb[0].mxu0
        %v2917 = vadd.f32 %v2830, %v2916
        %2918 = vmatprep.mubr.f32.mxu0 0.0
        %2919 = vmatmul.mubr.f32.gmra.mrb[0].mxu0 %v2840
        %v2920 = vpop.f32.mrb[0].mxu0
        %v2921 = vadd.f32 %v2826, %v2920
        %v2922 = vpop.f32.mrb[0].mxu0
        %v2923 = vadd.f32 %v2830, %v2922
        %2924 = vdwg.mxu0
        %v2925 = vmul.f32 %v2909, 0.14433756
        %v2926 = vmul.f32 %v2915, 0.14433756
        %v2927 = vmul.f32 %v2921, 0.14433756
        %2931 = vrot.lane.b32.xlu0 %v2909, 64
        %v2932 = vpop.permute.xlu0 %2931
        %2933 = vrot.lane.b32.xlu0 %v2915, 64
        %v2934 = vpop.permute.xlu0 %2933
        %2935 = vrot.lane.b32.xlu0 %v2921, 64
        %v2936 = vpop.permute.xlu0 %2935
        %v2938 = vsel %vm1222, %v2925, 0
        %v2941 = vsel %vm1222, %v2926, 0
        %v2944 = vsel %vm1222, %v2927, 0
        %v2946 = vsel %vm1222, %v2932, 0
        %v2948 = vsel %vm1222, %v2934, 0
        %v2950 = vsel %vm1222, %v2936, 0
        %2952 = vmatprep.subr.mxu0 0.0
        %2953 = vmatpush1.xpose.msra.mxu0 %v2946
        %2954 = vmatprep.subr.mxu0 0.0
        %2955 = vmatpush1.xpose.msra.mxu0 %v2948
        %2956 = vmatprep.subr.mxu0 0.0
        %2957 = vmatpush1.xpose.msra.mxu0 %v2950
        %2958 = vmatprep.subr.mxu0 0.0
        %2959 = vmatpush1.xpose.msra.mxu0 0.0
        %2960 = vmatprep.subr.mxu0 0.0
        %2961 = vmatpush1.xpose.msra.mxu0 0.0
        %2962 = vmatprep.subr.mxu0 0.0
        %2963 = vmatpush1.xpose.msra.mxu0 0.0
        %2964 = vmatprep.subr.mxu0 0.0
        %2965 = vmatpush1.xpose.msra.mxu0 0.0
        %2966 = vmatprep.subr.mxu0 0.0
        %2967 = vmatpush1.xpose.msra.mxu0 0.0
        %2968 = vmatprep.subr.mxu0 0.0
        %2969 = vmatpush1.xpose.msra.mxu0 0.0
        %2970 = vmatprep.subr.mxu0 0.0
        %2971 = vmatpush1.xpose.msra.mxu0 0.0
        %2972 = vmatprep.subr.mxu0 0.0
        %2973 = vmatpush1.xpose.msra.mxu0 0.0
        %2974 = vmatprep.subr.mxu0 0.0
        %2975 = vmatpush1.xpose.msra.mxu0 0.0
        %2976 = vmatprep.subr.mxu0 0.0
        %2977 = vmatpush1.xpose.msra.mxu0 0.0
        %2978 = vmatprep.subr.mxu0 0.0
        %2979 = vmatpush1.xpose.msra.mxu0 0.0
        %2980 = vmatprep.subr.mxu0 0.0
        %2981 = vmatpush1.xpose.msra.mxu0 0.0
        %2982 = vmatprep.subr.mxu0 0.0
        %2983 = vmatpush1.xpose.msra.mxu0 0.0
        %2984 = vmatprep.subr.mxu0 0.0
        %2985 = vmatpush1.xpose.msra.mxu0 0.0
        %2986 = vmatprep.subr.mxu0 0.0
        %2987 = vmatpush1.xpose.msra.mxu0 0.0
        %2988 = vmatprep.subr.mxu0 0.0
        %2989 = vmatpush1.xpose.msra.mxu0 0.0
        %2990 = vmatprep.subr.mxu0 0.0
        %2991 = vmatpush1.xpose.msra.mxu0 0.0
        %2992 = vmatprep.subr.mxu0 0.0
        %2993 = vmatpush1.xpose.msra.mxu0 0.0
        %2994 = vmatprep.subr.mxu0 0.0
        %2995 = vmatpush1.xpose.msra.mxu0 0.0
        %2996 = vmatprep.subr.mxu0 0.0
        %2997 = vmatpush1.xpose.msra.mxu0 0.0
        %2998 = vmatprep.subr.mxu0 0.0
        %2999 = vmatpush1.xpose.msra.mxu0 0.0
        %3000 = vmatprep.subr.mxu0 0.0
        %3001 = vmatpush1.xpose.msra.mxu0 0.0
        %3002 = vmatprep.subr.mxu0 0.0
        %3003 = vmatpush1.xpose.msra.mxu0 0.0
        %3004 = vmatprep.subr.mxu0 0.0
        %3005 = vmatpush1.xpose.msra.mxu0 0.0
        %3006 = vmatprep.subr.mxu0 0.0
        %3007 = vmatpush1.xpose.msra.mxu0 0.0
        %3008 = vmatprep.subr.mxu0 0.0
        %3009 = vmatpush1.xpose.msra.mxu0 0.0
        %3010 = vmatprep.subr.mxu0 0.0
        %3011 = vmatpush1.xpose.msra.mxu0 0.0
        %3012 = vmatprep.subr.mxu0 0.0
        %3013 = vmatpush1.xpose.msra.mxu0 0.0
        %3014 = vmatprep.subr.mxu0 0.0
        %3015 = vmatpush1.xpose.msra.mxu0 0.0
        %3016 = vmatprep.mubr.f32.mxu0 0.0
        %3017 = vmatmul.mubr.f32.gmra.mrb[0].mxu0 %v2938
        %v3018 = vpop.f32.mrb[0].mxu0
        %v3019 = vadd.f32 0.0, %v3018
        %v3020 = vpop.f32.mrb[0].mxu0
        %3021 = vmatprep.mubr.f32.mxu0 0.0
        %3022 = vmatmul.mubr.f32.gmra.mrb[0].mxu0 %v2941
        %v3023 = vpop.f32.mrb[0].mxu0
        %v3024 = vadd.f32 0.0, %v3023
        %v3025 = vpop.f32.mrb[0].mxu0
        %3026 = vmatprep.mubr.f32.mxu0 0.0
        %3027 = vmatmul.mubr.f32.gmra.mrb[0].mxu0 %v2944
        %v3028 = vpop.f32.mrb[0].mxu0
        %v3029 = vadd.f32 0.0, %v3028
        %v3030 = vpop.f32.mrb[0].mxu0
        %3031 = vdwg.mxu0
        %v3032 = vsel %vm1318, %v3019, -inf
        %3033 = vmax.xlane.f32.xlu0 %v3032
        %v3034 = vpop.xlane.xlu0 %3033
        %v3035 = vsel %vm1318, %v3024, -inf
        %3036 = vmax.xlane.f32.xlu0 %v3035
        %v3037 = vpop.xlane.xlu0 %3036
        %v3038 = vsel %vm1325, %v3029, -inf
        %3039 = vmax.xlane.f32.xlu0 %v3038
        %v3040 = vpop.xlane.xlu0 %3039
        %v3041 = vsub.f32 %v3019, %v3034
        %v3042 = vsub.f32 %v3024, %v3037
        %v3043 = vsub.f32 %v3029, %v3040
        %v3044 = vmul.f32 %v3041, 1.442695
        %v3045 = vpow.pop %v3044
        %v3046 = vmul.f32 %v3042, 1.442695
        %v3047 = vpow.pop %v3046
        %v3048 = vmul.f32 %v3043, 1.442695
        %v3049 = vpow.pop %v3048
        %v3050 = vsel %vm1318, %v3045, 0.0
        %3051 = vadd.xlane.f32.xlu0 %v3050
        %v3052 = vpop.xlane.xlu0 %3051
        %v3053 = vsel %vm1318, %v3047, 0.0
        %3054 = vadd.xlane.f32.xlu0 %v3053
        %v3055 = vpop.xlane.xlu0 %3054
        %v3056 = vsel %vm1325, %v3049, 0.0
        %3057 = vadd.xlane.f32.xlu0 %v3056
        %v3058 = vpop.xlane.xlu0 %3057
        %v3059 = vrcp.pop %v3052
        %v3060 = vrcp.pop %v3055
        %v3061 = vrcp.pop %v3058
        %v3062 = vmul.f32 %v3045, %v3059
        %v3063 = vmul.f32 %v3047, %v3060
        %v3064 = vmul.f32 %v3049, %v3061
        %v3066 = vsel %vm1318, %v3062, 0
        %v3069 = vsel %vm1318, %v3063, 0
        %v3072 = vsel %vm1318, %v3064, 0
        %v3075 = vsel %vm1362, %v2923, 0
        %3077 = vmatprep.subr.mxu0 0.0
        %3078 = vmatpush1.msra.mxu0 %v2911
        %3079 = vmatprep.subr.mxu0 0.0
        %3080 = vmatpush1.msra.mxu0 %v2917
        %3081 = vmatprep.subr.mxu0 0.0
        %3082 = vmatpush1.msra.mxu0 %v3075
        %3083 = vmatprep.subr.mxu0 0.0
        %3084 = vmatpush1.msra.mxu0 0.0
        %3085 = vmatprep.subr.mxu0 0.0
        %3086 = vmatpush1.msra.mxu0 0.0
        %3087 = vmatprep.subr.mxu0 0.0
        %3088 = vmatpush1.msra.mxu0 0.0
        %3089 = vmatprep.subr.mxu0 0.0
        %3090 = vmatpush1.msra.mxu0 0.0
        %3091 = vmatprep.subr.mxu0 0.0
        %3092 = vmatpush1.msra.mxu0 0.0
        %3093 = vmatprep.subr.mxu0 0.0
        %3094 = vmatpush1.msra.mxu0 0.0
        %3095 = vmatprep.subr.mxu0 0.0
        %3096 = vmatpush1.msra.mxu0 0.0
        %3097 = vmatprep.subr.mxu0 0.0
        %3098 = vmatpush1.msra.mxu0 0.0
        %3099 = vmatprep.subr.mxu0 0.0
        %3100 = vmatpush1.msra.mxu0 0.0
        %3101 = vmatprep.subr.mxu0 0.0
        %3102 = vmatpush1.msra.mxu0 0.0
        %3103 = vmatprep.subr.mxu0 0.0
        %3104 = vmatpush1.msra.mxu0 0.0
        %3105 = vmatprep.subr.mxu0 0.0
        %3106 = vmatpush1.msra.mxu0 0.0
        %3107 = vmatprep.subr.mxu0 0.0
        %3108 = vmatpush1.msra.mxu0 0.0
        %3109 = vmatprep.subr.mxu0 0.0
        %3110 = vmatpush1.msra.mxu0 0.0
        %3111 = vmatprep.subr.mxu0 0.0
        %3112 = vmatpush1.msra.mxu0 0.0
        %3113 = vmatprep.subr.mxu0 0.0
        %3114 = vmatpush1.msra.mxu0 0.0
        %3115 = vmatprep.subr.mxu0 0.0
        %3116 = vmatpush1.msra.mxu0 0.0
        %3117 = vmatprep.subr.mxu0 0.0
        %3118 = vmatpush1.msra.mxu0 0.0
        %3119 = vmatprep.subr.mxu0 0.0
        %3120 = vmatpush1.msra.mxu0 0.0
        %3121 = vmatprep.subr.mxu0 0.0
        %3122 = vmatpush1.msra.mxu0 0.0
        %3123 = vmatprep.subr.mxu0 0.0
        %3124 = vmatpush1.msra.mxu0 0.0
        %3125 = vmatprep.subr.mxu0 0.0
        %3126 = vmatpush1.msra.mxu0 0.0
        %3127 = vmatprep.subr.mxu0 0.0
        %3128 = vmatpush1.msra.mxu0 0.0
        %3129 = vmatprep.subr.mxu0 0.0
        %3130 = vmatpush1.msra.mxu0 0.0
        %3131 = vmatprep.subr.mxu0 0.0
        %3132 = vmatpush1.msra.mxu0 0.0
        %3133 = vmatprep.subr.mxu0 0.0
        %3134 = vmatpush1.msra.mxu0 0.0
        %3135 = vmatprep.subr.mxu0 0.0
        %3136 = vmatpush1.msra.mxu0 0.0
        %3137 = vmatprep.subr.mxu0 0.0
        %3138 = vmatpush1.msra.mxu0 0.0
        %3139 = vmatprep.subr.mxu0 0.0
        %3140 = vmatpush1.msra.mxu0 0.0
        %3141 = vmatprep.mubr.f32.mxu0 0.0
        %3142 = vmatmul.mubr.f32.gmra.mrb[0].mxu0 %v3066
        %v3143 = vpop.f32.mrb[0].mxu0
        %v3144 = vadd.f32 0.0, %v3143
        %v3145 = vpop.f32.mrb[0].mxu0
        %3146 = vmatprep.mubr.f32.mxu0 0.0
        %3147 = vmatmul.mubr.f32.gmra.mrb[0].mxu0 %v3069
        %v3148 = vpop.f32.mrb[0].mxu0
        %v3149 = vadd.f32 0.0, %v3148
        %v3150 = vpop.f32.mrb[0].mxu0
        %3151 = vmatprep.mubr.f32.mxu0 0.0
        %3152 = vmatmul.mubr.f32.gmra.mrb[0].mxu0 %v3072
        %v3153 = vpop.f32.mrb[0].mxu0
        %v3154 = vadd.f32 0.0, %v3153
        %v3155 = vpop.f32.mrb[0].mxu0
        %3156 = vdwg.mxu0
        %3157 = vrot.lane.b32.xlu0 %v2925, 112
        %v3158 = vpop.permute.xlu0 %3157
        %3159 = vrot.lane.b32.xlu0 %v2926, 112
        %v3160 = vpop.permute.xlu0 %3159
        %3161 = vrot.lane.b32.xlu0 %v2927, 112
        %v3162 = vpop.permute.xlu0 %3161
        %3163 = vrot.lane.b32.xlu0 %v2909, 48
        %v3164 = vpop.permute.xlu0 %3163
        %3165 = vrot.lane.b32.xlu0 %v2915, 48
        %v3166 = vpop.permute.xlu0 %3165
        %3167 = vrot.lane.b32.xlu0 %v2921, 48
        %v3168 = vpop.permute.xlu0 %3167
        %v3169 = vsel %vm1222, %v3158, 0
        %v3171 = vsel %vm1222, %v3160, 0
        %v3173 = vsel %vm1222, %v3162, 0
        %v3175 = vsel %vm1222, %v3164, 0
        %v3177 = vsel %vm1222, %v3166, 0
        %v3179 = vsel %vm1222, %v3168, 0
        %3181 = vmatprep.subr.mxu0 0.0
        %3182 = vmatpush1.xpose.msra.mxu0 %v3175
        %3183 = vmatprep.subr.mxu0 0.0
        %3184 = vmatpush1.xpose.msra.mxu0 %v3177
        %3185 = vmatprep.subr.mxu0 0.0
        %3186 = vmatpush1.xpose.msra.mxu0 %v3179
        %3187 = vmatprep.subr.mxu0 0.0
        %3188 = vmatpush1.xpose.msra.mxu0 0.0
        %3189 = vmatprep.subr.mxu0 0.0
        %3190 = vmatpush1.xpose.msra.mxu0 0.0
        %3191 = vmatprep.subr.mxu0 0.0
        %3192 = vmatpush1.xpose.msra.mxu0 0.0
        %3193 = vmatprep.subr.mxu0 0.0
        %3194 = vmatpush1.xpose.msra.mxu0 0.0
        %3195 = vmatprep.subr.mxu0 0.0
        %3196 = vmatpush1.xpose.msra.mxu0 0.0
        %3197 = vmatprep.subr.mxu0 0.0
        %3198 = vmatpush1.xpose.msra.mxu0 0.0
        %3199 = vmatprep.subr.mxu0 0.0
        %3200 = vmatpush1.xpose.msra.mxu0 0.0
        %3201 = vmatprep.subr.mxu0 0.0
        %3202 = vmatpush1.xpose.msra.mxu0 0.0
        %3203 = vmatprep.subr.mxu0 0.0
        %3204 = vmatpush1.xpose.msra.mxu0 0.0
        %3205 = vmatprep.subr.mxu0 0.0
        %3206 = vmatpush1.xpose.msra.mxu0 0.0
        %3207 = vmatprep.subr.mxu0 0.0
        %3208 = vmatpush1.xpose.msra.mxu0 0.0
        %3209 = vmatprep.subr.mxu0 0.0
        %3210 = vmatpush1.xpose.msra.mxu0 0.0
        %3211 = vmatprep.subr.mxu0 0.0
        %3212 = vmatpush1.xpose.msra.mxu0 0.0
        %3213 = vmatprep.subr.mxu0 0.0
        %3214 = vmatpush1.xpose.msra.mxu0 0.0
        %3215 = vmatprep.subr.mxu0 0.0
        %3216 = vmatpush1.xpose.msra.mxu0 0.0
        %3217 = vmatprep.subr.mxu0 0.0
        %3218 = vmatpush1.xpose.msra.mxu0 0.0
        %3219 = vmatprep.subr.mxu0 0.0
        %3220 = vmatpush1.xpose.msra.mxu0 0.0
        %3221 = vmatprep.subr.mxu0 0.0
        %3222 = vmatpush1.xpose.msra.mxu0 0.0
        %3223 = vmatprep.subr.mxu0 0.0
        %3224 = vmatpush1.xpose.msra.mxu0 0.0
        %3225 = vmatprep.subr.mxu0 0.0
        %3226 = vmatpush1.xpose.msra.mxu0 0.0
        %3227 = vmatprep.subr.mxu0 0.0
        %3228 = vmatpush1.xpose.msra.mxu0 0.0
        %3229 = vmatprep.subr.mxu0 0.0
        %3230 = vmatpush1.xpose.msra.mxu0 0.0
        %3231 = vmatprep.subr.mxu0 0.0
        %3232 = vmatpush1.xpose.msra.mxu0 0.0
        %3233 = vmatprep.subr.mxu0 0.0
        %3234 = vmatpush1.xpose.msra.mxu0 0.0
        %3235 = vmatprep.subr.mxu0 0.0
        %3236 = vmatpush1.xpose.msra.mxu0 0.0
        %3237 = vmatprep.subr.mxu0 0.0
        %3238 = vmatpush1.xpose.msra.mxu0 0.0
        %3239 = vmatprep.subr.mxu0 0.0
        %3240 = vmatpush1.xpose.msra.mxu0 0.0
        %3241 = vmatprep.subr.mxu0 0.0
        %3242 = vmatpush1.xpose.msra.mxu0 0.0
        %3243 = vmatprep.subr.mxu0 0.0
        %3244 = vmatpush1.xpose.msra.mxu0 0.0
        %3245 = vmatprep.mubr.f32.mxu0 0.0
        %3246 = vmatmul.mubr.f32.gmra.mrb[0].mxu0 %v3169
        %v3247 = vpop.f32.mrb[0].mxu0
        %v3248 = vadd.f32 0.0, %v3247
        %v3249 = vpop.f32.mrb[0].mxu0
        %3250 = vmatprep.mubr.f32.mxu0 0.0
        %3251 = vmatmul.mubr.f32.gmra.mrb[0].mxu0 %v3171
        %v3252 = vpop.f32.mrb[0].mxu0
        %v3253 = vadd.f32 0.0, %v3252
        %v3254 = vpop.f32.mrb[0].mxu0
        %3255 = vmatprep.mubr.f32.mxu0 0.0
        %3256 = vmatmul.mubr.f32.gmra.mrb[0].mxu0 %v3173
        %v3257 = vpop.f32.mrb[0].mxu0
        %v3258 = vadd.f32 0.0, %v3257
        %v3259 = vpop.f32.mrb[0].mxu0
        %3260 = vdwg.mxu0
        %v3261 = vsel %vm1318, %v3248, -inf
        %3262 = vmax.xlane.f32.xlu0 %v3261
        %v3263 = vpop.xlane.xlu0 %3262
        %v3264 = vsel %vm1318, %v3253, -inf
        %3265 = vmax.xlane.f32.xlu0 %v3264
        %v3266 = vpop.xlane.xlu0 %3265
        %v3267 = vsel %vm1325, %v3258, -inf
        %3268 = vmax.xlane.f32.xlu0 %v3267
        %v3269 = vpop.xlane.xlu0 %3268
        %v3270 = vsub.f32 %v3248, %v3263
        %v3271 = vsub.f32 %v3253, %v3266
        %v3272 = vsub.f32 %v3258, %v3269
        %v3273 = vmul.f32 %v3270, 1.442695
        %v3274 = vpow.pop %v3273
        %v3275 = vmul.f32 %v3271, 1.442695
        %v3276 = vpow.pop %v3275
        %v3277 = vmul.f32 %v3272, 1.442695
        %v3278 = vpow.pop %v3277
        %v3279 = vsel %vm1318, %v3274, 0.0
        %3280 = vadd.xlane.f32.xlu0 %v3279
        %v3281 = vpop.xlane.xlu0 %3280
        %v3282 = vsel %vm1318, %v3276, 0.0
        %3283 = vadd.xlane.f32.xlu0 %v3282
        %v3284 = vpop.xlane.xlu0 %3283
        %v3285 = vsel %vm1325, %v3278, 0.0
        %3286 = vadd.xlane.f32.xlu0 %v3285
        %v3287 = vpop.xlane.xlu0 %3286
        %v3288 = vrcp.pop %v3281
        %v3289 = vrcp.pop %v3284
        %v3290 = vrcp.pop %v3287
        %v3291 = vmul.f32 %v3274, %v3288
        %v3292 = vmul.f32 %v3276, %v3289
        %v3293 = vmul.f32 %v3278, %v3290
        %3296 = vrot.lane.b32.xlu0 %v2911, 112
        %v3297 = vpop.permute.xlu0 %3296
        %3298 = vrot.lane.b32.xlu0 %v2917, 112
        %v3299 = vpop.permute.xlu0 %3298
        %3300 = vrot.lane.b32.xlu0 %v2923, 112
        %v3301 = vpop.permute.xlu0 %3300
        %v3305 = vsel %vm1318, %v3291, 0
        %v3308 = vsel %vm1318, %v3292, 0
        %v3311 = vsel %vm1318, %v3293, 0
        %v3313 = vsel %vm1362, %v3301, 0
        %3315 = vmatprep.subr.mxu0 0.0
        %3316 = vmatpush1.msra.mxu0 %v3297
        %3317 = vmatprep.subr.mxu0 0.0
        %3318 = vmatpush1.msra.mxu0 %v3299
        %3319 = vmatprep.subr.mxu0 0.0
        %3320 = vmatpush1.msra.mxu0 %v3313
        %3321 = vmatprep.subr.mxu0 0.0
        %3322 = vmatpush1.msra.mxu0 0.0
        %3323 = vmatprep.subr.mxu0 0.0
        %3324 = vmatpush1.msra.mxu0 0.0
        %3325 = vmatprep.subr.mxu0 0.0
        %3326 = vmatpush1.msra.mxu0 0.0
        %3327 = vmatprep.subr.mxu0 0.0
        %3328 = vmatpush1.msra.mxu0 0.0
        %3329 = vmatprep.subr.mxu0 0.0
        %3330 = vmatpush1.msra.mxu0 0.0
        %3331 = vmatprep.subr.mxu0 0.0
        %3332 = vmatpush1.msra.mxu0 0.0
        %3333 = vmatprep.subr.mxu0 0.0
        %3334 = vmatpush1.msra.mxu0 0.0
        %3335 = vmatprep.subr.mxu0 0.0
        %3336 = vmatpush1.msra.mxu0 0.0
        %3337 = vmatprep.subr.mxu0 0.0
        %3338 = vmatpush1.msra.mxu0 0.0
        %3339 = vmatprep.subr.mxu0 0.0
        %3340 = vmatpush1.msra.mxu0 0.0
        %3341 = vmatprep.subr.mxu0 0.0
        %3342 = vmatpush1.msra.mxu0 0.0
        %3343 = vmatprep.subr.mxu0 0.0
        %3344 = vmatpush1.msra.mxu0 0.0
        %3345 = vmatprep.subr.mxu0 0.0
        %3346 = vmatpush1.msra.mxu0 0.0
        %3347 = vmatprep.subr.mxu0 0.0
        %3348 = vmatpush1.msra.mxu0 0.0
        %3349 = vmatprep.subr.mxu0 0.0
        %3350 = vmatpush1.msra.mxu0 0.0
        %3351 = vmatprep.subr.mxu0 0.0
        %3352 = vmatpush1.msra.mxu0 0.0
        %3353 = vmatprep.subr.mxu0 0.0
        %3354 = vmatpush1.msra.mxu0 0.0
        %3355 = vmatprep.subr.mxu0 0.0
        %3356 = vmatpush1.msra.mxu0 0.0
        %3357 = vmatprep.subr.mxu0 0.0
        %3358 = vmatpush1.msra.mxu0 0.0
        %3359 = vmatprep.subr.mxu0 0.0
        %3360 = vmatpush1.msra.mxu0 0.0
        %3361 = vmatprep.subr.mxu0 0.0
        %3362 = vmatpush1.msra.mxu0 0.0
        %3363 = vmatprep.subr.mxu0 0.0
        %3364 = vmatpush1.msra.mxu0 0.0
        %3365 = vmatprep.subr.mxu0 0.0
        %3366 = vmatpush1.msra.mxu0 0.0
        %3367 = vmatprep.subr.mxu0 0.0
        %3368 = vmatpush1.msra.mxu0 0.0
        %3369 = vmatprep.subr.mxu0 0.0
        %3370 = vmatpush1.msra.mxu0 0.0
        %3371 = vmatprep.subr.mxu0 0.0
        %3372 = vmatpush1.msra.mxu0 0.0
        %3373 = vmatprep.subr.mxu0 0.0
        %3374 = vmatpush1.msra.mxu0 0.0
        %3375 = vmatprep.subr.mxu0 0.0
        %3376 = vmatpush1.msra.mxu0 0.0
        %3377 = vmatprep.subr.mxu0 0.0
        %3378 = vmatpush1.msra.mxu0 0.0
        %3379 = vmatprep.mubr.f32.mxu0 0.0
        %3380 = vmatmul.mubr.f32.gmra.mrb[0].mxu0 %v3305
        %v3381 = vpop.f32.mrb[0].mxu0
        %v3382 = vadd.f32 0.0, %v3381
        %v3383 = vpop.f32.mrb[0].mxu0
        %3384 = vmatprep.mubr.f32.mxu0 0.0
        %3385 = vmatmul.mubr.f32.gmra.mrb[0].mxu0 %v3308
        %v3386 = vpop.f32.mrb[0].mxu0
        %v3387 = vadd.f32 0.0, %v3386
        %v3388 = vpop.f32.mrb[0].mxu0
        %3389 = vmatprep.mubr.f32.mxu0 0.0
        %3390 = vmatmul.mubr.f32.gmra.mrb[0].mxu0 %v3311
        %v3391 = vpop.f32.mrb[0].mxu0
        %v3392 = vadd.f32 0.0, %v3391
        %v3393 = vpop.f32.mrb[0].mxu0
        %3394 = vdwg.mxu0
        %3395 = vrot.lane.b32.xlu0 %v2925, 96
        %v3396 = vpop.permute.xlu0 %3395
        %3397 = vrot.lane.b32.xlu0 %v2926, 96
        %v3398 = vpop.permute.xlu0 %3397
        %3399 = vrot.lane.b32.xlu0 %v2927, 96
        %v3400 = vpop.permute.xlu0 %3399
        %3401 = vrot.lane.b32.xlu0 %v2909, 32
        %v3402 = vpop.permute.xlu0 %3401
        %3403 = vrot.lane.b32.xlu0 %v2915, 32
        %v3404 = vpop.permute.xlu0 %3403
        %3405 = vrot.lane.b32.xlu0 %v2921, 32
        %v3406 = vpop.permute.xlu0 %3405
        %v3407 = vsel %vm1222, %v3396, 0
        %v3409 = vsel %vm1222, %v3398, 0
        %v3411 = vsel %vm1222, %v3400, 0
        %v3413 = vsel %vm1222, %v3402, 0
        %v3415 = vsel %vm1222, %v3404, 0
        %v3417 = vsel %vm1222, %v3406, 0
        %3419 = vmatprep.subr.mxu0 0.0
        %3420 = vmatpush1.xpose.msra.mxu0 %v3413
        %3421 = vmatprep.subr.mxu0 0.0
        %3422 = vmatpush1.xpose.msra.mxu0 %v3415
        %3423 = vmatprep.subr.mxu0 0.0
        %3424 = vmatpush1.xpose.msra.mxu0 %v3417
        %3425 = vmatprep.subr.mxu0 0.0
        %3426 = vmatpush1.xpose.msra.mxu0 0.0
        %3427 = vmatprep.subr.mxu0 0.0
        %3428 = vmatpush1.xpose.msra.mxu0 0.0
        %3429 = vmatprep.subr.mxu0 0.0
        %3430 = vmatpush1.xpose.msra.mxu0 0.0
        %3431 = vmatprep.subr.mxu0 0.0
        %3432 = vmatpush1.xpose.msra.mxu0 0.0
        %3433 = vmatprep.subr.mxu0 0.0
        %3434 = vmatpush1.xpose.msra.mxu0 0.0
        %3435 = vmatprep.subr.mxu0 0.0
        %3436 = vmatpush1.xpose.msra.mxu0 0.0
        %3437 = vmatprep.subr.mxu0 0.0
        %3438 = vmatpush1.xpose.msra.mxu0 0.0
        %3439 = vmatprep.subr.mxu0 0.0
        %3440 = vmatpush1.xpose.msra.mxu0 0.0
        %3441 = vmatprep.subr.mxu0 0.0
        %3442 = vmatpush1.xpose.msra.mxu0 0.0
        %3443 = vmatprep.subr.mxu0 0.0
        %3444 = vmatpush1.xpose.msra.mxu0 0.0
        %3445 = vmatprep.subr.mxu0 0.0
        %3446 = vmatpush1.xpose.msra.mxu0 0.0
        %3447 = vmatprep.subr.mxu0 0.0
        %3448 = vmatpush1.xpose.msra.mxu0 0.0
        %3449 = vmatprep.subr.mxu0 0.0
        %3450 = vmatpush1.xpose.msra.mxu0 0.0
        %3451 = vmatprep.subr.mxu0 0.0
        %3452 = vmatpush1.xpose.msra.mxu0 0.0
        %3453 = vmatprep.subr.mxu0 0.0
        %3454 = vmatpush1.xpose.msra.mxu0 0.0
        %3455 = vmatprep.subr.mxu0 0.0
        %3456 = vmatpush1.xpose.msra.mxu0 0.0
        %3457 = vmatprep.subr.mxu0 0.0
        %3458 = vmatpush1.xpose.msra.mxu0 0.0
        %3459 = vmatprep.subr.mxu0 0.0
        %3460 = vmatpush1.xpose.msra.mxu0 0.0
        %3461 = vmatprep.subr.mxu0 0.0
        %3462 = vmatpush1.xpose.msra.mxu0 0.0
        %3463 = vmatprep.subr.mxu0 0.0
        %3464 = vmatpush1.xpose.msra.mxu0 0.0
        %3465 = vmatprep.subr.mxu0 0.0
        %3466 = vmatpush1.xpose.msra.mxu0 0.0
        %3467 = vmatprep.subr.mxu0 0.0
        %3468 = vmatpush1.xpose.msra.mxu0 0.0
        %3469 = vmatprep.subr.mxu0 0.0
        %3470 = vmatpush1.xpose.msra.mxu0 0.0
        %3471 = vmatprep.subr.mxu0 0.0
        %3472 = vmatpush1.xpose.msra.mxu0 0.0
        %3473 = vmatprep.subr.mxu0 0.0
        %3474 = vmatpush1.xpose.msra.mxu0 0.0
        %3475 = vmatprep.subr.mxu0 0.0
        %3476 = vmatpush1.xpose.msra.mxu0 0.0
        %3477 = vmatprep.subr.mxu0 0.0
        %3478 = vmatpush1.xpose.msra.mxu0 0.0
        %3479 = vmatprep.subr.mxu0 0.0
        %3480 = vmatpush1.xpose.msra.mxu0 0.0
        %3481 = vmatprep.subr.mxu0 0.0
        %3482 = vmatpush1.xpose.msra.mxu0 0.0
        %3483 = vmatprep.mubr.f32.mxu0 0.0
        %3484 = vmatmul.mubr.f32.gmra.mrb[0].mxu0 %v3407
        %v3485 = vpop.f32.mrb[0].mxu0
        %v3486 = vadd.f32 0.0, %v3485
        %v3487 = vpop.f32.mrb[0].mxu0
        %3488 = vmatprep.mubr.f32.mxu0 0.0
        %3489 = vmatmul.mubr.f32.gmra.mrb[0].mxu0 %v3409
        %v3490 = vpop.f32.mrb[0].mxu0
        %v3491 = vadd.f32 0.0, %v3490
        %v3492 = vpop.f32.mrb[0].mxu0
        %3493 = vmatprep.mubr.f32.mxu0 0.0
        %3494 = vmatmul.mubr.f32.gmra.mrb[0].mxu0 %v3411
        %v3495 = vpop.f32.mrb[0].mxu0
        %v3496 = vadd.f32 0.0, %v3495
        %v3497 = vpop.f32.mrb[0].mxu0
        %3498 = vdwg.mxu0
        %v3499 = vsel %vm1318, %v3486, -inf
        %3500 = vmax.xlane.f32.xlu0 %v3499
        %v3501 = vpop.xlane.xlu0 %3500
        %v3502 = vsel %vm1318, %v3491, -inf
        %3503 = vmax.xlane.f32.xlu0 %v3502
        %v3504 = vpop.xlane.xlu0 %3503
        %v3505 = vsel %vm1325, %v3496, -inf
        %3506 = vmax.xlane.f32.xlu0 %v3505
        %v3507 = vpop.xlane.xlu0 %3506
        %v3508 = vsub.f32 %v3486, %v3501
        %v3509 = vsub.f32 %v3491, %v3504
        %v3510 = vsub.f32 %v3496, %v3507
        %v3511 = vmul.f32 %v3508, 1.442695
        %v3512 = vpow.pop %v3511
        %v3513 = vmul.f32 %v3509, 1.442695
        %v3514 = vpow.pop %v3513
        %v3515 = vmul.f32 %v3510, 1.442695
        %v3516 = vpow.pop %v3515
        %v3517 = vsel %vm1318, %v3512, 0.0
        %3518 = vadd.xlane.f32.xlu0 %v3517
        %v3519 = vpop.xlane.xlu0 %3518
        %v3520 = vsel %vm1318, %v3514, 0.0
        %3521 = vadd.xlane.f32.xlu0 %v3520
        %v3522 = vpop.xlane.xlu0 %3521
        %v3523 = vsel %vm1325, %v3516, 0.0
        %3524 = vadd.xlane.f32.xlu0 %v3523
        %v3525 = vpop.xlane.xlu0 %3524
        %v3526 = vrcp.pop %v3519
        %v3527 = vrcp.pop %v3522
        %v3528 = vrcp.pop %v3525
        %v3529 = vmul.f32 %v3512, %v3526
        %v3530 = vmul.f32 %v3514, %v3527
        %v3531 = vmul.f32 %v3516, %v3528
        %3532 = vrot.lane.b32.xlu0 %v2911, 96
        %v3533 = vpop.permute.xlu0 %3532
        %3534 = vrot.lane.b32.xlu0 %v2917, 96
        %v3535 = vpop.permute.xlu0 %3534
        %3536 = vrot.lane.b32.xlu0 %v2923, 96
        %v3537 = vpop.permute.xlu0 %3536
        %v3541 = vsel %vm1318, %v3529, 0
        %v3544 = vsel %vm1318, %v3530, 0
        %v3547 = vsel %vm1318, %v3531, 0
        %v3549 = vsel %vm1362, %v3537, 0
        %3551 = vmatprep.subr.mxu0 0.0
        %3552 = vmatpush1.msra.mxu0 %v3533
        %3553 = vmatprep.subr.mxu0 0.0
        %3554 = vmatpush1.msra.mxu0 %v3535
        %3555 = vmatprep.subr.mxu0 0.0
        %3556 = vmatpush1.msra.mxu0 %v3549
        %3557 = vmatprep.subr.mxu0 0.0
        %3558 = vmatpush1.msra.mxu0 0.0
        %3559 = vmatprep.subr.mxu0 0.0
        %3560 = vmatpush1.msra.mxu0 0.0
        %3561 = vmatprep.subr.mxu0 0.0
        %3562 = vmatpush1.msra.mxu0 0.0
        %3563 = vmatprep.subr.mxu0 0.0
        %3564 = vmatpush1.msra.mxu0 0.0
        %3565 = vmatprep.subr.mxu0 0.0
        %3566 = vmatpush1.msra.mxu0 0.0
        %3567 = vmatprep.subr.mxu0 0.0
        %3568 = vmatpush1.msra.mxu0 0.0
        %3569 = vmatprep.subr.mxu0 0.0
        %3570 = vmatpush1.msra.mxu0 0.0
        %3571 = vmatprep.subr.mxu0 0.0
        %3572 = vmatpush1.msra.mxu0 0.0
        %3573 = vmatprep.subr.mxu0 0.0
        %3574 = vmatpush1.msra.mxu0 0.0
        %3575 = vmatprep.subr.mxu0 0.0
        %3576 = vmatpush1.msra.mxu0 0.0
        %3577 = vmatprep.subr.mxu0 0.0
        %3578 = vmatpush1.msra.mxu0 0.0
        %3579 = vmatprep.subr.mxu0 0.0
        %3580 = vmatpush1.msra.mxu0 0.0
        %3581 = vmatprep.subr.mxu0 0.0
        %3582 = vmatpush1.msra.mxu0 0.0
        %3583 = vmatprep.subr.mxu0 0.0
        %3584 = vmatpush1.msra.mxu0 0.0
        %3585 = vmatprep.subr.mxu0 0.0
        %3586 = vmatpush1.msra.mxu0 0.0
        %3587 = vmatprep.subr.mxu0 0.0
        %3588 = vmatpush1.msra.mxu0 0.0
        %3589 = vmatprep.subr.mxu0 0.0
        %3590 = vmatpush1.msra.mxu0 0.0
        %3591 = vmatprep.subr.mxu0 0.0
        %3592 = vmatpush1.msra.mxu0 0.0
        %3593 = vmatprep.subr.mxu0 0.0
        %3594 = vmatpush1.msra.mxu0 0.0
        %3595 = vmatprep.subr.mxu0 0.0
        %3596 = vmatpush1.msra.mxu0 0.0
        %3597 = vmatprep.subr.mxu0 0.0
        %3598 = vmatpush1.msra.mxu0 0.0
        %3599 = vmatprep.subr.mxu0 0.0
        %3600 = vmatpush1.msra.mxu0 0.0
        %3601 = vmatprep.subr.mxu0 0.0
        %3602 = vmatpush1.msra.mxu0 0.0
        %3603 = vmatprep.subr.mxu0 0.0
        %3604 = vmatpush1.msra.mxu0 0.0
        %3605 = vmatprep.subr.mxu0 0.0
        %3606 = vmatpush1.msra.mxu0 0.0
        %3607 = vmatprep.subr.mxu0 0.0
        %3608 = vmatpush1.msra.mxu0 0.0
        %3609 = vmatprep.subr.mxu0 0.0
        %3610 = vmatpush1.msra.mxu0 0.0
        %3611 = vmatprep.subr.mxu0 0.0
        %3612 = vmatpush1.msra.mxu0 0.0
        %3613 = vmatprep.subr.mxu0 0.0
        %3614 = vmatpush1.msra.mxu0 0.0
        %3615 = vmatprep.mubr.f32.mxu0 0.0
        %3616 = vmatmul.mubr.f32.gmra.mrb[0].mxu0 %v3541
        %v3617 = vpop.f32.mrb[0].mxu0
        %v3618 = vadd.f32 0.0, %v3617
        %v3619 = vpop.f32.mrb[0].mxu0
        %3620 = vmatprep.mubr.f32.mxu0 0.0
        %3621 = vmatmul.mubr.f32.gmra.mrb[0].mxu0 %v3544
        %v3622 = vpop.f32.mrb[0].mxu0
        %v3623 = vadd.f32 0.0, %v3622
        %v3624 = vpop.f32.mrb[0].mxu0
        %3625 = vmatprep.mubr.f32.mxu0 0.0
        %3626 = vmatmul.mubr.f32.gmra.mrb[0].mxu0 %v3547
        %v3627 = vpop.f32.mrb[0].mxu0
        %v3628 = vadd.f32 0.0, %v3627
        %v3629 = vpop.f32.mrb[0].mxu0
        %3630 = vdwg.mxu0
        %3631 = vrot.lane.b32.xlu0 %v2925, 80
        %v3632 = vpop.permute.xlu0 %3631
        %3633 = vrot.lane.b32.xlu0 %v2926, 80
        %v3634 = vpop.permute.xlu0 %3633
        %3635 = vrot.lane.b32.xlu0 %v2927, 80
        %v3636 = vpop.permute.xlu0 %3635
        %3637 = vrot.lane.b32.xlu0 %v2909, 16
        %v3638 = vpop.permute.xlu0 %3637
        %3639 = vrot.lane.b32.xlu0 %v2915, 16
        %v3640 = vpop.permute.xlu0 %3639
        %3641 = vrot.lane.b32.xlu0 %v2921, 16
        %v3642 = vpop.permute.xlu0 %3641
        %v3643 = vsel %vm1222, %v3632, 0
        %v3645 = vsel %vm1222, %v3634, 0
        %v3647 = vsel %vm1222, %v3636, 0
        %v3649 = vsel %vm1222, %v3638, 0
        %v3651 = vsel %vm1222, %v3640, 0
        %v3653 = vsel %vm1222, %v3642, 0
        %3655 = vmatprep.subr.mxu0 0.0
        %3656 = vmatpush1.xpose.msra.mxu0 %v3649
        %3657 = vmatprep.subr.mxu0 0.0
        %3658 = vmatpush1.xpose.msra.mxu0 %v3651
        %3659 = vmatprep.subr.mxu0 0.0
        %3660 = vmatpush1.xpose.msra.mxu0 %v3653
        %3661 = vmatprep.subr.mxu0 0.0
        %3662 = vmatpush1.xpose.msra.mxu0 0.0
        %3663 = vmatprep.subr.mxu0 0.0
        %3664 = vmatpush1.xpose.msra.mxu0 0.0
        %3665 = vmatprep.subr.mxu0 0.0
        %3666 = vmatpush1.xpose.msra.mxu0 0.0
        %3667 = vmatprep.subr.mxu0 0.0
        %3668 = vmatpush1.xpose.msra.mxu0 0.0
        %3669 = vmatprep.subr.mxu0 0.0
        %3670 = vmatpush1.xpose.msra.mxu0 0.0
        %3671 = vmatprep.subr.mxu0 0.0
        %3672 = vmatpush1.xpose.msra.mxu0 0.0
        %3673 = vmatprep.subr.mxu0 0.0
        %3674 = vmatpush1.xpose.msra.mxu0 0.0
        %3675 = vmatprep.subr.mxu0 0.0
        %3676 = vmatpush1.xpose.msra.mxu0 0.0
        %3677 = vmatprep.subr.mxu0 0.0
        %3678 = vmatpush1.xpose.msra.mxu0 0.0
        %3679 = vmatprep.subr.mxu0 0.0
        %3680 = vmatpush1.xpose.msra.mxu0 0.0
        %3681 = vmatprep.subr.mxu0 0.0
        %3682 = vmatpush1.xpose.msra.mxu0 0.0
        %3683 = vmatprep.subr.mxu0 0.0
        %3684 = vmatpush1.xpose.msra.mxu0 0.0
        %3685 = vmatprep.subr.mxu0 0.0
        %3686 = vmatpush1.xpose.msra.mxu0 0.0
        %3687 = vmatprep.subr.mxu0 0.0
        %3688 = vmatpush1.xpose.msra.mxu0 0.0
        %3689 = vmatprep.subr.mxu0 0.0
        %3690 = vmatpush1.xpose.msra.mxu0 0.0
        %3691 = vmatprep.subr.mxu0 0.0
        %3692 = vmatpush1.xpose.msra.mxu0 0.0
        %3693 = vmatprep.subr.mxu0 0.0
        %3694 = vmatpush1.xpose.msra.mxu0 0.0
        %3695 = vmatprep.subr.mxu0 0.0
        %3696 = vmatpush1.xpose.msra.mxu0 0.0
        %3697 = vmatprep.subr.mxu0 0.0
        %3698 = vmatpush1.xpose.msra.mxu0 0.0
        %3699 = vmatprep.subr.mxu0 0.0
        %3700 = vmatpush1.xpose.msra.mxu0 0.0
        %3701 = vmatprep.subr.mxu0 0.0
        %3702 = vmatpush1.xpose.msra.mxu0 0.0
        %3703 = vmatprep.subr.mxu0 0.0
        %3704 = vmatpush1.xpose.msra.mxu0 0.0
        %3705 = vmatprep.subr.mxu0 0.0
        %3706 = vmatpush1.xpose.msra.mxu0 0.0
        %3707 = vmatprep.subr.mxu0 0.0
        %3708 = vmatpush1.xpose.msra.mxu0 0.0
        %3709 = vmatprep.subr.mxu0 0.0
        %3710 = vmatpush1.xpose.msra.mxu0 0.0
        %3711 = vmatprep.subr.mxu0 0.0
        %3712 = vmatpush1.xpose.msra.mxu0 0.0
        %3713 = vmatprep.subr.mxu0 0.0
        %3714 = vmatpush1.xpose.msra.mxu0 0.0
        %3715 = vmatprep.subr.mxu0 0.0
        %3716 = vmatpush1.xpose.msra.mxu0 0.0
        %3717 = vmatprep.subr.mxu0 0.0
        %3718 = vmatpush1.xpose.msra.mxu0 0.0
        %3719 = vmatprep.mubr.f32.mxu0 0.0
        %3720 = vmatmul.mubr.f32.gmra.mrb[0].mxu0 %v3643
        %v3721 = vpop.f32.mrb[0].mxu0
        %v3722 = vadd.f32 0.0, %v3721
        %v3723 = vpop.f32.mrb[0].mxu0
        %3724 = vmatprep.mubr.f32.mxu0 0.0
        %3725 = vmatmul.mubr.f32.gmra.mrb[0].mxu0 %v3645
        %v3726 = vpop.f32.mrb[0].mxu0
        %v3727 = vadd.f32 0.0, %v3726
        %v3728 = vpop.f32.mrb[0].mxu0
        %3729 = vmatprep.mubr.f32.mxu0 0.0
        %3730 = vmatmul.mubr.f32.gmra.mrb[0].mxu0 %v3647
        %v3731 = vpop.f32.mrb[0].mxu0
        %v3732 = vadd.f32 0.0, %v3731
        %v3733 = vpop.f32.mrb[0].mxu0
        %3734 = vdwg.mxu0
        %v3735 = vsel %vm1318, %v3722, -inf
        %3736 = vmax.xlane.f32.xlu0 %v3735
        %v3737 = vpop.xlane.xlu0 %3736
        %v3738 = vsel %vm1318, %v3727, -inf
        %3739 = vmax.xlane.f32.xlu0 %v3738
        %v3740 = vpop.xlane.xlu0 %3739
        %v3741 = vsel %vm1325, %v3732, -inf
        %3742 = vmax.xlane.f32.xlu0 %v3741
        %v3743 = vpop.xlane.xlu0 %3742
        %v3744 = vsub.f32 %v3722, %v3737
        %v3745 = vsub.f32 %v3727, %v3740
        %v3746 = vsub.f32 %v3732, %v3743
        %v3747 = vmul.f32 %v3744, 1.442695
        %v3748 = vpow.pop %v3747
        %v3749 = vmul.f32 %v3745, 1.442695
        %v3750 = vpow.pop %v3749
        %v3751 = vmul.f32 %v3746, 1.442695
        %v3752 = vpow.pop %v3751
        %v3753 = vsel %vm1318, %v3748, 0.0
        %3754 = vadd.xlane.f32.xlu0 %v3753
        %v3755 = vpop.xlane.xlu0 %3754
        %v3756 = vsel %vm1318, %v3750, 0.0
        %3757 = vadd.xlane.f32.xlu0 %v3756
        %v3758 = vpop.xlane.xlu0 %3757
        %v3759 = vsel %vm1325, %v3752, 0.0
        %3760 = vadd.xlane.f32.xlu0 %v3759
        %v3761 = vpop.xlane.xlu0 %3760
        %v3762 = vrcp.pop %v3755
        %v3763 = vrcp.pop %v3758
        %v3764 = vrcp.pop %v3761
        %v3765 = vmul.f32 %v3748, %v3762
        %v3766 = vmul.f32 %v3750, %v3763
        %v3767 = vmul.f32 %v3752, %v3764
        %3768 = vrot.lane.b32.xlu0 %v2911, 80
        %v3769 = vpop.permute.xlu0 %3768
        %3770 = vrot.lane.b32.xlu0 %v2917, 80
        %v3771 = vpop.permute.xlu0 %3770
        %3772 = vrot.lane.b32.xlu0 %v2923, 80
        %v3773 = vpop.permute.xlu0 %3772
        %v3777 = vsel %vm1318, %v3765, 0
        %v3780 = vsel %vm1318, %v3766, 0
        %v3783 = vsel %vm1318, %v3767, 0
        %v3785 = vsel %vm1362, %v3773, 0
        %3787 = vmatprep.subr.mxu0 0.0
        %3788 = vmatpush1.msra.mxu0 %v3769
        %3789 = vmatprep.subr.mxu0 0.0
        %3790 = vmatpush1.msra.mxu0 %v3771
        %3791 = vmatprep.subr.mxu0 0.0
        %3792 = vmatpush1.msra.mxu0 %v3785
        %3793 = vmatprep.subr.mxu0 0.0
        %3794 = vmatpush1.msra.mxu0 0.0
        %3795 = vmatprep.subr.mxu0 0.0
        %3796 = vmatpush1.msra.mxu0 0.0
        %3797 = vmatprep.subr.mxu0 0.0
        %3798 = vmatpush1.msra.mxu0 0.0
        %3799 = vmatprep.subr.mxu0 0.0
        %3800 = vmatpush1.msra.mxu0 0.0
        %3801 = vmatprep.subr.mxu0 0.0
        %3802 = vmatpush1.msra.mxu0 0.0
        %3803 = vmatprep.subr.mxu0 0.0
        %3804 = vmatpush1.msra.mxu0 0.0
        %3805 = vmatprep.subr.mxu0 0.0
        %3806 = vmatpush1.msra.mxu0 0.0
        %3807 = vmatprep.subr.mxu0 0.0
        %3808 = vmatpush1.msra.mxu0 0.0
        %3809 = vmatprep.subr.mxu0 0.0
        %3810 = vmatpush1.msra.mxu0 0.0
        %3811 = vmatprep.subr.mxu0 0.0
        %3812 = vmatpush1.msra.mxu0 0.0
        %3813 = vmatprep.subr.mxu0 0.0
        %3814 = vmatpush1.msra.mxu0 0.0
        %3815 = vmatprep.subr.mxu0 0.0
        %3816 = vmatpush1.msra.mxu0 0.0
        %3817 = vmatprep.subr.mxu0 0.0
        %3818 = vmatpush1.msra.mxu0 0.0
        %3819 = vmatprep.subr.mxu0 0.0
        %3820 = vmatpush1.msra.mxu0 0.0
        %3821 = vmatprep.subr.mxu0 0.0
        %3822 = vmatpush1.msra.mxu0 0.0
        %3823 = vmatprep.subr.mxu0 0.0
        %3824 = vmatpush1.msra.mxu0 0.0
        %3825 = vmatprep.subr.mxu0 0.0
        %3826 = vmatpush1.msra.mxu0 0.0
        %3827 = vmatprep.subr.mxu0 0.0
        %3828 = vmatpush1.msra.mxu0 0.0
        %3829 = vmatprep.subr.mxu0 0.0
        %3830 = vmatpush1.msra.mxu0 0.0
        %3831 = vmatprep.subr.mxu0 0.0
        %3832 = vmatpush1.msra.mxu0 0.0
        %3833 = vmatprep.subr.mxu0 0.0
        %3834 = vmatpush1.msra.mxu0 0.0
        %3835 = vmatprep.subr.mxu0 0.0
        %3836 = vmatpush1.msra.mxu0 0.0
        %3837 = vmatprep.subr.mxu0 0.0
        %3838 = vmatpush1.msra.mxu0 0.0
        %3839 = vmatprep.subr.mxu0 0.0
        %3840 = vmatpush1.msra.mxu0 0.0
        %3841 = vmatprep.subr.mxu0 0.0
        %3842 = vmatpush1.msra.mxu0 0.0
        %3843 = vmatprep.subr.mxu0 0.0
        %3844 = vmatpush1.msra.mxu0 0.0
        %3845 = vmatprep.subr.mxu0 0.0
        %3846 = vmatpush1.msra.mxu0 0.0
        %3847 = vmatprep.subr.mxu0 0.0
        %3848 = vmatpush1.msra.mxu0 0.0
        %3849 = vmatprep.subr.mxu0 0.0
        %3850 = vmatpush1.msra.mxu0 0.0
        %3851 = vmatprep.mubr.f32.mxu0 0.0
        %3852 = vmatmul.mubr.f32.gmra.mrb[0].mxu0 %v3777
        %v3853 = vpop.f32.mrb[0].mxu0
        %v3854 = vadd.f32 0.0, %v3853
        %v3855 = vpop.f32.mrb[0].mxu0
        %3856 = vmatprep.mubr.f32.mxu0 0.0
        %3857 = vmatmul.mubr.f32.gmra.mrb[0].mxu0 %v3780
        %v3858 = vpop.f32.mrb[0].mxu0
        %v3859 = vadd.f32 0.0, %v3858
        %v3860 = vpop.f32.mrb[0].mxu0
        %3861 = vmatprep.mubr.f32.mxu0 0.0
        %3862 = vmatmul.mubr.f32.gmra.mrb[0].mxu0 %v3783
        %v3863 = vpop.f32.mrb[0].mxu0
        %v3864 = vadd.f32 0.0, %v3863
        %v3865 = vpop.f32.mrb[0].mxu0
        %3866 = vdwg.mxu0
        %3870 = vrot.lane.b32.xlu0 %v3382, 16
        %v3871 = vpop.permute.xlu0 %3870
        %3872 = vrot.lane.b32.xlu0 %v3387, 16
        %v3873 = vpop.permute.xlu0 %3872
        %3874 = vrot.lane.b32.xlu0 %v3392, 16
        %v3875 = vpop.permute.xlu0 %3874
        %3882 = vrot.lane.b32.xlu0 %v3618, 32
        %v3883 = vpop.permute.xlu0 %3882
        %3884 = vrot.lane.b32.xlu0 %v3623, 32
        %v3885 = vpop.permute.xlu0 %3884
        %3886 = vrot.lane.b32.xlu0 %v3628, 32
        %v3887 = vpop.permute.xlu0 %3886
        %3894 = vrot.lane.b32.xlu0 %v3854, 48
        %v3895 = vpop.permute.xlu0 %3894
        %3896 = vrot.lane.b32.xlu0 %v3859, 48
        %v3897 = vpop.permute.xlu0 %3896
        %3898 = vrot.lane.b32.xlu0 %v3864, 48
        %v3899 = vpop.permute.xlu0 %3898
        %v3903 = vsel %vm1222, %v3144, %v3871
        %v3904 = vsel %vm1222, %v3149, %v3873
        %v3905 = vsel %vm1222, %v3154, %v3875
        %v3906 = vsel %vm2195, %v3903, %v3883
        %v3907 = vsel %vm2195, %v3904, %v3885
        %v3908 = vsel %vm2195, %v3905, %v3887
        %v3909 = vsel %vm1034, %v3906, %v3895
        %v3910 = vsel %vm1034, %v3907, %v3897
        %v3911 = vsel %vm1034, %v3908, %v3899
        %v3912 = vld [vmem:[%s780] sm:$0xff]
        %v3913 = vld [vmem:[%s780 + $0x8] sm:$0xff]
        %v3914 = vld [vmem:[%s780 + $0x10] sm:$0xff]
        %v3915 = vld [vmem:[%s780 + $0x18] sm:$0xff]
        %v3916 = vld [vmem:[%s780 + $0x20] sm:$0xff]
        %v3917 = vld [vmem:[%s780 + $0x28] sm:$0xff]
        %v3918 = vld [vmem:[%s780 + $0x30] sm:$0xff]
        %v3919 = vld [vmem:[%s780 + $0x38] sm:$0xff]
        %v3921 = vsel %vm2210, %v3909, 0
        %v3924 = vsel %vm2210, %v3910, 0
        %v3927 = vsel %vm2210, %v3911, 0
        %3929 = vmatprep.subr.mxu0 0.0
        %3930 = vmatpush1.msra.mxu0 %v3912
        %3931 = vmatprep.subr.mxu0 0.0
        %3932 = vmatpush1.msra.mxu0 %v3913
        %3933 = vmatprep.subr.mxu0 0.0
        %3934 = vmatpush1.msra.mxu0 %v3914
        %3935 = vmatprep.subr.mxu0 0.0
        %3936 = vmatpush1.msra.mxu0 %v3915
        %3937 = vmatprep.subr.mxu0 0.0
        %3938 = vmatpush1.msra.mxu0 %v3916
        %3939 = vmatprep.subr.mxu0 0.0
        %3940 = vmatpush1.msra.mxu0 %v3917
        %3941 = vmatprep.subr.mxu0 0.0
        %3942 = vmatpush1.msra.mxu0 %v3918
        %3943 = vmatprep.subr.mxu0 0.0
        %3944 = vmatpush1.msra.mxu0 %v3919
        %3945 = vmatprep.subr.mxu0 0.0
        %3946 = vmatpush1.msra.mxu0 0.0
        %3947 = vmatprep.subr.mxu0 0.0
        %3948 = vmatpush1.msra.mxu0 0.0
        %3949 = vmatprep.subr.mxu0 0.0
        %3950 = vmatpush1.msra.mxu0 0.0
        %3951 = vmatprep.subr.mxu0 0.0
        %3952 = vmatpush1.msra.mxu0 0.0
        %3953 = vmatprep.subr.mxu0 0.0
        %3954 = vmatpush1.msra.mxu0 0.0
        %3955 = vmatprep.subr.mxu0 0.0
        %3956 = vmatpush1.msra.mxu0 0.0
        %3957 = vmatprep.subr.mxu0 0.0
        %3958 = vmatpush1.msra.mxu0 0.0
        %3959 = vmatprep.subr.mxu0 0.0
        %3960 = vmatpush1.msra.mxu0 0.0
        %3961 = vmatprep.subr.mxu0 0.0
        %3962 = vmatpush1.msra.mxu0 0.0
        %3963 = vmatprep.subr.mxu0 0.0
        %3964 = vmatpush1.msra.mxu0 0.0
        %3965 = vmatprep.subr.mxu0 0.0
        %3966 = vmatpush1.msra.mxu0 0.0
        %3967 = vmatprep.subr.mxu0 0.0
        %3968 = vmatpush1.msra.mxu0 0.0
        %3969 = vmatprep.subr.mxu0 0.0
        %3970 = vmatpush1.msra.mxu0 0.0
        %3971 = vmatprep.subr.mxu0 0.0
        %3972 = vmatpush1.msra.mxu0 0.0
        %3973 = vmatprep.subr.mxu0 0.0
        %3974 = vmatpush1.msra.mxu0 0.0
        %3975 = vmatprep.subr.mxu0 0.0
        %3976 = vmatpush1.msra.mxu0 0.0
        %3977 = vmatprep.subr.mxu0 0.0
        %3978 = vmatpush1.msra.mxu0 0.0
        %3979 = vmatprep.subr.mxu0 0.0
        %3980 = vmatpush1.msra.mxu0 0.0
        %3981 = vmatprep.subr.mxu0 0.0
        %3982 = vmatpush1.msra.mxu0 0.0
        %3983 = vmatprep.subr.mxu0 0.0
        %3984 = vmatpush1.msra.mxu0 0.0
        %3985 = vmatprep.subr.mxu0 0.0
        %3986 = vmatpush1.msra.mxu0 0.0
        %3987 = vmatprep.subr.mxu0 0.0
        %3988 = vmatpush1.msra.mxu0 0.0
        %3989 = vmatprep.subr.mxu0 0.0
        %3990 = vmatpush1.msra.mxu0 0.0
        %3991 = vmatprep.subr.mxu0 0.0
        %3992 = vmatpush1.msra.mxu0 0.0
        %3993 = vmatprep.mubr.f32.mxu0 0.0
        %3994 = vmatmul.mubr.f32.gmra.mrb[0].mxu0 %v3921
        %v3995 = vpop.f32.mrb[0].mxu0
        %v3996 = vadd.f32 0.0, %v3995
        %v3997 = vpop.f32.mrb[0].mxu0
        %3998 = vmatprep.mubr.f32.mxu0 0.0
        %3999 = vmatmul.mubr.f32.gmra.mrb[0].mxu0 %v3924
        %v4000 = vpop.f32.mrb[0].mxu0
        %v4001 = vadd.f32 0.0, %v4000
        %v4002 = vpop.f32.mrb[0].mxu0
        %4003 = vmatprep.mubr.f32.mxu0 0.0
        %4004 = vmatmul.mubr.f32.gmra.mrb[0].mxu0 %v3927
        %v4005 = vpop.f32.mrb[0].mxu0
        %v4006 = vadd.f32 0.0, %v4005
        %v4007 = vpop.f32.mrb[0].mxu0
        %4008 = vdwg.mxu0
        %v4009 = vadd.f32 %v2747, %v3996
        %v4010 = vadd.f32 %v2748, %v4001
        %v4011 = vadd.f32 %v2749, %v4006
        %v4012 = vld [vmem:[%s783] sm:$0x1]
        %v4014 = vlaneseq
        %v4015 = vshrl.u32 %v4014, 7
        %v4016 = vsub.s32 0, %v4015
        %v4017 = vrot.slane %v4012, %v4016
        %v4019 = vadd.f32 %v4009, %v4017
        %v4020 = vadd.f32 %v4010, %v4017
        %v4021 = vadd.f32 %v4011, %v4017
        %v4022 = vld [vmem:[%s786] sm:$0x1]
        %v4023 = vld [vmem:[%s789] sm:$0x1]
        %v4024 = vsel %vm1034, %v4019, 0.0
        %4025 = vadd.xlane.f32.xlu0 %v4024
        %v4026 = vpop.xlane.xlu0 %4025
        %v4027 = vsel %vm1034, %v4020, 0.0
        %4028 = vadd.xlane.f32.xlu0 %v4027
        %v4029 = vpop.xlane.xlu0 %4028
        %v4030 = vsel %vm1041, %v4021, 0.0
        %4031 = vadd.xlane.f32.xlu0 %v4030
        %v4032 = vpop.xlane.xlu0 %4031
        %v4033 = vmul.f32 %v4026, %v1045
        %v4034 = vmul.f32 %v4029, %v1045
        %v4035 = vmul.f32 %v4032, %v1045
        %v4036 = vsub.f32 %v4019, %v4033
        %v4037 = vsub.f32 %v4020, %v4034
        %v4038 = vsub.f32 %v4021, %v4035
        %v4039 = vmul.f32 %v4036, %v4036
        %v4040 = vmul.f32 %v4037, %v4037
        %v4041 = vmul.f32 %v4038, %v4038
        %v4042 = vsel %vm1034, %v4039, 0.0
        %4043 = vadd.xlane.f32.xlu0 %v4042
        %v4044 = vpop.xlane.xlu0 %4043
        %v4045 = vsel %vm1034, %v4040, 0.0
        %4046 = vadd.xlane.f32.xlu0 %v4045
        %v4047 = vpop.xlane.xlu0 %4046
        %v4048 = vsel %vm1041, %v4041, 0.0
        %4049 = vadd.xlane.f32.xlu0 %v4048
        %v4050 = vpop.xlane.xlu0 %4049
        %v4051 = vmul.f32 %v4044, %v1045
        %v4052 = vmul.f32 %v4047, %v1045
        %v4053 = vmul.f32 %v4050, %v1045
        %v4054 = vadd.f32 %v4051, 1e-05
        %v4055 = vadd.f32 %v4052, 1e-05
        %v4056 = vadd.f32 %v4053, 1e-05
        %v4057 = vrsqrt.pop %v4054
        %v4058 = vrsqrt.pop %v4055
        %v4059 = vrsqrt.pop %v4056
        %v4060 = vmul.f32 %v4036, %v4057
        %v4061 = vmul.f32 %v4037, %v4058
        %v4062 = vmul.f32 %v4038, %v4059
        %v4064 = vlaneseq
        %v4065 = vshrl.u32 %v4064, 7
        %v4066 = vsub.s32 0, %v4065
        %v4067 = vrot.slane %v4022, %v4066
        %v4069 = vmul.f32 %v4060, %v4067
        %v4070 = vmul.f32 %v4061, %v4067
        %v4071 = vmul.f32 %v4062, %v4067
        %v4073 = vlaneseq
        %v4074 = vshrl.u32 %v4073, 7
        %v4075 = vsub.s32 0, %v4074
        %v4076 = vrot.slane %v4023, %v4075
        %v4078 = vadd.f32 %v4069, %v4076
        %v4079 = vadd.f32 %v4070, %v4076
        %v4080 = vadd.f32 %v4071, %v4076
        %v4081 = vld [vmem:[%s794] sm:$0xff]
        %v4082 = vld [vmem:[%s794 + $0x8] sm:$0xff]
        %v4083 = vld [vmem:[%s794 + $0x10] sm:$0xff]
        %v4084 = vld [vmem:[%s794 + $0x18] sm:$0xff]
        %v4085 = vld [vmem:[%s794 + $0x20] sm:$0xff]
        %v4086 = vld [vmem:[%s794 + $0x28] sm:$0xff]
        %v4087 = vld [vmem:[%s797] sm:$0x1]
        %v4089 = vlaneseq
        %v4090 = vshrl.u32 %v4089, 7
        %v4091 = vsub.s32 0, %v4090
        %v4092 = vrot.slane %v4087, %v4091
        %v4095 = vsel %vm1034, %v4078, 0
        %v4098 = vsel %vm1034, %v4079, 0
        %v4101 = vsel %vm1034, %v4080, 0
        %4103 = vmatprep.subr.mxu0 0.0
        %4104 = vmatpush1.msra.mxu0 %v4081
        %4105 = vmatprep.subr.mxu0 0.0
        %4106 = vmatpush1.msra.mxu0 %v4082
        %4107 = vmatprep.subr.mxu0 0.0
        %4108 = vmatpush1.msra.mxu0 %v4083
        %4109 = vmatprep.subr.mxu0 0.0
        %4110 = vmatpush1.msra.mxu0 %v4084
        %4111 = vmatprep.subr.mxu0 0.0
        %4112 = vmatpush1.msra.mxu0 %v4085
        %4113 = vmatprep.subr.mxu0 0.0
        %4114 = vmatpush1.msra.mxu0 %v4086
        %4115 = vmatprep.subr.mxu0 0.0
        %4116 = vmatpush1.msra.mxu0 0.0
        %4117 = vmatprep.subr.mxu0 0.0
        %4118 = vmatpush1.msra.mxu0 0.0
        %4119 = vmatprep.subr.mxu0 0.0
        %4120 = vmatpush1.msra.mxu0 0.0
        %4121 = vmatprep.subr.mxu0 0.0
        %4122 = vmatpush1.msra.mxu0 0.0
        %4123 = vmatprep.subr.mxu0 0.0
        %4124 = vmatpush1.msra.mxu0 0.0
        %4125 = vmatprep.subr.mxu0 0.0
        %4126 = vmatpush1.msra.mxu0 0.0
        %4127 = vmatprep.subr.mxu0 0.0
        %4128 = vmatpush1.msra.mxu0 0.0
        %4129 = vmatprep.subr.mxu0 0.0
        %4130 = vmatpush1.msra.mxu0 0.0
        %4131 = vmatprep.subr.mxu0 0.0
        %4132 = vmatpush1.msra.mxu0 0.0
        %4133 = vmatprep.subr.mxu0 0.0
        %4134 = vmatpush1.msra.mxu0 0.0
        %4135 = vmatprep.subr.mxu0 0.0
        %4136 = vmatpush1.msra.mxu0 0.0
        %4137 = vmatprep.subr.mxu0 0.0
        %4138 = vmatpush1.msra.mxu0 0.0
        %4139 = vmatprep.subr.mxu0 0.0
        %4140 = vmatpush1.msra.mxu0 0.0
        %4141 = vmatprep.subr.mxu0 0.0
        %4142 = vmatpush1.msra.mxu0 0.0
        %4143 = vmatprep.subr.mxu0 0.0
        %4144 = vmatpush1.msra.mxu0 0.0
        %4145 = vmatprep.subr.mxu0 0.0
        %4146 = vmatpush1.msra.mxu0 0.0
        %4147 = vmatprep.subr.mxu0 0.0
        %4148 = vmatpush1.msra.mxu0 0.0
        %4149 = vmatprep.subr.mxu0 0.0
        %4150 = vmatpush1.msra.mxu0 0.0
        %4151 = vmatprep.subr.mxu0 0.0
        %4152 = vmatpush1.msra.mxu0 0.0
        %4153 = vmatprep.subr.mxu0 0.0
        %4154 = vmatpush1.msra.mxu0 0.0
        %4155 = vmatprep.subr.mxu0 0.0
        %4156 = vmatpush1.msra.mxu0 0.0
        %4157 = vmatprep.subr.mxu0 0.0
        %4158 = vmatpush1.msra.mxu0 0.0
        %4159 = vmatprep.subr.mxu0 0.0
        %4160 = vmatpush1.msra.mxu0 0.0
        %4161 = vmatprep.subr.mxu0 0.0
        %4162 = vmatpush1.msra.mxu0 0.0
        %4163 = vmatprep.subr.mxu0 0.0
        %4164 = vmatpush1.msra.mxu0 0.0
        %4165 = vmatprep.subr.mxu0 0.0
        %4166 = vmatpush1.msra.mxu0 0.0
        %4167 = vmatprep.mubr.f32.mxu0 0.0
        %4168 = vmatmul.mubr.f32.gmra.mrb[0].mxu0 %v4095
        %v4169 = vpop.f32.mrb[0].mxu0
        %v4170 = vadd.f32 %v4092, %v4169
        %v4171 = vpop.f32.mrb[0].mxu0
        %4172 = vmatprep.mubr.f32.mxu0 0.0
        %4173 = vmatmul.mubr.f32.gmra.mrb[0].mxu0 %v4098
        %v4174 = vpop.f32.mrb[0].mxu0
        %v4175 = vadd.f32 %v4092, %v4174
        %v4176 = vpop.f32.mrb[0].mxu0
        %4177 = vmatprep.mubr.f32.mxu0 0.0
        %4178 = vmatmul.mubr.f32.gmra.mrb[0].mxu0 %v4101
        %v4179 = vpop.f32.mrb[0].mxu0
        %v4180 = vadd.f32 %v4092, %v4179
        %v4181 = vpop.f32.mrb[0].mxu0
        %4182 = vdwg.mxu0
        %v4183 = vmul.f32 %v4170, 0.5
        %v4184 = vmul.f32 %v4175, 0.5
        %v4185 = vmul.f32 %v4180, 0.5
        %v4186 = vmul.f32 %v4170, 0.70710677
        %v4187 = vmul.f32 %v4175, 0.70710677
        %v4188 = vmul.f32 %v4180, 0.70710677
        %v4189 = vand.u32 2147483647, %v4186
        %v4190 = vand.u32 2147483647, %v4187
        %v4191 = vand.u32 2147483647, %v4188
        %v4192 = vmul.f32 %v4189, 0.3275911
        %v4193 = vmul.f32 %v4190, 0.3275911
        %v4194 = vmul.f32 %v4191, 0.3275911
        %v4195 = vadd.f32 %v4192, 1.0
        %v4196 = vadd.f32 %v4193, 1.0
        %v4197 = vadd.f32 %v4194, 1.0
        %v4198 = vrcp.pop %v4195
        %v4199 = vmul.f32 1.0, %v4198
        %v4200 = vrcp.pop %v4196
        %v4201 = vmul.f32 1.0, %v4200
        %v4202 = vrcp.pop %v4197
        %v4203 = vmul.f32 1.0, %v4202
        %v4204 = vmul.f32 %v4199, 1.0614054
        %v4205 = vmul.f32 %v4201, 1.0614054
        %v4206 = vmul.f32 %v4203, 1.0614054
        %v4207 = vadd.f32 %v4204, -1.4531521
        %v4208 = vadd.f32 %v4205, -1.4531521
        %v4209 = vadd.f32 %v4206, -1.4531521
        %v4210 = vmul.f32 %v4199, %v4207
        %v4211 = vmul.f32 %v4201, %v4208
        %v4212 = vmul.f32 %v4203, %v4209
        %v4213 = vadd.f32 %v4210, 1.4214138
        %v4214 = vadd.f32 %v4211, 1.4214138
        %v4215 = vadd.f32 %v4212, 1.4214138
        %v4216 = vmul.f32 %v4199, %v4213
        %v4217 = vmul.f32 %v4201, %v4214
        %v4218 = vmul.f32 %v4203, %v4215
        %v4219 = vadd.f32 %v4216, -0.28449672
        %v4220 = vadd.f32 %v4217, -0.28449672
        %v4221 = vadd.f32 %v4218, -0.28449672
        %v4222 = vmul.f32 %v4199, %v4219
        %v4223 = vmul.f32 %v4201, %v4220
        %v4224 = vmul.f32 %v4203, %v4221
        %v4225 = vadd.f32 %v4222, 0.2548296
        %v4226 = vadd.f32 %v4223, 0.2548296
        %v4227 = vadd.f32 %v4224, 0.2548296
        %v4228 = vmul.f32 %v4199, %v4225
        %v4229 = vmul.f32 %v4201, %v4226
        %v4230 = vmul.f32 %v4203, %v4227
        %v4231 = vsub.f32 0.0, %v4189
        %v4232 = vsub.f32 0.0, %v4190
        %v4233 = vsub.f32 0.0, %v4191
        %v4234 = vmul.f32 %v4231, %v4189
        %v4235 = vmul.f32 %v4232, %v4190
        %v4236 = vmul.f32 %v4233, %v4191
        %v4237 = vmul.f32 %v4234, 1.442695
        %v4238 = vpow.pop %v4237
        %v4239 = vmul.f32 %v4235, 1.442695
        %v4240 = vpow.pop %v4239
        %v4241 = vmul.f32 %v4236, 1.442695
        %v4242 = vpow.pop %v4241
        %v4243 = vmul.f32 %v4228, %v4238
        %v4244 = vmul.f32 %v4229, %v4240
        %v4245 = vmul.f32 %v4230, %v4242
        %v4246 = vsub.f32 1.0, %v4243
        %v4247 = vsub.f32 1.0, %v4244
        %v4248 = vsub.f32 1.0, %v4245
        %vm4249 = vcmp.lt.f32.partialorder %v4186, 0.0
        %vm4250 = vcmp.lt.f32.partialorder %v4187, 0.0
        %vm4251 = vcmp.lt.f32.partialorder %v4188, 0.0
        %v4252 = vsub.f32 0.0, %v4246
        %v4253 = vsub.f32 0.0, %v4247
        %v4254 = vsub.f32 0.0, %v4248
        %v4255 = vsel %vm4249, %v4252, %v4246
        %v4256 = vsel %vm4250, %v4253, %v4247
        %v4257 = vsel %vm4251, %v4254, %v4248
        %v4258 = vadd.f32 %v4255, 1.0
        %v4259 = vadd.f32 %v4256, 1.0
        %v4260 = vadd.f32 %v4257, 1.0
        %v4261 = vmul.f32 %v4183, %v4258
        %v4262 = vmul.f32 %v4184, %v4259
        %v4263 = vmul.f32 %v4185, %v4260
        %v4264 = vld [vmem:[%s802] sm:$0xff]
        %v4265 = vld [vmem:[%s802 + $0x8] sm:$0xff]
        %v4266 = vld [vmem:[%s802 + $0x10] sm:$0xff]
        %v4267 = vld [vmem:[%s802 + $0x18] sm:$0xff]
        %v4268 = vld [vmem:[%s802 + $0x20] sm:$0xff]
        %v4269 = vld [vmem:[%s802 + $0x28] sm:$0xff]
        %v4270 = vld [vmem:[%s802 + $0x30] sm:$0xff]
        %v4271 = vld [vmem:[%s802 + $0x38] sm:$0xff]
        %v4272 = vld [vmem:[%s805] sm:$0x1]
        %v4274 = vlaneseq
        %v4275 = vshrl.u32 %v4274, 7
        %v4276 = vsub.s32 0, %v4275
        %v4277 = vrot.slane %v4272, %v4276
        %v4280 = vsel %vm2210, %v4261, 0
        %v4283 = vsel %vm2210, %v4262, 0
        %v4286 = vsel %vm2210, %v4263, 0
        %4288 = vmatprep.subr.mxu0 0.0
        %4289 = vmatpush1.msra.mxu0 %v4264
        %4290 = vmatprep.subr.mxu0 0.0
        %4291 = vmatpush1.msra.mxu0 %v4265
        %4292 = vmatprep.subr.mxu0 0.0
        %4293 = vmatpush1.msra.mxu0 %v4266
        %4294 = vmatprep.subr.mxu0 0.0
        %4295 = vmatpush1.msra.mxu0 %v4267
        %4296 = vmatprep.subr.mxu0 0.0
        %4297 = vmatpush1.msra.mxu0 %v4268
        %4298 = vmatprep.subr.mxu0 0.0
        %4299 = vmatpush1.msra.mxu0 %v4269
        %4300 = vmatprep.subr.mxu0 0.0
        %4301 = vmatpush1.msra.mxu0 %v4270
        %4302 = vmatprep.subr.mxu0 0.0
        %4303 = vmatpush1.msra.mxu0 %v4271
        %4304 = vmatprep.subr.mxu0 0.0
        %4305 = vmatpush1.msra.mxu0 0.0
        %4306 = vmatprep.subr.mxu0 0.0
        %4307 = vmatpush1.msra.mxu0 0.0
        %4308 = vmatprep.subr.mxu0 0.0
        %4309 = vmatpush1.msra.mxu0 0.0
        %4310 = vmatprep.subr.mxu0 0.0
        %4311 = vmatpush1.msra.mxu0 0.0
        %4312 = vmatprep.subr.mxu0 0.0
        %4313 = vmatpush1.msra.mxu0 0.0
        %4314 = vmatprep.subr.mxu0 0.0
        %4315 = vmatpush1.msra.mxu0 0.0
        %4316 = vmatprep.subr.mxu0 0.0
        %4317 = vmatpush1.msra.mxu0 0.0
        %4318 = vmatprep.subr.mxu0 0.0
        %4319 = vmatpush1.msra.mxu0 0.0
        %4320 = vmatprep.subr.mxu0 0.0
        %4321 = vmatpush1.msra.mxu0 0.0
        %4322 = vmatprep.subr.mxu0 0.0
        %4323 = vmatpush1.msra.mxu0 0.0
        %4324 = vmatprep.subr.mxu0 0.0
        %4325 = vmatpush1.msra.mxu0 0.0
        %4326 = vmatprep.subr.mxu0 0.0
        %4327 = vmatpush1.msra.mxu0 0.0
        %4328 = vmatprep.subr.mxu0 0.0
        %4329 = vmatpush1.msra.mxu0 0.0
        %4330 = vmatprep.subr.mxu0 0.0
        %4331 = vmatpush1.msra.mxu0 0.0
        %4332 = vmatprep.subr.mxu0 0.0
        %4333 = vmatpush1.msra.mxu0 0.0
        %4334 = vmatprep.subr.mxu0 0.0
        %4335 = vmatpush1.msra.mxu0 0.0
        %4336 = vmatprep.subr.mxu0 0.0
        %4337 = vmatpush1.msra.mxu0 0.0
        %4338 = vmatprep.subr.mxu0 0.0
        %4339 = vmatpush1.msra.mxu0 0.0
        %4340 = vmatprep.subr.mxu0 0.0
        %4341 = vmatpush1.msra.mxu0 0.0
        %4342 = vmatprep.subr.mxu0 0.0
        %4343 = vmatpush1.msra.mxu0 0.0
        %4344 = vmatprep.subr.mxu0 0.0
        %4345 = vmatpush1.msra.mxu0 0.0
        %4346 = vmatprep.subr.mxu0 0.0
        %4347 = vmatpush1.msra.mxu0 0.0
        %4348 = vmatprep.subr.mxu0 0.0
        %4349 = vmatpush1.msra.mxu0 0.0
        %4350 = vmatprep.subr.mxu0 0.0
        %4351 = vmatpush1.msra.mxu0 0.0
        %4352 = vmatprep.mubr.f32.mxu0 0.0
        %4353 = vmatmul.mubr.f32.gmra.mrb[0].mxu0 %v4280
        %v4354 = vpop.f32.mrb[0].mxu0
        %v4355 = vadd.f32 %v4277, %v4354
        %v4356 = vpop.f32.mrb[0].mxu0
        %4357 = vmatprep.mubr.f32.mxu0 0.0
        %4358 = vmatmul.mubr.f32.gmra.mrb[0].mxu0 %v4283
        %v4359 = vpop.f32.mrb[0].mxu0
        %v4360 = vadd.f32 %v4277, %v4359
        %v4361 = vpop.f32.mrb[0].mxu0
        %4362 = vmatprep.mubr.f32.mxu0 0.0
        %4363 = vmatmul.mubr.f32.gmra.mrb[0].mxu0 %v4286
        %v4364 = vpop.f32.mrb[0].mxu0
        %v4365 = vadd.f32 %v4277, %v4364
        %v4366 = vpop.f32.mrb[0].mxu0
        %4367 = vdwg.mxu0
        %v4368 = vmul.f32 %v4355, 0.5
        %v4369 = vmul.f32 %v4360, 0.5
        %v4370 = vmul.f32 %v4365, 0.5
        %v4371 = vmul.f32 %v4355, 0.70710677
        %v4372 = vmul.f32 %v4360, 0.70710677
        %v4373 = vmul.f32 %v4365, 0.70710677
        %v4374 = vand.u32 2147483647, %v4371
        %v4375 = vand.u32 2147483647, %v4372
        %v4376 = vand.u32 2147483647, %v4373
        %v4377 = vmul.f32 %v4374, 0.3275911
        %v4378 = vmul.f32 %v4375, 0.3275911
        %v4379 = vmul.f32 %v4376, 0.3275911
        %v4380 = vadd.f32 %v4377, 1.0
        %v4381 = vadd.f32 %v4378, 1.0
        %v4382 = vadd.f32 %v4379, 1.0
        %v4383 = vrcp.pop %v4380
        %v4384 = vmul.f32 1.0, %v4383
        %v4385 = vrcp.pop %v4381
        %v4386 = vmul.f32 1.0, %v4385
        %v4387 = vrcp.pop %v4382
        %v4388 = vmul.f32 1.0, %v4387
        %v4389 = vmul.f32 %v4384, 1.0614054
        %v4390 = vmul.f32 %v4386, 1.0614054
        %v4391 = vmul.f32 %v4388, 1.0614054
        %v4392 = vadd.f32 %v4389, -1.4531521
        %v4393 = vadd.f32 %v4390, -1.4531521
        %v4394 = vadd.f32 %v4391, -1.4531521
        %v4395 = vmul.f32 %v4384, %v4392
        %v4396 = vmul.f32 %v4386, %v4393
        %v4397 = vmul.f32 %v4388, %v4394
        %v4398 = vadd.f32 %v4395, 1.4214138
        %v4399 = vadd.f32 %v4396, 1.4214138
        %v4400 = vadd.f32 %v4397, 1.4214138
        %v4401 = vmul.f32 %v4384, %v4398
        %v4402 = vmul.f32 %v4386, %v4399
        %v4403 = vmul.f32 %v4388, %v4400
        %v4404 = vadd.f32 %v4401, -0.28449672
        %v4405 = vadd.f32 %v4402, -0.28449672
        %v4406 = vadd.f32 %v4403, -0.28449672
        %v4407 = vmul.f32 %v4384, %v4404
        %v4408 = vmul.f32 %v4386, %v4405
        %v4409 = vmul.f32 %v4388, %v4406
        %v4410 = vadd.f32 %v4407, 0.2548296
        %v4411 = vadd.f32 %v4408, 0.2548296
        %v4412 = vadd.f32 %v4409, 0.2548296
        %v4413 = vmul.f32 %v4384, %v4410
        %v4414 = vmul.f32 %v4386, %v4411
        %v4415 = vmul.f32 %v4388, %v4412
        %v4416 = vsub.f32 0.0, %v4374
        %v4417 = vsub.f32 0.0, %v4375
        %v4418 = vsub.f32 0.0, %v4376
        %v4419 = vmul.f32 %v4416, %v4374
        %v4420 = vmul.f32 %v4417, %v4375
        %v4421 = vmul.f32 %v4418, %v4376
        %v4422 = vmul.f32 %v4419, 1.442695
        %v4423 = vpow.pop %v4422
        %v4424 = vmul.f32 %v4420, 1.442695
        %v4425 = vpow.pop %v4424
        %v4426 = vmul.f32 %v4421, 1.442695
        %v4427 = vpow.pop %v4426
        %v4428 = vmul.f32 %v4413, %v4423
        %v4429 = vmul.f32 %v4414, %v4425
        %v4430 = vmul.f32 %v4415, %v4427
        %v4431 = vsub.f32 1.0, %v4428
        %v4432 = vsub.f32 1.0, %v4429
        %v4433 = vsub.f32 1.0, %v4430
        %vm4434 = vcmp.lt.f32.partialorder %v4371, 0.0
        %vm4435 = vcmp.lt.f32.partialorder %v4372, 0.0
        %vm4436 = vcmp.lt.f32.partialorder %v4373, 0.0
        %v4437 = vsub.f32 0.0, %v4431
        %v4438 = vsub.f32 0.0, %v4432
        %v4439 = vsub.f32 0.0, %v4433
        %v4440 = vsel %vm4434, %v4437, %v4431
        %v4441 = vsel %vm4435, %v4438, %v4432
        %v4442 = vsel %vm4436, %v4439, %v4433
        %v4443 = vadd.f32 %v4440, 1.0
        %v4444 = vadd.f32 %v4441, 1.0
        %v4445 = vadd.f32 %v4442, 1.0
        %v4446 = vmul.f32 %v4368, %v4443
        %v4447 = vmul.f32 %v4369, %v4444
        %v4448 = vmul.f32 %v4370, %v4445
        %v4449 = vadd.f32 %v4019, %v4446
        %v4450 = vadd.f32 %v4020, %v4447
        %v4451 = vadd.f32 %v4021, %v4448
        %4452 = vst.msk [vmem:[%s2746] sm:$0xff] %vm1034, %v4449
        %4453 = vst.msk [vmem:[%s2746 + $0x8] sm:$0xff] %vm1034, %v4450
        %4454 = vst.msk [vmem:[%s2746 + $0x10] sm:$0x1] %vm1041, %v4451
        %p4455 = scmp.eq.s32.totalorder %s36, 1
        // Predicated region
        $region101: #{vit_forward.1} parent=95 // pred_check
          %p4456 = pneg %p4455
        $region102: #{vit_forward.1} parent=95 // pred_check_branch
          %4458 = sbr.rel (%p4456) target = $region104
        $region103: #{vit_forward.1} parent=95 // pred_region
          %v4460 = vrot.slane %v4449, 7
          %v4462 = vsel %vm1362, %v2740, %v4460
          %v4463 = vld [vmem:[%s15] sm:$0x1]
          %v4464 = vld [vmem:[%s16] sm:$0x1]
          %vm4465 = vcmask 386048
          %v4466 = vsel %vm4465, %v4462, 0.0
          %4467 = vadd.xlane.f32.xlu0 %v4466
          %v4468 = vpop.xlane.xlu0 %4467
          %v4469 = vmul.f32 %v4468, %v1045
          %v4470 = vsub.f32 %v4462, %v4469
          %v4471 = vmul.f32 %v4470, %v4470
          %v4472 = vsel %vm4465, %v4471, 0.0
          %4473 = vadd.xlane.f32.xlu0 %v4472
          %v4474 = vpop.xlane.xlu0 %4473
          %v4475 = vmul.f32 %v4474, %v1045
          %v4476 = vadd.f32 %v4475, 1e-05
          %v4477 = vrsqrt.pop %v4476
          %v4478 = vmul.f32 %v4470, %v4477
          %v4480 = vlaneseq
          %v4481 = vshrl.u32 %v4480, 7
          %v4482 = vsub.s32 0, %v4481
          %v4483 = vrot.slane %v4463, %v4482
          %v4485 = vmul.f32 %v4478, %v4483
          %v4487 = vlaneseq
          %v4488 = vshrl.u32 %v4487, 7
          %v4489 = vsub.s32 0, %v4488
          %v4490 = vrot.slane %v4464, %v4489
          %v4492 = vadd.f32 %v4485, %v4490
          %v4493 = vld [vmem:[%s17] sm:$0xff]
          %v4494 = vld [vmem:[%s17 + $0x8] sm:$0xff]
          %v4495 = vld [vmem:[%s17 + $0x10] sm:$0xff]
          %v4496 = vld [vmem:[%s17 + $0x18] sm:$0xff]
          %v4497 = vld [vmem:[%s17 + $0x20] sm:$0xff]
          %v4498 = vld [vmem:[%s17 + $0x28] sm:$0xff]
          %v4499 = vld [vmem:[%s18] sm:$0x1]
          %v4501 = vlaneseq
          %v4502 = vshrl.u32 %v4501, 7
          %v4503 = vsub.s32 0, %v4502
          %v4504 = vrot.slane %v4499, %v4503
          %v4507 = vsel %vm1034, %v4492, 0
          %4509 = vmatprep.subr.mxu0 0.0
          %4510 = vmatpush1.msra.mxu0 %v4493
          %4511 = vmatprep.subr.mxu0 0.0
          %4512 = vmatpush1.msra.mxu0 %v4494
          %4513 = vmatprep.subr.mxu0 0.0
          %4514 = vmatpush1.msra.mxu0 %v4495
          %4515 = vmatprep.subr.mxu0 0.0
          %4516 = vmatpush1.msra.mxu0 %v4496
          %4517 = vmatprep.subr.mxu0 0.0
          %4518 = vmatpush1.msra.mxu0 %v4497
          %4519 = vmatprep.subr.mxu0 0.0
          %4520 = vmatpush1.msra.mxu0 %v4498
          %4521 = vmatprep.subr.mxu0 0.0
          %4522 = vmatpush1.msra.mxu0 0.0
          %4523 = vmatprep.subr.mxu0 0.0
          %4524 = vmatpush1.msra.mxu0 0.0
          %4525 = vmatprep.subr.mxu0 0.0
          %4526 = vmatpush1.msra.mxu0 0.0
          %4527 = vmatprep.subr.mxu0 0.0
          %4528 = vmatpush1.msra.mxu0 0.0
          %4529 = vmatprep.subr.mxu0 0.0
          %4530 = vmatpush1.msra.mxu0 0.0
          %4531 = vmatprep.subr.mxu0 0.0
          %4532 = vmatpush1.msra.mxu0 0.0
          %4533 = vmatprep.subr.mxu0 0.0
          %4534 = vmatpush1.msra.mxu0 0.0
          %4535 = vmatprep.subr.mxu0 0.0
          %4536 = vmatpush1.msra.mxu0 0.0
          %4537 = vmatprep.subr.mxu0 0.0
          %4538 = vmatpush1.msra.mxu0 0.0
          %4539 = vmatprep.subr.mxu0 0.0
          %4540 = vmatpush1.msra.mxu0 0.0
          %4541 = vmatprep.subr.mxu0 0.0
          %4542 = vmatpush1.msra.mxu0 0.0
          %4543 = vmatprep.subr.mxu0 0.0
          %4544 = vmatpush1.msra.mxu0 0.0
          %4545 = vmatprep.subr.mxu0 0.0
          %4546 = vmatpush1.msra.mxu0 0.0
          %4547 = vmatprep.subr.mxu0 0.0
          %4548 = vmatpush1.msra.mxu0 0.0
          %4549 = vmatprep.subr.mxu0 0.0
          %4550 = vmatpush1.msra.mxu0 0.0
          %4551 = vmatprep.subr.mxu0 0.0
          %4552 = vmatpush1.msra.mxu0 0.0
          %4553 = vmatprep.subr.mxu0 0.0
          %4554 = vmatpush1.msra.mxu0 0.0
          %4555 = vmatprep.subr.mxu0 0.0
          %4556 = vmatpush1.msra.mxu0 0.0
          %4557 = vmatprep.subr.mxu0 0.0
          %4558 = vmatpush1.msra.mxu0 0.0
          %4559 = vmatprep.subr.mxu0 0.0
          %4560 = vmatpush1.msra.mxu0 0.0
          %4561 = vmatprep.subr.mxu0 0.0
          %4562 = vmatpush1.msra.mxu0 0.0
          %4563 = vmatprep.subr.mxu0 0.0
          %4564 = vmatpush1.msra.mxu0 0.0
          %4565 = vmatprep.subr.mxu0 0.0
          %4566 = vmatpush1.msra.mxu0 0.0
          %4567 = vmatprep.subr.mxu0 0.0
          %4568 = vmatpush1.msra.mxu0 0.0
          %4569 = vmatprep.subr.mxu0 0.0
          %4570 = vmatpush1.msra.mxu0 0.0
          %4571 = vmatprep.subr.mxu0 0.0
          %4572 = vmatpush1.msra.mxu0 0.0
          %4573 = vmatprep.mubr.f32.mxu0 0.0
          %4574 = vmatmul.mubr.f32.gmra.mrb[0].mxu0 %v4507
          %v4575 = vpop.f32.mrb[0].mxu0
          %v4576 = vadd.f32 %v4504, %v4575
          %v4577 = vpop.f32.mrb[0].mxu0
          %4578 = vdwg.mxu0
          %4579 = vst [vmem:[#allocation3] sm:$0x3] %v4576
        $region104: #{vit_forward.1} parent=95 // pred_fallthru
          _
        // Predicated region
        $region105: #{vit_forward.1} parent=95 // pred_check
          %p4580 = pneg %p525
        $region106: #{vit_forward.1} parent=95 // pred_check_branch
          %4582 = sbr.rel (%p4580) target = $region108
        $region107: #{vit_forward.1} parent=95 // pred_region
          %s4584 = ssub.s32 32, 32
          %4585 = vsyncadd [#allocation4], %s4584
          %s4586 = smul.addr %s35, 32
          %s4587 = scalar_lea.hbm %s19, %s4586
          %s4589 = sshll.u32 [#allocation3], 4
          %s4590 = int_to_ptr.vmem [resolvable:$true] %s4589
          %4592 = dma.vmem_to_hbm [thread:$0]  %s4590, 32, %s4587, [#allocation4]
        $region108: #{vit_forward.1} parent=95 // pred_fallthru
          _
        // Predicated region
        $region109: #{vit_forward.1} parent=95 // pred_check
          %p4593 = pneg %p525
        $region110: #{vit_forward.1} parent=95 // pred_check_branch
          %4595 = sbr.rel (%p4593) target = $region112
        $region111: #{vit_forward.1} parent=95 // pred_region
          %4596 = dma.done [#allocation4], 32
        $region112: #{vit_forward.1} parent=95 // pred_fallthru
          _
      $region96: #{vit_forward.1} parent=5 // pred_fallthru
        _
      %p4597 = scmp.le.s32.totalorder 2, %s26
      // Predicated region
      $region113: #{vit_forward.1} parent=5 // pred_check
        %p4598 = pneg %p4597
      $region114: #{vit_forward.1} parent=5 // pred_check_branch
        %4600 = sbr.rel (%p4598) target = $region116
      $region115: #{vit_forward.1} parent=5 // pred_region
        %s4601 = ssub.s32 %s26, 2
      $region116: #{vit_forward.1} parent=5 // pred_fallthru
        _
    $region6: #{vit_forward.1} parent=1 // loop_footer
      %s30 = sadd.s32 1, %s26
    $region7: #{vit_forward.1} parent=1 // loop_footer_branch
      %25 = sbr.rel target = $region3
    $region8: #{vit_forward.1} parent=1 // loop_exit
      _
    %4602 = vsyncpa [#allocation4], 1
    %s4603 = scalar_lea.sflag [#allocation4], 1
    %4604 = vsyncpa %s4603, 1

</llo_original>
